<compile_context>
chip_gen: v6e
topology: v6e:2x2x1
jax: 0.10.0
libtpu: 0.0.40
codegen_flags: <defaults>
</compile_context>

<pallas_src>
import functools
import math

import jax
import jax.numpy as jnp
from jax.experimental import pallas as pl
from jax.experimental.pallas import tpu as pltpu

HIDDEN = 32     # hidden_dim
IN_FEATS = 8    # raw node-feature dim fed to the embedding layer
N_NODES = 16    # number of graph nodes (single-graph batch)
RATIO = 0.5     # SAGPooling ratio
N_STAGES = 4


# --------------------------------------------------------------------------
# Single fused Pallas kernel: whole forward pass, everything stays on-chip.
# --------------------------------------------------------------------------

def _gnn_fused_kernel(
    x_in_ref, adj_ref, adjw_ref,          # graph
    w_emb_ref, b_emb_ref,                 # embedding layer
    wr_ref, wn_ref, bc_ref,               # conv1..4 stacked: (4,H,H),(4,H,H),(4,1,H)
    wpr_ref, wpn_ref, bp_ref,             # pool1..4 score heads: (4,H,1),(4,H,1),(4,1,1)
    w_l1_ref, b_l1_ref,                   # self.l1
    w_g_local_ref, w_g_gmp_ref, w_g_gap_ref, b_lin1_ref,   # lin1 split by input rows
    w_lin2_ref, b_lin2_ref,
    w_lin3_ref, b_lin3_ref,
    o_ref,
    *, n, ks):
    f32 = jnp.float32

    def mm(a, b):
        return jnp.dot(a, b, preferred_element_type=f32)

    # 2-D iotas (1-D iota is not supported on TPU); used for tie-break & "eye".
    row_idx = jax.lax.broadcasted_iota(jnp.int32, (n, n), 0)
    col_idx = jax.lax.broadcasted_iota(jnp.int32, (n, n), 1)
    eye = jnp.where(row_idx == col_idx, 1.0, 0.0).astype(f32)

    def col_to_row(v_col):
        # (n, 1) column -> (1, n) row without a hardware transpose:
        # broadcast along lanes, mask with eye, sublane-reduce.
        return jnp.sum(jnp.broadcast_to(v_col, (n, n)) * eye,
                       axis=0, keepdims=True)

    # ---- embedding layer ------------------------------------------------
    x = mm(x_in_ref[...], w_emb_ref[...]) + b_emb_ref[...]        # (n, H)

    adj_u = adj_ref[...]                                          # unweighted
    adj_w = adjw_ref[...]                                         # edge_attr weighted
    valid = jnp.ones((n, 1), f32)

    gmp_acc = jnp.zeros((1, HIDDEN), f32)                         # sum of gmp readouts
    gap_acc = jnp.zeros((1, HIDDEN), f32)                         # sum of gap readouts
    x_local = None

    for stage in range(N_STAGES):
        # conv2 / conv4 use edge_attr (weighted adjacency); conv1 / conv3 don't.
        a_conv = adj_w if stage in (1, 3) else adj_u
        agg = mm(a_conv, x)
        x = mm(x, wr_ref[stage]) + mm(agg, wn_ref[stage]) + bc_ref[stage]
        x = jnp.maximum(x, 0.0)                                   # relu(conv_k)

        if stage == 0:
            x_local = mm(x, w_l1_ref[...]) + b_l1_ref[...]        # self.l1

        # ---- SAGPooling: GraphConv(H, 1) score + in-kernel top-k ---------
        agg_u = mm(adj_u, x)
        score = (mm(x, wpr_ref[stage]) + mm(agg_u, wpn_ref[stage])
                 + bp_ref[stage])                                 # (n, 1)

        s_row = col_to_row(score)                                 # (1, n): s_j
        v_row = col_to_row(valid)                                 # (1, n)
        # "j ranks ahead of i": higher score, or equal score with smaller index
        ahead = jnp.where((s_row > score)
                          | ((s_row == score) & (col_idx < row_idx)),
                          1.0, 0.0).astype(f32)                   # (n, n)
        rank = jnp.sum(ahead * v_row, axis=1, keepdims=True)      # (n, 1)
        keep = jnp.where((rank < float(ks[stage])) & (valid > 0.5),
                         1.0, 0.0).astype(f32)                    # (n, 1)

        gate = jnp.tanh(score)
        x = x * gate * keep                                       # gate + drop nodes
        keep_row = col_to_row(keep)
        edge_mask = keep * keep_row                               # (n, n)
        adj_u = adj_u * edge_mask
        adj_w = adj_w * edge_mask
        valid = keep

        # ---- readout [gmp || gap], accumulated across the 4 stages -------
        cnt = jnp.maximum(jnp.sum(keep, axis=0, keepdims=True), 1.0)   # (1,1)
        inv = pl.reciprocal(cnt, approx=True)
        gap_acc = gap_acc + jnp.sum(x, axis=0, keepdims=True) * inv
        gmp_acc = gmp_acc + jnp.max(jnp.where(keep > 0.5, x, -1e30),
                                    axis=0, keepdims=True)

    # ---- head: lin1(cat(x_local, x_global.repeat(N,1))) without the concat
    g_row = (mm(gmp_acc, w_g_gmp_ref[...]) + mm(gap_acc, w_g_gap_ref[...])
             + b_lin1_ref[...])                                   # (1, 2H)
    h = jnp.maximum(mm(x_local, w_g_local_ref[...]) + g_row, 0.0)  # broadcast add
    # TODO(synk): F.dropout(p=0.3) skipped (eval-mode identity).
    h = jnp.maximum(mm(h, w_lin2_ref[...]) + b_lin2_ref[...], 0.0)
    h = mm(h, w_lin3_ref[...]) + b_lin3_ref[...]
    m = jnp.max(h, axis=-1, keepdims=True)                        # log_softmax
    z = h - m
    o_ref[...] = z - jnp.log(jnp.sum(jnp.exp(z), axis=-1, keepdims=True))


# --------------------------------------------------------------------------
# Parameters (deterministic init)
# --------------------------------------------------------------------------

def _dense(key, fan_in, fan_out):
    k1, k2 = jax.random.split(key)
    lim = 1.0 / math.sqrt(fan_in)
    w = jax.random.uniform(k1, (fan_in, fan_out), jnp.float32, -lim, lim)
    b = jax.random.uniform(k2, (1, fan_out), jnp.float32, -lim, lim)
    return w, b


def _gconv(key, fan_in, fan_out):
    k1, k2 = jax.random.split(key)
    wr, _ = _dense(k1, fan_in, fan_out)
    wn, b = _dense(k2, fan_in, fan_out)
    return wr, wn, b


def init_params(key):
    keys = jax.random.split(key, 14)
    p = {}
    p["emb"] = _dense(keys[0], IN_FEATS, HIDDEN)
    p["conv1"] = _gconv(keys[1], HIDDEN, HIDDEN)
    p["conv2"] = _gconv(keys[2], HIDDEN, HIDDEN)
    p["conv3"] = _gconv(keys[3], HIDDEN, HIDDEN)
    p["conv4"] = _gconv(keys[4], HIDDEN, HIDDEN)
    p["pool1"] = _gconv(keys[5], HIDDEN, 1)   # SAGPooling internal score GraphConv
    p["pool2"] = _gconv(keys[6], HIDDEN, 1)
    p["pool3"] = _gconv(keys[7], HIDDEN, 1)
    p["pool4"] = _gconv(keys[8], HIDDEN, 1)
    p["l1"] = _dense(keys[9], HIDDEN, HIDDEN)
    p["lin1"] = _dense(keys[10], HIDDEN * 3, HIDDEN * 2)
    p["lin2"] = _dense(keys[11], HIDDEN * 2, HIDDEN)
    p["lin3"] = _dense(keys[12], HIDDEN, HIDDEN)
    return p


# --------------------------------------------------------------------------
# Forward pass: one pallas_call for the whole model
# --------------------------------------------------------------------------

def gnn_forward(x_in, adj, adj_w, params):
    n = x_in.shape[0]

    # static top-k sizes (ratio=0.5, single graph, all nodes valid initially)
    ks = []
    k = n
    for _ in range(N_STAGES):
        k = math.ceil(RATIO * k)
        ks.append(k)
    ks = tuple(ks)

    # stack per-stage weights so the kernel takes a small, fixed operand list
    wr = jnp.stack([params[f"conv{i}"][0] for i in range(1, 5)])   # (4, H, H)
    wn = jnp.stack([params[f"conv{i}"][1] for i in range(1, 5)])   # (4, H, H)
    bc = jnp.stack([params[f"conv{i}"][2] for i in range(1, 5)])   # (4, 1, H)
    wpr = jnp.stack([params[f"pool{i}"][0] for i in range(1, 5)])  # (4, H, 1)
    wpn = jnp.stack([params[f"pool{i}"][1] for i in range(1, 5)])  # (4, H, 1)
    bp = jnp.stack([params[f"pool{i}"][2] for i in range(1, 5)])   # (4, 1, 1)

    # split lin1 weight by input rows: [x_local | gmp | gap]
    w_lin1, b_lin1 = params["lin1"]
    w_g_local = w_lin1[:HIDDEN]
    w_g_gmp = w_lin1[HIDDEN:2 * HIDDEN]
    w_g_gap = w_lin1[2 * HIDDEN:]

    args = (x_in, adj, adj_w,
            params["emb"][0], params["emb"][1],
            wr, wn, bc, wpr, wpn, bp,
            params["l1"][0], params["l1"][1],
            w_g_local, w_g_gmp, w_g_gap, b_lin1,
            params["lin2"][0], params["lin2"][1],
            params["lin3"][0], params["lin3"][1])

    vmem = pltpu.MemorySpace.VMEM
    # No grid: single invocation, whole (tiny) working set resident in VMEM,
    # no pipelining machinery, no per-op launch / DMA overhead.
    return pl.pallas_call(
        functools.partial(_gnn_fused_kernel, n=n, ks=ks),
        out_shape=jax.ShapeDtypeStruct((n, HIDDEN), jnp.float32),
        in_specs=[pl.BlockSpec(memory_space=vmem)] * len(args),
        out_specs=pl.BlockSpec(memory_space=vmem),
    )(*args)


# --------------------------------------------------------------------------
# Example run
# --------------------------------------------------------------------------

if __name__ == "__main__":
    key = jax.random.PRNGKey(0)
    kp, kx, ka, kw = jax.random.split(key, 4)

    params = init_params(kp)

    # synthetic node features and a random undirected graph (single graph batch)
    x_in = jax.random.normal(kx, (N_NODES, IN_FEATS), jnp.float32)
    up = jax.random.uniform(ka, (N_NODES, N_NODES)) > 0.6
    adj = (up | up.T).astype(jnp.float32) * (1.0 - jnp.eye(N_NODES, dtype=jnp.float32))
    ew = jax.random.uniform(kw, (N_NODES, N_NODES), minval=0.1, maxval=1.0)
    ew = 0.5 * (ew + ew.T)
    adj_w = adj * ew                        # edge_attr modeled as scalar edge weights

    out = jax.jit(gnn_forward)(x_in, adj, adj_w, params)
    out = jax.block_until_ready(out)

    assert out.shape == (N_NODES, HIDDEN), out.shape
    assert bool(jnp.all(jnp.isfinite(out)))
    print("KERNEL_OK")
</pallas_src>

<mosaic_0001>
module attributes {stable_mosaic.version = 11 : i64} {
  func.func @_gnn_fused_kernel(%arg0: memref<16x8xf32, #tpu.memory_space<vmem>>, %arg1: memref<16x16xf32, #tpu.memory_space<vmem>>, %arg2: memref<16x16xf32, #tpu.memory_space<vmem>>, %arg3: memref<8x32xf32, #tpu.memory_space<vmem>>, %arg4: memref<1x32xf32, #tpu.memory_space<vmem>>, %arg5: memref<4x32x32xf32, #tpu.memory_space<vmem>>, %arg6: memref<4x32x32xf32, #tpu.memory_space<vmem>>, %arg7: memref<4x1x32xf32, #tpu.memory_space<vmem>>, %arg8: memref<4x32x1xf32, #tpu.memory_space<vmem>>, %arg9: memref<4x32x1xf32, #tpu.memory_space<vmem>>, %arg10: memref<4x1x1xf32, #tpu.memory_space<vmem>>, %arg11: memref<32x32xf32, #tpu.memory_space<vmem>>, %arg12: memref<1x32xf32, #tpu.memory_space<vmem>>, %arg13: memref<32x64xf32, #tpu.memory_space<vmem>>, %arg14: memref<32x64xf32, #tpu.memory_space<vmem>>, %arg15: memref<32x64xf32, #tpu.memory_space<vmem>>, %arg16: memref<1x64xf32, #tpu.memory_space<vmem>>, %arg17: memref<64x32xf32, #tpu.memory_space<vmem>>, %arg18: memref<1x32xf32, #tpu.memory_space<vmem>>, %arg19: memref<32x32xf32, #tpu.memory_space<vmem>>, %arg20: memref<1x32xf32, #tpu.memory_space<vmem>>, %arg21: memref<16x32xf32, #tpu.memory_space<vmem>>) attributes {dimension_semantics = [], scalar_prefetch = 0 : i64, scratch_operands = 0 : i64, tpu.core_type = #tpu.core_type<tc>} {
    %0 = tpu.iota {dimensions = array<i32: 0>} : vector<16x16xi32>
    %1 = tpu.iota {dimensions = array<i32: 1>} : vector<16x16xi32>
    %2 = arith.cmpi eq, %0, %1 : vector<16x16xi32>
    %cst = arith.constant 1.000000e+00 : f32
    %cst_0 = arith.constant 0.000000e+00 : f32
    %3 = vector.broadcast %cst : f32 to vector<16x16xf32>
    %4 = vector.broadcast %cst_0 : f32 to vector<16x16xf32>
    %5 = arith.select %2, %3, %4 : vector<16x16xi1>, vector<16x16xf32>
    %c0 = arith.constant 0 : index
    %c0_1 = arith.constant 0 : index
    %6 = vector.load %arg0[%c0, %c0_1] : memref<16x8xf32, #tpu.memory_space<vmem>>, vector<16x8xf32>
    %c0_2 = arith.constant 0 : index
    %c0_3 = arith.constant 0 : index
    %7 = vector.load %arg3[%c0_2, %c0_3] : memref<8x32xf32, #tpu.memory_space<vmem>>, vector<8x32xf32>
    %cst_4 = arith.constant dense<0.000000e+00> : vector<16x32xf32>
    %8 = tpu.matmul %6, %7, %cst_4 {dimension_numbers = #tpu.dot_dimension_numbers<[1], [0], [0], [1], [0, 0, 1, 1], [], []>} : vector<16x8xf32>, vector<8x32xf32>, vector<16x32xf32> -> vector<16x32xf32>
    %c0_5 = arith.constant 0 : index
    %c0_6 = arith.constant 0 : index
    %9 = vector.load %arg4[%c0_5, %c0_6] : memref<1x32xf32, #tpu.memory_space<vmem>>, vector<1x32xf32>
    %10 = vector.broadcast %9 : vector<1x32xf32> to vector<16x32xf32>
    %11 = arith.addf %8, %10 : vector<16x32xf32>
    %c0_7 = arith.constant 0 : index
    %c0_8 = arith.constant 0 : index
    %12 = vector.load %arg1[%c0_7, %c0_8] : memref<16x16xf32, #tpu.memory_space<vmem>>, vector<16x16xf32>
    %c0_9 = arith.constant 0 : index
    %c0_10 = arith.constant 0 : index
    %13 = vector.load %arg2[%c0_9, %c0_10] : memref<16x16xf32, #tpu.memory_space<vmem>>, vector<16x16xf32>
    %cst_11 = arith.constant 1.000000e+00 : f32
    %14 = vector.broadcast %cst_11 : f32 to vector<16x1xf32>
    %cst_12 = arith.constant 0.000000e+00 : f32
    %15 = vector.broadcast %cst_12 : f32 to vector<1x32xf32>
    %cst_13 = arith.constant 0.000000e+00 : f32
    %16 = vector.broadcast %cst_13 : f32 to vector<1x32xf32>
    %cst_14 = arith.constant dense<0.000000e+00> : vector<16x32xf32>
    %17 = tpu.matmul %12, %11, %cst_14 {dimension_numbers = #tpu.dot_dimension_numbers<[1], [0], [0], [1], [0, 0, 1, 1], [], []>} : vector<16x16xf32>, vector<16x32xf32>, vector<16x32xf32> -> vector<16x32xf32>
    %c0_15 = arith.constant 0 : index
    %c0_16 = arith.constant 0 : index
    %c0_17 = arith.constant 0 : index
    %18 = vector.load %arg5[%c0_15, %c0_16, %c0_17] : memref<4x32x32xf32, #tpu.memory_space<vmem>>, vector<1x32x32xf32>
    %19 = vector.shape_cast %18 : vector<1x32x32xf32> to vector<32x32xf32>
    %cst_18 = arith.constant dense<0.000000e+00> : vector<16x32xf32>
    %20 = tpu.matmul %11, %19, %cst_18 {dimension_numbers = #tpu.dot_dimension_numbers<[1], [0], [0], [1], [0, 0, 1, 1], [], []>} : vector<16x32xf32>, vector<32x32xf32>, vector<16x32xf32> -> vector<16x32xf32>
    %c0_19 = arith.constant 0 : index
    %c0_20 = arith.constant 0 : index
    %c0_21 = arith.constant 0 : index
    %21 = vector.load %arg6[%c0_19, %c0_20, %c0_21] : memref<4x32x32xf32, #tpu.memory_space<vmem>>, vector<1x32x32xf32>
    %22 = vector.shape_cast %21 : vector<1x32x32xf32> to vector<32x32xf32>
    %cst_22 = arith.constant dense<0.000000e+00> : vector<16x32xf32>
    %23 = tpu.matmul %17, %22, %cst_22 {dimension_numbers = #tpu.dot_dimension_numbers<[1], [0], [0], [1], [0, 0, 1, 1], [], []>} : vector<16x32xf32>, vector<32x32xf32>, vector<16x32xf32> -> vector<16x32xf32>
    %24 = arith.addf %20, %23 : vector<16x32xf32>
    %c0_23 = arith.constant 0 : index
    %c0_24 = arith.constant 0 : index
    %c0_25 = arith.constant 0 : index
    %25 = vector.load %arg7[%c0_23, %c0_24, %c0_25] : memref<4x1x32xf32, #tpu.memory_space<vmem>>, vector<1x1x32xf32>
    %26 = vector.shape_cast %25 : vector<1x1x32xf32> to vector<1x32xf32>
    %27 = vector.broadcast %26 : vector<1x32xf32> to vector<16x32xf32>
    %28 = arith.addf %24, %27 : vector<16x32xf32>
    %cst_26 = arith.constant 0.000000e+00 : f32
    %29 = vector.broadcast %cst_26 : f32 to vector<16x32xf32>
    %30 = arith.maximumf %28, %29 : vector<16x32xf32>
    %c0_27 = arith.constant 0 : index
    %c0_28 = arith.constant 0 : index
    %31 = vector.load %arg11[%c0_27, %c0_28] : memref<32x32xf32, #tpu.memory_space<vmem>>, vector<32x32xf32>
    %cst_29 = arith.constant dense<0.000000e+00> : vector<16x32xf32>
    %32 = tpu.matmul %30, %31, %cst_29 {dimension_numbers = #tpu.dot_dimension_numbers<[1], [0], [0], [1], [0, 0, 1, 1], [], []>} : vector<16x32xf32>, vector<32x32xf32>, vector<16x32xf32> -> vector<16x32xf32>
    %c0_30 = arith.constant 0 : index
    %c0_31 = arith.constant 0 : index
    %33 = vector.load %arg12[%c0_30, %c0_31] : memref<1x32xf32, #tpu.memory_space<vmem>>, vector<1x32xf32>
    %34 = vector.broadcast %33 : vector<1x32xf32> to vector<16x32xf32>
    %35 = arith.addf %32, %34 : vector<16x32xf32>
    %cst_32 = arith.constant dense<0.000000e+00> : vector<16x32xf32>
    %36 = tpu.matmul %12, %30, %cst_32 {dimension_numbers = #tpu.dot_dimension_numbers<[1], [0], [0], [1], [0, 0, 1, 1], [], []>} : vector<16x16xf32>, vector<16x32xf32>, vector<16x32xf32> -> vector<16x32xf32>
    %c0_33 = arith.constant 0 : index
    %c0_34 = arith.constant 0 : index
    %c0_35 = arith.constant 0 : index
    %37 = vector.load %arg8[%c0_33, %c0_34, %c0_35] : memref<4x32x1xf32, #tpu.memory_space<vmem>>, vector<1x32x1xf32>
    %38 = vector.shape_cast %37 : vector<1x32x1xf32> to vector<32x1xf32>
    %cst_36 = arith.constant dense<0.000000e+00> : vector<16x1xf32>
    %39 = tpu.matmul %30, %38, %cst_36 {dimension_numbers = #tpu.dot_dimension_numbers<[1], [0], [0], [1], [0, 0, 1, 1], [], []>} : vector<16x32xf32>, vector<32x1xf32>, vector<16x1xf32> -> vector<16x1xf32>
    %c0_37 = arith.constant 0 : index
    %c0_38 = arith.constant 0 : index
    %c0_39 = arith.constant 0 : index
    %40 = vector.load %arg9[%c0_37, %c0_38, %c0_39] : memref<4x32x1xf32, #tpu.memory_space<vmem>>, vector<1x32x1xf32>
    %41 = vector.shape_cast %40 : vector<1x32x1xf32> to vector<32x1xf32>
    %cst_40 = arith.constant dense<0.000000e+00> : vector<16x1xf32>
    %42 = tpu.matmul %36, %41, %cst_40 {dimension_numbers = #tpu.dot_dimension_numbers<[1], [0], [0], [1], [0, 0, 1, 1], [], []>} : vector<16x32xf32>, vector<32x1xf32>, vector<16x1xf32> -> vector<16x1xf32>
    %43 = arith.addf %39, %42 : vector<16x1xf32>
    %c0_41 = arith.constant 0 : index
    %c0_42 = arith.constant 0 : index
    %c0_43 = arith.constant 0 : index
    %44 = vector.load %arg10[%c0_41, %c0_42, %c0_43] : memref<4x1x1xf32, #tpu.memory_space<vmem>>, vector<1x1x1xf32>
    %45 = vector.shape_cast %44 : vector<1x1x1xf32> to vector<1x1xf32>
    %46 = vector.broadcast %45 : vector<1x1xf32> to vector<16x1xf32>
    %47 = arith.addf %43, %46 : vector<16x1xf32>
    %48 = vector.shape_cast %47 : vector<16x1xf32> to vector<16x1xf32>
    %49 = vector.broadcast %48 : vector<16x1xf32> to vector<16x16xf32>
    %50 = arith.mulf %49, %5 : vector<16x16xf32>
    %cst_44 = arith.constant dense<0.000000e+00> : vector<16xf32>
    %51 = vector.multi_reduction <add>, %50, %cst_44 [0] : vector<16x16xf32> to vector<16xf32>
    %52 = vector.shape_cast %51 : vector<16xf32> to vector<1x16xf32>
    %53 = vector.shape_cast %14 : vector<16x1xf32> to vector<16x1xf32>
    %54 = vector.broadcast %53 : vector<16x1xf32> to vector<16x16xf32>
    %55 = arith.mulf %54, %5 : vector<16x16xf32>
    %cst_45 = arith.constant dense<0.000000e+00> : vector<16xf32>
    %56 = vector.multi_reduction <add>, %55, %cst_45 [0] : vector<16x16xf32> to vector<16xf32>
    %57 = vector.shape_cast %56 : vector<16xf32> to vector<1x16xf32>
    %58 = vector.broadcast %52 : vector<1x16xf32> to vector<16x16xf32>
    %59 = vector.broadcast %47 : vector<16x1xf32> to vector<16x16xf32>
    %60 = arith.cmpf ogt, %58, %59 : vector<16x16xf32>
    %61 = vector.broadcast %52 : vector<1x16xf32> to vector<16x16xf32>
    %62 = vector.broadcast %47 : vector<16x1xf32> to vector<16x16xf32>
    %63 = arith.cmpf oeq, %61, %62 : vector<16x16xf32>
    %64 = arith.cmpi slt, %1, %0 : vector<16x16xi32>
    %65 = arith.andi %63, %64 : vector<16x16xi1>
    %66 = arith.ori %60, %65 : vector<16x16xi1>
    %cst_46 = arith.constant 1.000000e+00 : f32
    %cst_47 = arith.constant 0.000000e+00 : f32
    %67 = vector.broadcast %cst_46 : f32 to vector<16x16xf32>
    %68 = vector.broadcast %cst_47 : f32 to vector<16x16xf32>
    %69 = arith.select %66, %67, %68 : vector<16x16xi1>, vector<16x16xf32>
    %70 = vector.broadcast %57 : vector<1x16xf32> to vector<16x16xf32>
    %71 = arith.mulf %69, %70 : vector<16x16xf32>
    %cst_48 = arith.constant dense<0.000000e+00> : vector<16xf32>
    %72 = vector.multi_reduction <add>, %71, %cst_48 [1] : vector<16x16xf32> to vector<16xf32>
    %73 = vector.shape_cast %72 : vector<16xf32> to vector<16x1xf32>
    %cst_49 = arith.constant 8.000000e+00 : f32
    %74 = vector.broadcast %cst_49 : f32 to vector<16x1xf32>
    %75 = arith.cmpf olt, %73, %74 : vector<16x1xf32>
    %cst_50 = arith.constant 5.000000e-01 : f32
    %76 = vector.broadcast %cst_50 : f32 to vector<16x1xf32>
    %77 = arith.cmpf ogt, %14, %76 : vector<16x1xf32>
    %78 = arith.andi %75, %77 : vector<16x1xi1>
    %cst_51 = arith.constant 1.000000e+00 : f32
    %cst_52 = arith.constant 0.000000e+00 : f32
    %79 = vector.broadcast %cst_51 : f32 to vector<16x1xf32>
    %80 = vector.broadcast %cst_52 : f32 to vector<16x1xf32>
    %81 = arith.select %78, %79, %80 : vector<16x1xi1>, vector<16x1xf32>
    %82 = math.tanh %47 : vector<16x1xf32>
    %83 = vector.broadcast %82 : vector<16x1xf32> to vector<16x32xf32>
    %84 = arith.mulf %30, %83 : vector<16x32xf32>
    %85 = vector.broadcast %81 : vector<16x1xf32> to vector<16x32xf32>
    %86 = arith.mulf %84, %85 : vector<16x32xf32>
    %87 = vector.shape_cast %81 : vector<16x1xf32> to vector<16x1xf32>
    %88 = vector.broadcast %87 : vector<16x1xf32> to vector<16x16xf32>
    %89 = arith.mulf %88, %5 : vector<16x16xf32>
    %cst_53 = arith.constant dense<0.000000e+00> : vector<16xf32>
    %90 = vector.multi_reduction <add>, %89, %cst_53 [0] : vector<16x16xf32> to vector<16xf32>
    %91 = vector.shape_cast %90 : vector<16xf32> to vector<1x16xf32>
    %92 = vector.broadcast %81 : vector<16x1xf32> to vector<16x16xf32>
    %93 = vector.broadcast %91 : vector<1x16xf32> to vector<16x16xf32>
    %94 = arith.mulf %92, %93 : vector<16x16xf32>
    %95 = arith.mulf %12, %94 : vector<16x16xf32>
    %96 = arith.mulf %13, %94 : vector<16x16xf32>
    %cst_54 = arith.constant dense<0.000000e+00> : vector<1xf32>
    %97 = vector.multi_reduction <add>, %81, %cst_54 [0] : vector<16x1xf32> to vector<1xf32>
    %98 = vector.shape_cast %97 : vector<1xf32> to vector<1x1xf32>
    %cst_55 = arith.constant 1.000000e+00 : f32
    %99 = vector.broadcast %cst_55 : f32 to vector<1x1xf32>
    %100 = arith.maximumf %98, %99 : vector<1x1xf32>
    %101 = tpu.reciprocal %100 {approx = true} : vector<1x1xf32> -> vector<1x1xf32>
    %cst_56 = arith.constant dense<0.000000e+00> : vector<32xf32>
    %102 = vector.multi_reduction <add>, %86, %cst_56 [0] : vector<16x32xf32> to vector<32xf32>
    %103 = vector.shape_cast %102 : vector<32xf32> to vector<1x32xf32>
    %104 = vector.broadcast %101 : vector<1x1xf32> to vector<1x32xf32>
    %105 = arith.mulf %103, %104 : vector<1x32xf32>
    %106 = arith.addf %16, %105 : vector<1x32xf32>
    %cst_57 = arith.constant 5.000000e-01 : f32
    %107 = vector.broadcast %cst_57 : f32 to vector<16x1xf32>
    %108 = arith.cmpf ogt, %81, %107 : vector<16x1xf32>
    %cst_58 = arith.constant -1.000000e+30 : f32
    %109 = vector.shape_cast %108 : vector<16x1xi1> to vector<16x1xi1>
    %110 = vector.broadcast %109 : vector<16x1xi1> to vector<16x32xi1>
    %111 = vector.broadcast %cst_58 : f32 to vector<16x32xf32>
    %112 = arith.select %110, %86, %111 : vector<16x32xi1>, vector<16x32xf32>
    %cst_59 = arith.constant dense<0xFF800000> : vector<32xf32>
    %113 = vector.multi_reduction <maximumf>, %112, %cst_59 [0] : vector<16x32xf32> to vector<32xf32>
    %114 = vector.shape_cast %113 : vector<32xf32> to vector<1x32xf32>
    %115 = arith.addf %15, %114 : vector<1x32xf32>
    %cst_60 = arith.constant dense<0.000000e+00> : vector<16x32xf32>
    %116 = tpu.matmul %96, %86, %cst_60 {dimension_numbers = #tpu.dot_dimension_numbers<[1], [0], [0], [1], [0, 0, 1, 1], [], []>} : vector<16x16xf32>, vector<16x32xf32>, vector<16x32xf32> -> vector<16x32xf32>
    %c1 = arith.constant 1 : index
    %c0_61 = arith.constant 0 : index
    %c0_62 = arith.constant 0 : index
    %117 = vector.load %arg5[%c1, %c0_61, %c0_62] : memref<4x32x32xf32, #tpu.memory_space<vmem>>, vector<1x32x32xf32>
    %118 = vector.shape_cast %117 : vector<1x32x32xf32> to vector<32x32xf32>
    %cst_63 = arith.constant dense<0.000000e+00> : vector<16x32xf32>
    %119 = tpu.matmul %86, %118, %cst_63 {dimension_numbers = #tpu.dot_dimension_numbers<[1], [0], [0], [1], [0, 0, 1, 1], [], []>} : vector<16x32xf32>, vector<32x32xf32>, vector<16x32xf32> -> vector<16x32xf32>
    %c1_64 = arith.constant 1 : index
    %c0_65 = arith.constant 0 : index
    %c0_66 = arith.constant 0 : index
    %120 = vector.load %arg6[%c1_64, %c0_65, %c0_66] : memref<4x32x32xf32, #tpu.memory_space<vmem>>, vector<1x32x32xf32>
    %121 = vector.shape_cast %120 : vector<1x32x32xf32> to vector<32x32xf32>
    %cst_67 = arith.constant dense<0.000000e+00> : vector<16x32xf32>
    %122 = tpu.matmul %116, %121, %cst_67 {dimension_numbers = #tpu.dot_dimension_numbers<[1], [0], [0], [1], [0, 0, 1, 1], [], []>} : vector<16x32xf32>, vector<32x32xf32>, vector<16x32xf32> -> vector<16x32xf32>
    %123 = arith.addf %119, %122 : vector<16x32xf32>
    %c1_68 = arith.constant 1 : index
    %c0_69 = arith.constant 0 : index
    %c0_70 = arith.constant 0 : index
    %124 = vector.load %arg7[%c1_68, %c0_69, %c0_70] : memref<4x1x32xf32, #tpu.memory_space<vmem>>, vector<1x1x32xf32>
    %125 = vector.shape_cast %124 : vector<1x1x32xf32> to vector<1x32xf32>
    %126 = vector.broadcast %125 : vector<1x32xf32> to vector<16x32xf32>
    %127 = arith.addf %123, %126 : vector<16x32xf32>
    %cst_71 = arith.constant 0.000000e+00 : f32
    %128 = vector.broadcast %cst_71 : f32 to vector<16x32xf32>
    %129 = arith.maximumf %127, %128 : vector<16x32xf32>
    %cst_72 = arith.constant dense<0.000000e+00> : vector<16x32xf32>
    %130 = tpu.matmul %95, %129, %cst_72 {dimension_numbers = #tpu.dot_dimension_numbers<[1], [0], [0], [1], [0, 0, 1, 1], [], []>} : vector<16x16xf32>, vector<16x32xf32>, vector<16x32xf32> -> vector<16x32xf32>
    %c1_73 = arith.constant 1 : index
    %c0_74 = arith.constant 0 : index
    %c0_75 = arith.constant 0 : index
    %131 = vector.load %arg8[%c1_73, %c0_74, %c0_75] : memref<4x32x1xf32, #tpu.memory_space<vmem>>, vector<1x32x1xf32>
    %132 = vector.shape_cast %131 : vector<1x32x1xf32> to vector<32x1xf32>
    %cst_76 = arith.constant dense<0.000000e+00> : vector<16x1xf32>
    %133 = tpu.matmul %129, %132, %cst_76 {dimension_numbers = #tpu.dot_dimension_numbers<[1], [0], [0], [1], [0, 0, 1, 1], [], []>} : vector<16x32xf32>, vector<32x1xf32>, vector<16x1xf32> -> vector<16x1xf32>
    %c1_77 = arith.constant 1 : index
    %c0_78 = arith.constant 0 : index
    %c0_79 = arith.constant 0 : index
    %134 = vector.load %arg9[%c1_77, %c0_78, %c0_79] : memref<4x32x1xf32, #tpu.memory_space<vmem>>, vector<1x32x1xf32>
    %135 = vector.shape_cast %134 : vector<1x32x1xf32> to vector<32x1xf32>
    %cst_80 = arith.constant dense<0.000000e+00> : vector<16x1xf32>
    %136 = tpu.matmul %130, %135, %cst_80 {dimension_numbers = #tpu.dot_dimension_numbers<[1], [0], [0], [1], [0, 0, 1, 1], [], []>} : vector<16x32xf32>, vector<32x1xf32>, vector<16x1xf32> -> vector<16x1xf32>
    %137 = arith.addf %133, %136 : vector<16x1xf32>
    %c1_81 = arith.constant 1 : index
    %c0_82 = arith.constant 0 : index
    %c0_83 = arith.constant 0 : index
    %138 = vector.load %arg10[%c1_81, %c0_82, %c0_83] : memref<4x1x1xf32, #tpu.memory_space<vmem>>, vector<1x1x1xf32>
    %139 = vector.shape_cast %138 : vector<1x1x1xf32> to vector<1x1xf32>
    %140 = vector.broadcast %139 : vector<1x1xf32> to vector<16x1xf32>
    %141 = arith.addf %137, %140 : vector<16x1xf32>
    %142 = vector.shape_cast %141 : vector<16x1xf32> to vector<16x1xf32>
    %143 = vector.broadcast %142 : vector<16x1xf32> to vector<16x16xf32>
    %144 = arith.mulf %143, %5 : vector<16x16xf32>
    %cst_84 = arith.constant dense<0.000000e+00> : vector<16xf32>
    %145 = vector.multi_reduction <add>, %144, %cst_84 [0] : vector<16x16xf32> to vector<16xf32>
    %146 = vector.shape_cast %145 : vector<16xf32> to vector<1x16xf32>
    %147 = vector.shape_cast %81 : vector<16x1xf32> to vector<16x1xf32>
    %148 = vector.broadcast %147 : vector<16x1xf32> to vector<16x16xf32>
    %149 = arith.mulf %148, %5 : vector<16x16xf32>
    %cst_85 = arith.constant dense<0.000000e+00> : vector<16xf32>
    %150 = vector.multi_reduction <add>, %149, %cst_85 [0] : vector<16x16xf32> to vector<16xf32>
    %151 = vector.shape_cast %150 : vector<16xf32> to vector<1x16xf32>
    %152 = vector.broadcast %146 : vector<1x16xf32> to vector<16x16xf32>
    %153 = vector.broadcast %141 : vector<16x1xf32> to vector<16x16xf32>
    %154 = arith.cmpf ogt, %152, %153 : vector<16x16xf32>
    %155 = vector.broadcast %146 : vector<1x16xf32> to vector<16x16xf32>
    %156 = vector.broadcast %141 : vector<16x1xf32> to vector<16x16xf32>
    %157 = arith.cmpf oeq, %155, %156 : vector<16x16xf32>
    %158 = arith.cmpi slt, %1, %0 : vector<16x16xi32>
    %159 = arith.andi %157, %158 : vector<16x16xi1>
    %160 = arith.ori %154, %159 : vector<16x16xi1>
    %cst_86 = arith.constant 1.000000e+00 : f32
    %cst_87 = arith.constant 0.000000e+00 : f32
    %161 = vector.broadcast %cst_86 : f32 to vector<16x16xf32>
    %162 = vector.broadcast %cst_87 : f32 to vector<16x16xf32>
    %163 = arith.select %160, %161, %162 : vector<16x16xi1>, vector<16x16xf32>
    %164 = vector.broadcast %151 : vector<1x16xf32> to vector<16x16xf32>
    %165 = arith.mulf %163, %164 : vector<16x16xf32>
    %cst_88 = arith.constant dense<0.000000e+00> : vector<16xf32>
    %166 = vector.multi_reduction <add>, %165, %cst_88 [1] : vector<16x16xf32> to vector<16xf32>
    %167 = vector.shape_cast %166 : vector<16xf32> to vector<16x1xf32>
    %cst_89 = arith.constant 4.000000e+00 : f32
    %168 = vector.broadcast %cst_89 : f32 to vector<16x1xf32>
    %169 = arith.cmpf olt, %167, %168 : vector<16x1xf32>
    %cst_90 = arith.constant 5.000000e-01 : f32
    %170 = vector.broadcast %cst_90 : f32 to vector<16x1xf32>
    %171 = arith.cmpf ogt, %81, %170 : vector<16x1xf32>
    %172 = arith.andi %169, %171 : vector<16x1xi1>
    %cst_91 = arith.constant 1.000000e+00 : f32
    %cst_92 = arith.constant 0.000000e+00 : f32
    %173 = vector.broadcast %cst_91 : f32 to vector<16x1xf32>
    %174 = vector.broadcast %cst_92 : f32 to vector<16x1xf32>
    %175 = arith.select %172, %173, %174 : vector<16x1xi1>, vector<16x1xf32>
    %176 = math.tanh %141 : vector<16x1xf32>
    %177 = vector.broadcast %176 : vector<16x1xf32> to vector<16x32xf32>
    %178 = arith.mulf %129, %177 : vector<16x32xf32>
    %179 = vector.broadcast %175 : vector<16x1xf32> to vector<16x32xf32>
    %180 = arith.mulf %178, %179 : vector<16x32xf32>
    %181 = vector.shape_cast %175 : vector<16x1xf32> to vector<16x1xf32>
    %182 = vector.broadcast %181 : vector<16x1xf32> to vector<16x16xf32>
    %183 = arith.mulf %182, %5 : vector<16x16xf32>
    %cst_93 = arith.constant dense<0.000000e+00> : vector<16xf32>
    %184 = vector.multi_reduction <add>, %183, %cst_93 [0] : vector<16x16xf32> to vector<16xf32>
    %185 = vector.shape_cast %184 : vector<16xf32> to vector<1x16xf32>
    %186 = vector.broadcast %175 : vector<16x1xf32> to vector<16x16xf32>
    %187 = vector.broadcast %185 : vector<1x16xf32> to vector<16x16xf32>
    %188 = arith.mulf %186, %187 : vector<16x16xf32>
    %189 = arith.mulf %95, %188 : vector<16x16xf32>
    %190 = arith.mulf %96, %188 : vector<16x16xf32>
    %cst_94 = arith.constant dense<0.000000e+00> : vector<1xf32>
    %191 = vector.multi_reduction <add>, %175, %cst_94 [0] : vector<16x1xf32> to vector<1xf32>
    %192 = vector.shape_cast %191 : vector<1xf32> to vector<1x1xf32>
    %cst_95 = arith.constant 1.000000e+00 : f32
    %193 = vector.broadcast %cst_95 : f32 to vector<1x1xf32>
    %194 = arith.maximumf %192, %193 : vector<1x1xf32>
    %195 = tpu.reciprocal %194 {approx = true} : vector<1x1xf32> -> vector<1x1xf32>
    %cst_96 = arith.constant dense<0.000000e+00> : vector<32xf32>
    %196 = vector.multi_reduction <add>, %180, %cst_96 [0] : vector<16x32xf32> to vector<32xf32>
    %197 = vector.shape_cast %196 : vector<32xf32> to vector<1x32xf32>
    %198 = vector.broadcast %195 : vector<1x1xf32> to vector<1x32xf32>
    %199 = arith.mulf %197, %198 : vector<1x32xf32>
    %200 = arith.addf %106, %199 : vector<1x32xf32>
    %cst_97 = arith.constant 5.000000e-01 : f32
    %201 = vector.broadcast %cst_97 : f32 to vector<16x1xf32>
    %202 = arith.cmpf ogt, %175, %201 : vector<16x1xf32>
    %cst_98 = arith.constant -1.000000e+30 : f32
    %203 = vector.shape_cast %202 : vector<16x1xi1> to vector<16x1xi1>
    %204 = vector.broadcast %203 : vector<16x1xi1> to vector<16x32xi1>
    %205 = vector.broadcast %cst_98 : f32 to vector<16x32xf32>
    %206 = arith.select %204, %180, %205 : vector<16x32xi1>, vector<16x32xf32>
    %cst_99 = arith.constant dense<0xFF800000> : vector<32xf32>
    %207 = vector.multi_reduction <maximumf>, %206, %cst_99 [0] : vector<16x32xf32> to vector<32xf32>
    %208 = vector.shape_cast %207 : vector<32xf32> to vector<1x32xf32>
    %209 = arith.addf %115, %208 : vector<1x32xf32>
    %cst_100 = arith.constant dense<0.000000e+00> : vector<16x32xf32>
    %210 = tpu.matmul %189, %180, %cst_100 {dimension_numbers = #tpu.dot_dimension_numbers<[1], [0], [0], [1], [0, 0, 1, 1], [], []>} : vector<16x16xf32>, vector<16x32xf32>, vector<16x32xf32> -> vector<16x32xf32>
    %c2 = arith.constant 2 : index
    %c0_101 = arith.constant 0 : index
    %c0_102 = arith.constant 0 : index
    %211 = vector.load %arg5[%c2, %c0_101, %c0_102] : memref<4x32x32xf32, #tpu.memory_space<vmem>>, vector<1x32x32xf32>
    %212 = vector.shape_cast %211 : vector<1x32x32xf32> to vector<32x32xf32>
    %cst_103 = arith.constant dense<0.000000e+00> : vector<16x32xf32>
    %213 = tpu.matmul %180, %212, %cst_103 {dimension_numbers = #tpu.dot_dimension_numbers<[1], [0], [0], [1], [0, 0, 1, 1], [], []>} : vector<16x32xf32>, vector<32x32xf32>, vector<16x32xf32> -> vector<16x32xf32>
    %c2_104 = arith.constant 2 : index
    %c0_105 = arith.constant 0 : index
    %c0_106 = arith.constant 0 : index
    %214 = vector.load %arg6[%c2_104, %c0_105, %c0_106] : memref<4x32x32xf32, #tpu.memory_space<vmem>>, vector<1x32x32xf32>
    %215 = vector.shape_cast %214 : vector<1x32x32xf32> to vector<32x32xf32>
    %cst_107 = arith.constant dense<0.000000e+00> : vector<16x32xf32>
    %216 = tpu.matmul %210, %215, %cst_107 {dimension_numbers = #tpu.dot_dimension_numbers<[1], [0], [0], [1], [0, 0, 1, 1], [], []>} : vector<16x32xf32>, vector<32x32xf32>, vector<16x32xf32> -> vector<16x32xf32>
    %217 = arith.addf %213, %216 : vector<16x32xf32>
    %c2_108 = arith.constant 2 : index
    %c0_109 = arith.constant 0 : index
    %c0_110 = arith.constant 0 : index
    %218 = vector.load %arg7[%c2_108, %c0_109, %c0_110] : memref<4x1x32xf32, #tpu.memory_space<vmem>>, vector<1x1x32xf32>
    %219 = vector.shape_cast %218 : vector<1x1x32xf32> to vector<1x32xf32>
    %220 = vector.broadcast %219 : vector<1x32xf32> to vector<16x32xf32>
    %221 = arith.addf %217, %220 : vector<16x32xf32>
    %cst_111 = arith.constant 0.000000e+00 : f32
    %222 = vector.broadcast %cst_111 : f32 to vector<16x32xf32>
    %223 = arith.maximumf %221, %222 : vector<16x32xf32>
    %cst_112 = arith.constant dense<0.000000e+00> : vector<16x32xf32>
    %224 = tpu.matmul %189, %223, %cst_112 {dimension_numbers = #tpu.dot_dimension_numbers<[1], [0], [0], [1], [0, 0, 1, 1], [], []>} : vector<16x16xf32>, vector<16x32xf32>, vector<16x32xf32> -> vector<16x32xf32>
    %c2_113 = arith.constant 2 : index
    %c0_114 = arith.constant 0 : index
    %c0_115 = arith.constant 0 : index
    %225 = vector.load %arg8[%c2_113, %c0_114, %c0_115] : memref<4x32x1xf32, #tpu.memory_space<vmem>>, vector<1x32x1xf32>
    %226 = vector.shape_cast %225 : vector<1x32x1xf32> to vector<32x1xf32>
    %cst_116 = arith.constant dense<0.000000e+00> : vector<16x1xf32>
    %227 = tpu.matmul %223, %226, %cst_116 {dimension_numbers = #tpu.dot_dimension_numbers<[1], [0], [0], [1], [0, 0, 1, 1], [], []>} : vector<16x32xf32>, vector<32x1xf32>, vector<16x1xf32> -> vector<16x1xf32>
    %c2_117 = arith.constant 2 : index
    %c0_118 = arith.constant 0 : index
    %c0_119 = arith.constant 0 : index
    %228 = vector.load %arg9[%c2_117, %c0_118, %c0_119] : memref<4x32x1xf32, #tpu.memory_space<vmem>>, vector<1x32x1xf32>
    %229 = vector.shape_cast %228 : vector<1x32x1xf32> to vector<32x1xf32>
    %cst_120 = arith.constant dense<0.000000e+00> : vector<16x1xf32>
    %230 = tpu.matmul %224, %229, %cst_120 {dimension_numbers = #tpu.dot_dimension_numbers<[1], [0], [0], [1], [0, 0, 1, 1], [], []>} : vector<16x32xf32>, vector<32x1xf32>, vector<16x1xf32> -> vector<16x1xf32>
    %231 = arith.addf %227, %230 : vector<16x1xf32>
    %c2_121 = arith.constant 2 : index
    %c0_122 = arith.constant 0 : index
    %c0_123 = arith.constant 0 : index
    %232 = vector.load %arg10[%c2_121, %c0_122, %c0_123] : memref<4x1x1xf32, #tpu.memory_space<vmem>>, vector<1x1x1xf32>
    %233 = vector.shape_cast %232 : vector<1x1x1xf32> to vector<1x1xf32>
    %234 = vector.broadcast %233 : vector<1x1xf32> to vector<16x1xf32>
    %235 = arith.addf %231, %234 : vector<16x1xf32>
    %236 = vector.shape_cast %235 : vector<16x1xf32> to vector<16x1xf32>
    %237 = vector.broadcast %236 : vector<16x1xf32> to vector<16x16xf32>
    %238 = arith.mulf %237, %5 : vector<16x16xf32>
    %cst_124 = arith.constant dense<0.000000e+00> : vector<16xf32>
    %239 = vector.multi_reduction <add>, %238, %cst_124 [0] : vector<16x16xf32> to vector<16xf32>
    %240 = vector.shape_cast %239 : vector<16xf32> to vector<1x16xf32>
    %241 = vector.shape_cast %175 : vector<16x1xf32> to vector<16x1xf32>
    %242 = vector.broadcast %241 : vector<16x1xf32> to vector<16x16xf32>
    %243 = arith.mulf %242, %5 : vector<16x16xf32>
    %cst_125 = arith.constant dense<0.000000e+00> : vector<16xf32>
    %244 = vector.multi_reduction <add>, %243, %cst_125 [0] : vector<16x16xf32> to vector<16xf32>
    %245 = vector.shape_cast %244 : vector<16xf32> to vector<1x16xf32>
    %246 = vector.broadcast %240 : vector<1x16xf32> to vector<16x16xf32>
    %247 = vector.broadcast %235 : vector<16x1xf32> to vector<16x16xf32>
    %248 = arith.cmpf ogt, %246, %247 : vector<16x16xf32>
    %249 = vector.broadcast %240 : vector<1x16xf32> to vector<16x16xf32>
    %250 = vector.broadcast %235 : vector<16x1xf32> to vector<16x16xf32>
    %251 = arith.cmpf oeq, %249, %250 : vector<16x16xf32>
    %252 = arith.cmpi slt, %1, %0 : vector<16x16xi32>
    %253 = arith.andi %251, %252 : vector<16x16xi1>
    %254 = arith.ori %248, %253 : vector<16x16xi1>
    %cst_126 = arith.constant 1.000000e+00 : f32
    %cst_127 = arith.constant 0.000000e+00 : f32
    %255 = vector.broadcast %cst_126 : f32 to vector<16x16xf32>
    %256 = vector.broadcast %cst_127 : f32 to vector<16x16xf32>
    %257 = arith.select %254, %255, %256 : vector<16x16xi1>, vector<16x16xf32>
    %258 = vector.broadcast %245 : vector<1x16xf32> to vector<16x16xf32>
    %259 = arith.mulf %257, %258 : vector<16x16xf32>
    %cst_128 = arith.constant dense<0.000000e+00> : vector<16xf32>
    %260 = vector.multi_reduction <add>, %259, %cst_128 [1] : vector<16x16xf32> to vector<16xf32>
    %261 = vector.shape_cast %260 : vector<16xf32> to vector<16x1xf32>
    %cst_129 = arith.constant 2.000000e+00 : f32
    %262 = vector.broadcast %cst_129 : f32 to vector<16x1xf32>
    %263 = arith.cmpf olt, %261, %262 : vector<16x1xf32>
    %cst_130 = arith.constant 5.000000e-01 : f32
    %264 = vector.broadcast %cst_130 : f32 to vector<16x1xf32>
    %265 = arith.cmpf ogt, %175, %264 : vector<16x1xf32>
    %266 = arith.andi %263, %265 : vector<16x1xi1>
    %cst_131 = arith.constant 1.000000e+00 : f32
    %cst_132 = arith.constant 0.000000e+00 : f32
    %267 = vector.broadcast %cst_131 : f32 to vector<16x1xf32>
    %268 = vector.broadcast %cst_132 : f32 to vector<16x1xf32>
    %269 = arith.select %266, %267, %268 : vector<16x1xi1>, vector<16x1xf32>
    %270 = math.tanh %235 : vector<16x1xf32>
    %271 = vector.broadcast %270 : vector<16x1xf32> to vector<16x32xf32>
    %272 = arith.mulf %223, %271 : vector<16x32xf32>
    %273 = vector.broadcast %269 : vector<16x1xf32> to vector<16x32xf32>
    %274 = arith.mulf %272, %273 : vector<16x32xf32>
    %275 = vector.shape_cast %269 : vector<16x1xf32> to vector<16x1xf32>
    %276 = vector.broadcast %275 : vector<16x1xf32> to vector<16x16xf32>
    %277 = arith.mulf %276, %5 : vector<16x16xf32>
    %cst_133 = arith.constant dense<0.000000e+00> : vector<16xf32>
    %278 = vector.multi_reduction <add>, %277, %cst_133 [0] : vector<16x16xf32> to vector<16xf32>
    %279 = vector.shape_cast %278 : vector<16xf32> to vector<1x16xf32>
    %280 = vector.broadcast %269 : vector<16x1xf32> to vector<16x16xf32>
    %281 = vector.broadcast %279 : vector<1x16xf32> to vector<16x16xf32>
    %282 = arith.mulf %280, %281 : vector<16x16xf32>
    %283 = arith.mulf %189, %282 : vector<16x16xf32>
    %284 = arith.mulf %190, %282 : vector<16x16xf32>
    %cst_134 = arith.constant dense<0.000000e+00> : vector<1xf32>
    %285 = vector.multi_reduction <add>, %269, %cst_134 [0] : vector<16x1xf32> to vector<1xf32>
    %286 = vector.shape_cast %285 : vector<1xf32> to vector<1x1xf32>
    %cst_135 = arith.constant 1.000000e+00 : f32
    %287 = vector.broadcast %cst_135 : f32 to vector<1x1xf32>
    %288 = arith.maximumf %286, %287 : vector<1x1xf32>
    %289 = tpu.reciprocal %288 {approx = true} : vector<1x1xf32> -> vector<1x1xf32>
    %cst_136 = arith.constant dense<0.000000e+00> : vector<32xf32>
    %290 = vector.multi_reduction <add>, %274, %cst_136 [0] : vector<16x32xf32> to vector<32xf32>
    %291 = vector.shape_cast %290 : vector<32xf32> to vector<1x32xf32>
    %292 = vector.broadcast %289 : vector<1x1xf32> to vector<1x32xf32>
    %293 = arith.mulf %291, %292 : vector<1x32xf32>
    %294 = arith.addf %200, %293 : vector<1x32xf32>
    %cst_137 = arith.constant 5.000000e-01 : f32
    %295 = vector.broadcast %cst_137 : f32 to vector<16x1xf32>
    %296 = arith.cmpf ogt, %269, %295 : vector<16x1xf32>
    %cst_138 = arith.constant -1.000000e+30 : f32
    %297 = vector.shape_cast %296 : vector<16x1xi1> to vector<16x1xi1>
    %298 = vector.broadcast %297 : vector<16x1xi1> to vector<16x32xi1>
    %299 = vector.broadcast %cst_138 : f32 to vector<16x32xf32>
    %300 = arith.select %298, %274, %299 : vector<16x32xi1>, vector<16x32xf32>
    %cst_139 = arith.constant dense<0xFF800000> : vector<32xf32>
    %301 = vector.multi_reduction <maximumf>, %300, %cst_139 [0] : vector<16x32xf32> to vector<32xf32>
    %302 = vector.shape_cast %301 : vector<32xf32> to vector<1x32xf32>
    %303 = arith.addf %209, %302 : vector<1x32xf32>
    %cst_140 = arith.constant dense<0.000000e+00> : vector<16x32xf32>
    %304 = tpu.matmul %284, %274, %cst_140 {dimension_numbers = #tpu.dot_dimension_numbers<[1], [0], [0], [1], [0, 0, 1, 1], [], []>} : vector<16x16xf32>, vector<16x32xf32>, vector<16x32xf32> -> vector<16x32xf32>
    %c3 = arith.constant 3 : index
    %c0_141 = arith.constant 0 : index
    %c0_142 = arith.constant 0 : index
    %305 = vector.load %arg5[%c3, %c0_141, %c0_142] : memref<4x32x32xf32, #tpu.memory_space<vmem>>, vector<1x32x32xf32>
    %306 = vector.shape_cast %305 : vector<1x32x32xf32> to vector<32x32xf32>
    %cst_143 = arith.constant dense<0.000000e+00> : vector<16x32xf32>
    %307 = tpu.matmul %274, %306, %cst_143 {dimension_numbers = #tpu.dot_dimension_numbers<[1], [0], [0], [1], [0, 0, 1, 1], [], []>} : vector<16x32xf32>, vector<32x32xf32>, vector<16x32xf32> -> vector<16x32xf32>
    %c3_144 = arith.constant 3 : index
    %c0_145 = arith.constant 0 : index
    %c0_146 = arith.constant 0 : index
    %308 = vector.load %arg6[%c3_144, %c0_145, %c0_146] : memref<4x32x32xf32, #tpu.memory_space<vmem>>, vector<1x32x32xf32>
    %309 = vector.shape_cast %308 : vector<1x32x32xf32> to vector<32x32xf32>
    %cst_147 = arith.constant dense<0.000000e+00> : vector<16x32xf32>
    %310 = tpu.matmul %304, %309, %cst_147 {dimension_numbers = #tpu.dot_dimension_numbers<[1], [0], [0], [1], [0, 0, 1, 1], [], []>} : vector<16x32xf32>, vector<32x32xf32>, vector<16x32xf32> -> vector<16x32xf32>
    %311 = arith.addf %307, %310 : vector<16x32xf32>
    %c3_148 = arith.constant 3 : index
    %c0_149 = arith.constant 0 : index
    %c0_150 = arith.constant 0 : index
    %312 = vector.load %arg7[%c3_148, %c0_149, %c0_150] : memref<4x1x32xf32, #tpu.memory_space<vmem>>, vector<1x1x32xf32>
    %313 = vector.shape_cast %312 : vector<1x1x32xf32> to vector<1x32xf32>
    %314 = vector.broadcast %313 : vector<1x32xf32> to vector<16x32xf32>
    %315 = arith.addf %311, %314 : vector<16x32xf32>
    %cst_151 = arith.constant 0.000000e+00 : f32
    %316 = vector.broadcast %cst_151 : f32 to vector<16x32xf32>
    %317 = arith.maximumf %315, %316 : vector<16x32xf32>
    %cst_152 = arith.constant dense<0.000000e+00> : vector<16x32xf32>
    %318 = tpu.matmul %283, %317, %cst_152 {dimension_numbers = #tpu.dot_dimension_numbers<[1], [0], [0], [1], [0, 0, 1, 1], [], []>} : vector<16x16xf32>, vector<16x32xf32>, vector<16x32xf32> -> vector<16x32xf32>
    %c3_153 = arith.constant 3 : index
    %c0_154 = arith.constant 0 : index
    %c0_155 = arith.constant 0 : index
    %319 = vector.load %arg8[%c3_153, %c0_154, %c0_155] : memref<4x32x1xf32, #tpu.memory_space<vmem>>, vector<1x32x1xf32>
    %320 = vector.shape_cast %319 : vector<1x32x1xf32> to vector<32x1xf32>
    %cst_156 = arith.constant dense<0.000000e+00> : vector<16x1xf32>
    %321 = tpu.matmul %317, %320, %cst_156 {dimension_numbers = #tpu.dot_dimension_numbers<[1], [0], [0], [1], [0, 0, 1, 1], [], []>} : vector<16x32xf32>, vector<32x1xf32>, vector<16x1xf32> -> vector<16x1xf32>
    %c3_157 = arith.constant 3 : index
    %c0_158 = arith.constant 0 : index
    %c0_159 = arith.constant 0 : index
    %322 = vector.load %arg9[%c3_157, %c0_158, %c0_159] : memref<4x32x1xf32, #tpu.memory_space<vmem>>, vector<1x32x1xf32>
    %323 = vector.shape_cast %322 : vector<1x32x1xf32> to vector<32x1xf32>
    %cst_160 = arith.constant dense<0.000000e+00> : vector<16x1xf32>
    %324 = tpu.matmul %318, %323, %cst_160 {dimension_numbers = #tpu.dot_dimension_numbers<[1], [0], [0], [1], [0, 0, 1, 1], [], []>} : vector<16x32xf32>, vector<32x1xf32>, vector<16x1xf32> -> vector<16x1xf32>
    %325 = arith.addf %321, %324 : vector<16x1xf32>
    %c3_161 = arith.constant 3 : index
    %c0_162 = arith.constant 0 : index
    %c0_163 = arith.constant 0 : index
    %326 = vector.load %arg10[%c3_161, %c0_162, %c0_163] : memref<4x1x1xf32, #tpu.memory_space<vmem>>, vector<1x1x1xf32>
    %327 = vector.shape_cast %326 : vector<1x1x1xf32> to vector<1x1xf32>
    %328 = vector.broadcast %327 : vector<1x1xf32> to vector<16x1xf32>
    %329 = arith.addf %325, %328 : vector<16x1xf32>
    %330 = vector.shape_cast %329 : vector<16x1xf32> to vector<16x1xf32>
    %331 = vector.broadcast %330 : vector<16x1xf32> to vector<16x16xf32>
    %332 = arith.mulf %331, %5 : vector<16x16xf32>
    %cst_164 = arith.constant dense<0.000000e+00> : vector<16xf32>
    %333 = vector.multi_reduction <add>, %332, %cst_164 [0] : vector<16x16xf32> to vector<16xf32>
    %334 = vector.shape_cast %333 : vector<16xf32> to vector<1x16xf32>
    %335 = vector.shape_cast %269 : vector<16x1xf32> to vector<16x1xf32>
    %336 = vector.broadcast %335 : vector<16x1xf32> to vector<16x16xf32>
    %337 = arith.mulf %336, %5 : vector<16x16xf32>
    %cst_165 = arith.constant dense<0.000000e+00> : vector<16xf32>
    %338 = vector.multi_reduction <add>, %337, %cst_165 [0] : vector<16x16xf32> to vector<16xf32>
    %339 = vector.shape_cast %338 : vector<16xf32> to vector<1x16xf32>
    %340 = vector.broadcast %334 : vector<1x16xf32> to vector<16x16xf32>
    %341 = vector.broadcast %329 : vector<16x1xf32> to vector<16x16xf32>
    %342 = arith.cmpf ogt, %340, %341 : vector<16x16xf32>
    %343 = vector.broadcast %334 : vector<1x16xf32> to vector<16x16xf32>
    %344 = vector.broadcast %329 : vector<16x1xf32> to vector<16x16xf32>
    %345 = arith.cmpf oeq, %343, %344 : vector<16x16xf32>
    %346 = arith.cmpi slt, %1, %0 : vector<16x16xi32>
    %347 = arith.andi %345, %346 : vector<16x16xi1>
    %348 = arith.ori %342, %347 : vector<16x16xi1>
    %cst_166 = arith.constant 1.000000e+00 : f32
    %cst_167 = arith.constant 0.000000e+00 : f32
    %349 = vector.broadcast %cst_166 : f32 to vector<16x16xf32>
    %350 = vector.broadcast %cst_167 : f32 to vector<16x16xf32>
    %351 = arith.select %348, %349, %350 : vector<16x16xi1>, vector<16x16xf32>
    %352 = vector.broadcast %339 : vector<1x16xf32> to vector<16x16xf32>
    %353 = arith.mulf %351, %352 : vector<16x16xf32>
    %cst_168 = arith.constant dense<0.000000e+00> : vector<16xf32>
    %354 = vector.multi_reduction <add>, %353, %cst_168 [1] : vector<16x16xf32> to vector<16xf32>
    %355 = vector.shape_cast %354 : vector<16xf32> to vector<16x1xf32>
    %cst_169 = arith.constant 1.000000e+00 : f32
    %356 = vector.broadcast %cst_169 : f32 to vector<16x1xf32>
    %357 = arith.cmpf olt, %355, %356 : vector<16x1xf32>
    %cst_170 = arith.constant 5.000000e-01 : f32
    %358 = vector.broadcast %cst_170 : f32 to vector<16x1xf32>
    %359 = arith.cmpf ogt, %269, %358 : vector<16x1xf32>
    %360 = arith.andi %357, %359 : vector<16x1xi1>
    %cst_171 = arith.constant 1.000000e+00 : f32
    %cst_172 = arith.constant 0.000000e+00 : f32
    %361 = vector.broadcast %cst_171 : f32 to vector<16x1xf32>
    %362 = vector.broadcast %cst_172 : f32 to vector<16x1xf32>
    %363 = arith.select %360, %361, %362 : vector<16x1xi1>, vector<16x1xf32>
    %364 = math.tanh %329 : vector<16x1xf32>
    %365 = vector.broadcast %364 : vector<16x1xf32> to vector<16x32xf32>
    %366 = arith.mulf %317, %365 : vector<16x32xf32>
    %367 = vector.broadcast %363 : vector<16x1xf32> to vector<16x32xf32>
    %368 = arith.mulf %366, %367 : vector<16x32xf32>
    %cst_173 = arith.constant dense<0.000000e+00> : vector<1xf32>
    %369 = vector.multi_reduction <add>, %363, %cst_173 [0] : vector<16x1xf32> to vector<1xf32>
    %370 = vector.shape_cast %369 : vector<1xf32> to vector<1x1xf32>
    %cst_174 = arith.constant 1.000000e+00 : f32
    %371 = vector.broadcast %cst_174 : f32 to vector<1x1xf32>
    %372 = arith.maximumf %370, %371 : vector<1x1xf32>
    %373 = tpu.reciprocal %372 {approx = true} : vector<1x1xf32> -> vector<1x1xf32>
    %cst_175 = arith.constant dense<0.000000e+00> : vector<32xf32>
    %374 = vector.multi_reduction <add>, %368, %cst_175 [0] : vector<16x32xf32> to vector<32xf32>
    %375 = vector.shape_cast %374 : vector<32xf32> to vector<1x32xf32>
    %376 = vector.broadcast %373 : vector<1x1xf32> to vector<1x32xf32>
    %377 = arith.mulf %375, %376 : vector<1x32xf32>
    %378 = arith.addf %294, %377 : vector<1x32xf32>
    %cst_176 = arith.constant 5.000000e-01 : f32
    %379 = vector.broadcast %cst_176 : f32 to vector<16x1xf32>
    %380 = arith.cmpf ogt, %363, %379 : vector<16x1xf32>
    %cst_177 = arith.constant -1.000000e+30 : f32
    %381 = vector.shape_cast %380 : vector<16x1xi1> to vector<16x1xi1>
    %382 = vector.broadcast %381 : vector<16x1xi1> to vector<16x32xi1>
    %383 = vector.broadcast %cst_177 : f32 to vector<16x32xf32>
    %384 = arith.select %382, %368, %383 : vector<16x32xi1>, vector<16x32xf32>
    %cst_178 = arith.constant dense<0xFF800000> : vector<32xf32>
    %385 = vector.multi_reduction <maximumf>, %384, %cst_178 [0] : vector<16x32xf32> to vector<32xf32>
    %386 = vector.shape_cast %385 : vector<32xf32> to vector<1x32xf32>
    %387 = arith.addf %303, %386 : vector<1x32xf32>
    %c0_179 = arith.constant 0 : index
    %c0_180 = arith.constant 0 : index
    %388 = vector.load %arg14[%c0_179, %c0_180] : memref<32x64xf32, #tpu.memory_space<vmem>>, vector<32x64xf32>
    %cst_181 = arith.constant dense<0.000000e+00> : vector<1x64xf32>
    %389 = tpu.matmul %387, %388, %cst_181 {dimension_numbers = #tpu.dot_dimension_numbers<[1], [0], [0], [1], [0, 0, 1, 1], [], []>} : vector<1x32xf32>, vector<32x64xf32>, vector<1x64xf32> -> vector<1x64xf32>
    %c0_182 = arith.constant 0 : index
    %c0_183 = arith.constant 0 : index
    %390 = vector.load %arg15[%c0_182, %c0_183] : memref<32x64xf32, #tpu.memory_space<vmem>>, vector<32x64xf32>
    %cst_184 = arith.constant dense<0.000000e+00> : vector<1x64xf32>
    %391 = tpu.matmul %378, %390, %cst_184 {dimension_numbers = #tpu.dot_dimension_numbers<[1], [0], [0], [1], [0, 0, 1, 1], [], []>} : vector<1x32xf32>, vector<32x64xf32>, vector<1x64xf32> -> vector<1x64xf32>
    %392 = arith.addf %389, %391 : vector<1x64xf32>
    %c0_185 = arith.constant 0 : index
    %c0_186 = arith.constant 0 : index
    %393 = vector.load %arg16[%c0_185, %c0_186] : memref<1x64xf32, #tpu.memory_space<vmem>>, vector<1x64xf32>
    %394 = arith.addf %392, %393 : vector<1x64xf32>
    %c0_187 = arith.constant 0 : index
    %c0_188 = arith.constant 0 : index
    %395 = vector.load %arg13[%c0_187, %c0_188] : memref<32x64xf32, #tpu.memory_space<vmem>>, vector<32x64xf32>
    %cst_189 = arith.constant dense<0.000000e+00> : vector<16x64xf32>
    %396 = tpu.matmul %35, %395, %cst_189 {dimension_numbers = #tpu.dot_dimension_numbers<[1], [0], [0], [1], [0, 0, 1, 1], [], []>} : vector<16x32xf32>, vector<32x64xf32>, vector<16x64xf32> -> vector<16x64xf32>
    %397 = vector.broadcast %394 : vector<1x64xf32> to vector<16x64xf32>
    %398 = arith.addf %396, %397 : vector<16x64xf32>
    %cst_190 = arith.constant 0.000000e+00 : f32
    %399 = vector.broadcast %cst_190 : f32 to vector<16x64xf32>
    %400 = arith.maximumf %398, %399 : vector<16x64xf32>
    %c0_191 = arith.constant 0 : index
    %c0_192 = arith.constant 0 : index
    %401 = vector.load %arg17[%c0_191, %c0_192] : memref<64x32xf32, #tpu.memory_space<vmem>>, vector<64x32xf32>
    %cst_193 = arith.constant dense<0.000000e+00> : vector<16x32xf32>
    %402 = tpu.matmul %400, %401, %cst_193 {dimension_numbers = #tpu.dot_dimension_numbers<[1], [0], [0], [1], [0, 0, 1, 1], [], []>} : vector<16x64xf32>, vector<64x32xf32>, vector<16x32xf32> -> vector<16x32xf32>
    %c0_194 = arith.constant 0 : index
    %c0_195 = arith.constant 0 : index
    %403 = vector.load %arg18[%c0_194, %c0_195] : memref<1x32xf32, #tpu.memory_space<vmem>>, vector<1x32xf32>
    %404 = vector.broadcast %403 : vector<1x32xf32> to vector<16x32xf32>
    %405 = arith.addf %402, %404 : vector<16x32xf32>
    %cst_196 = arith.constant 0.000000e+00 : f32
    %406 = vector.broadcast %cst_196 : f32 to vector<16x32xf32>
    %407 = arith.maximumf %405, %406 : vector<16x32xf32>
    %c0_197 = arith.constant 0 : index
    %c0_198 = arith.constant 0 : index
    %408 = vector.load %arg19[%c0_197, %c0_198] : memref<32x32xf32, #tpu.memory_space<vmem>>, vector<32x32xf32>
    %cst_199 = arith.constant dense<0.000000e+00> : vector<16x32xf32>
    %409 = tpu.matmul %407, %408, %cst_199 {dimension_numbers = #tpu.dot_dimension_numbers<[1], [0], [0], [1], [0, 0, 1, 1], [], []>} : vector<16x32xf32>, vector<32x32xf32>, vector<16x32xf32> -> vector<16x32xf32>
    %c0_200 = arith.constant 0 : index
    %c0_201 = arith.constant 0 : index
    %410 = vector.load %arg20[%c0_200, %c0_201] : memref<1x32xf32, #tpu.memory_space<vmem>>, vector<1x32xf32>
    %411 = vector.broadcast %410 : vector<1x32xf32> to vector<16x32xf32>
    %412 = arith.addf %409, %411 : vector<16x32xf32>
    %cst_202 = arith.constant dense<0xFF800000> : vector<16xf32>
    %413 = vector.multi_reduction <maximumf>, %412, %cst_202 [1] : vector<16x32xf32> to vector<16xf32>
    %414 = vector.shape_cast %413 : vector<16xf32> to vector<16x1xf32>
    %415 = vector.broadcast %414 : vector<16x1xf32> to vector<16x32xf32>
    %416 = arith.subf %412, %415 : vector<16x32xf32>
    %417 = math.exp %416 : vector<16x32xf32>
    %cst_203 = arith.constant dense<0.000000e+00> : vector<16xf32>
    %418 = vector.multi_reduction <add>, %417, %cst_203 [1] : vector<16x32xf32> to vector<16xf32>
    %419 = vector.shape_cast %418 : vector<16xf32> to vector<16x1xf32>
    %420 = math.log %419 : vector<16x1xf32>
    %421 = vector.broadcast %420 : vector<16x1xf32> to vector<16x32xf32>
    %422 = arith.subf %416, %421 : vector<16x32xf32>
    %c0_204 = arith.constant 0 : index
    %c0_205 = arith.constant 0 : index
    %423 = vector.load %arg21[%c0_204, %c0_205] : memref<16x32xf32, #tpu.memory_space<vmem>>, vector<16x32xf32>
    tpu.vector_store %arg21[%c0_204, %c0_205], %422 {strides = array<i32>} : memref<16x32xf32, #tpu.memory_space<vmem>>, vector<16x32xf32>,
    return
  }
}

</mosaic_0001>

<llo_original>
// kernel: gnn_forward.1
$region0: #{gnn_forward.1}
  #allocation0 [shape = 'u32[]', space=smem, size = 0x4, offset = 0x4, fixed_abs, tag = 'smem constant byte address 0x4 - core index']
  #allocation1 [shape = 'u32[144,128]{1,0:T(1,128)}', space=vmem, size = 0x12000, scoped, tag = 'internal scratch']
  %s0 = inlined_call_operand.vmem [shape: f32[16,8], index: 0, kind: input, shape index: {}]
  %s1 = inlined_call_operand.vmem [shape: f32[16,16], index: 1, kind: input, shape index: {}]
  %s2 = inlined_call_operand.vmem [shape: f32[16,16], index: 2, kind: input, shape index: {}]
  %s3 = inlined_call_operand.vmem [shape: f32[8,32], index: 3, kind: input, shape index: {}]
  %s4 = inlined_call_operand.vmem [shape: f32[1,32], index: 4, kind: input, shape index: {}]
  %s5 = inlined_call_operand.vmem [shape: f32[4,32,32], index: 5, kind: input, shape index: {}]
  %s6 = inlined_call_operand.vmem [shape: f32[4,32,32], index: 6, kind: input, shape index: {}]
  %s7 = inlined_call_operand.vmem [shape: f32[4,1,32], index: 7, kind: input, shape index: {}]
  %s8 = inlined_call_operand.vmem [shape: f32[4,32,1], index: 8, kind: input, shape index: {}]
  %s9 = inlined_call_operand.vmem [shape: f32[4,32,1], index: 9, kind: input, shape index: {}]
  %s10 = inlined_call_operand.vmem [shape: f32[4,1,1], index: 10, kind: input, shape index: {}]
  %s11 = inlined_call_operand.vmem [shape: f32[32,32], index: 11, kind: input, shape index: {}]
  %s12 = inlined_call_operand.vmem [shape: f32[1,32], index: 12, kind: input, shape index: {}]
  %s13 = inlined_call_operand.vmem [shape: f32[32,64], index: 13, kind: input, shape index: {}]
  %s14 = inlined_call_operand.vmem [shape: f32[32,64], index: 14, kind: input, shape index: {}]
  %s15 = inlined_call_operand.vmem [shape: f32[32,64], index: 15, kind: input, shape index: {}]
  %s16 = inlined_call_operand.vmem [shape: f32[1,64], index: 16, kind: input, shape index: {}]
  %s17 = inlined_call_operand.vmem [shape: f32[64,32], index: 17, kind: input, shape index: {}]
  %s18 = inlined_call_operand.vmem [shape: f32[1,32], index: 18, kind: input, shape index: {}]
  %s19 = inlined_call_operand.vmem [shape: f32[32,32], index: 19, kind: input, shape index: {}]
  %s20 = inlined_call_operand.vmem [shape: f32[1,32], index: 20, kind: input, shape index: {}]
  %s21 = inlined_call_operand.hbm [shape: f32[16,32], index: 21, kind: output, shape index: {}]
  %s22 = sld [smem:[#allocation0]]
  $region94: #{gnn_forward.1} parent=0
    _
  %s24 = ssub.s32 1, %s22
  %s25 = scalar_select 0, %s24, %s22
  $region1: #{gnn_forward.1} parent=0
    #allocation2 [shape = 'u8[8192]{0}', space=vmem, size = 0x2000, scoped, tag = 'output window, operand 0, single buffered']
    #allocation3 [shape = 's32[1]{0}', space=sflag, size = 0x4, scoped, tag = 'scoped memory for gnn_forward.1']
    %26 = vsyncpa [#allocation3], 0
    // Predicated region
    $region2: #{gnn_forward.1} parent=1 // pred_check
      _
    $region3: #{gnn_forward.1} parent=1 // pred_check_branch
      %28 = sbr.rel (0) target = $region5
    $region4: #{gnn_forward.1} parent=1 // pred_region
      _
    $region5: #{gnn_forward.1} parent=1 // pred_fallthru
      _
    // Predicated region
    $region6: #{gnn_forward.1} parent=1 // pred_check
      _
    $region7: #{gnn_forward.1} parent=1 // pred_check_branch
      %30 = sbr.rel (0) target = $region9
    $region8: #{gnn_forward.1} parent=1 // pred_region
      _
    $region9: #{gnn_forward.1} parent=1 // pred_fallthru
      _
    // Predicated region
    $region10: #{gnn_forward.1} parent=1 // pred_check
      _
    $region11: #{gnn_forward.1} parent=1 // pred_check_branch
      %32 = sbr.rel (0) target = $region13
    $region12: #{gnn_forward.1} parent=1 // pred_region
      _
    $region13: #{gnn_forward.1} parent=1 // pred_fallthru
      _
    // Predicated region
    $region14: #{gnn_forward.1} parent=1 // pred_check
      _
    $region15: #{gnn_forward.1} parent=1 // pred_check_branch
      %34 = sbr.rel (0) target = $region17
    $region16: #{gnn_forward.1} parent=1 // pred_region
      _
    $region17: #{gnn_forward.1} parent=1 // pred_fallthru
      _
    // Predicated region
    $region18: #{gnn_forward.1} parent=1 // pred_check
      _
    $region19: #{gnn_forward.1} parent=1 // pred_check_branch
      %36 = sbr.rel (0) target = $region21
    $region20: #{gnn_forward.1} parent=1 // pred_region
      _
    $region21: #{gnn_forward.1} parent=1 // pred_fallthru
      _
    // Predicated region
    $region22: #{gnn_forward.1} parent=1 // pred_check
      _
    $region23: #{gnn_forward.1} parent=1 // pred_check_branch
      %38 = sbr.rel (0) target = $region25
    $region24: #{gnn_forward.1} parent=1 // pred_region
      _
    $region25: #{gnn_forward.1} parent=1 // pred_fallthru
      _
    // Predicated region
    $region26: #{gnn_forward.1} parent=1 // pred_check
      _
    $region27: #{gnn_forward.1} parent=1 // pred_check_branch
      %40 = sbr.rel (0) target = $region29
    $region28: #{gnn_forward.1} parent=1 // pred_region
      _
    $region29: #{gnn_forward.1} parent=1 // pred_fallthru
      _
    // Predicated region
    $region30: #{gnn_forward.1} parent=1 // pred_check
      _
    $region31: #{gnn_forward.1} parent=1 // pred_check_branch
      %42 = sbr.rel (0) target = $region33
    $region32: #{gnn_forward.1} parent=1 // pred_region
      _
    $region33: #{gnn_forward.1} parent=1 // pred_fallthru
      _
    // Predicated region
    $region34: #{gnn_forward.1} parent=1 // pred_check
      _
    $region35: #{gnn_forward.1} parent=1 // pred_check_branch
      %44 = sbr.rel (0) target = $region37
    $region36: #{gnn_forward.1} parent=1 // pred_region
      _
    $region37: #{gnn_forward.1} parent=1 // pred_fallthru
      _
    // Predicated region
    $region38: #{gnn_forward.1} parent=1 // pred_check
      _
    $region39: #{gnn_forward.1} parent=1 // pred_check_branch
      %46 = sbr.rel (0) target = $region41
    $region40: #{gnn_forward.1} parent=1 // pred_region
      _
    $region41: #{gnn_forward.1} parent=1 // pred_fallthru
      _
    // Predicated region
    $region42: #{gnn_forward.1} parent=1 // pred_check
      _
    $region43: #{gnn_forward.1} parent=1 // pred_check_branch
      %48 = sbr.rel (0) target = $region45
    $region44: #{gnn_forward.1} parent=1 // pred_region
      _
    $region45: #{gnn_forward.1} parent=1 // pred_fallthru
      _
    // Predicated region
    $region46: #{gnn_forward.1} parent=1 // pred_check
      _
    $region47: #{gnn_forward.1} parent=1 // pred_check_branch
      %50 = sbr.rel (0) target = $region49
    $region48: #{gnn_forward.1} parent=1 // pred_region
      _
    $region49: #{gnn_forward.1} parent=1 // pred_fallthru
      _
    // Predicated region
    $region50: #{gnn_forward.1} parent=1 // pred_check
      _
    $region51: #{gnn_forward.1} parent=1 // pred_check_branch
      %52 = sbr.rel (0) target = $region53
    $region52: #{gnn_forward.1} parent=1 // pred_region
      _
    $region53: #{gnn_forward.1} parent=1 // pred_fallthru
      _
    // Predicated region
    $region54: #{gnn_forward.1} parent=1 // pred_check
      _
    $region55: #{gnn_forward.1} parent=1 // pred_check_branch
      %54 = sbr.rel (0) target = $region57
    $region56: #{gnn_forward.1} parent=1 // pred_region
      _
    $region57: #{gnn_forward.1} parent=1 // pred_fallthru
      _
    // Predicated region
    $region58: #{gnn_forward.1} parent=1 // pred_check
      _
    $region59: #{gnn_forward.1} parent=1 // pred_check_branch
      %56 = sbr.rel (0) target = $region61
    $region60: #{gnn_forward.1} parent=1 // pred_region
      _
    $region61: #{gnn_forward.1} parent=1 // pred_fallthru
      _
    // Predicated region
    $region62: #{gnn_forward.1} parent=1 // pred_check
      _
    $region63: #{gnn_forward.1} parent=1 // pred_check_branch
      %58 = sbr.rel (0) target = $region65
    $region64: #{gnn_forward.1} parent=1 // pred_region
      _
    $region65: #{gnn_forward.1} parent=1 // pred_fallthru
      _
    // Predicated region
    $region66: #{gnn_forward.1} parent=1 // pred_check
      _
    $region67: #{gnn_forward.1} parent=1 // pred_check_branch
      %60 = sbr.rel (0) target = $region69
    $region68: #{gnn_forward.1} parent=1 // pred_region
      _
    $region69: #{gnn_forward.1} parent=1 // pred_fallthru
      _
    // Predicated region
    $region70: #{gnn_forward.1} parent=1 // pred_check
      _
    $region71: #{gnn_forward.1} parent=1 // pred_check_branch
      %62 = sbr.rel (0) target = $region73
    $region72: #{gnn_forward.1} parent=1 // pred_region
      _
    $region73: #{gnn_forward.1} parent=1 // pred_fallthru
      _
    // Predicated region
    $region74: #{gnn_forward.1} parent=1 // pred_check
      _
    $region75: #{gnn_forward.1} parent=1 // pred_check_branch
      %64 = sbr.rel (0) target = $region77
    $region76: #{gnn_forward.1} parent=1 // pred_region
      _
    $region77: #{gnn_forward.1} parent=1 // pred_fallthru
      _
    // Predicated region
    $region78: #{gnn_forward.1} parent=1 // pred_check
      _
    $region79: #{gnn_forward.1} parent=1 // pred_check_branch
      %66 = sbr.rel (0) target = $region81
    $region80: #{gnn_forward.1} parent=1 // pred_region
      _
    $region81: #{gnn_forward.1} parent=1 // pred_fallthru
      _
    // Predicated region
    $region82: #{gnn_forward.1} parent=1 // pred_check
      _
    $region83: #{gnn_forward.1} parent=1 // pred_check_branch
      %68 = sbr.rel (0) target = $region85
    $region84: #{gnn_forward.1} parent=1 // pred_region
      _
    $region85: #{gnn_forward.1} parent=1 // pred_fallthru
      _
    %v69 = vlaneseq
    %v70 = vshrl.u32 %v69, 7
    %v71 = vadd.s32 %v70, 8
    %v72 = vlaneseq
    %v73 = vand.u32 %v72, 127
    %vm74 = vcmp.eq.s32.totalorder %v70, %v73
    %vm75 = vcmp.eq.s32.totalorder %v71, %v73
    %v76 = vsel %vm74, 1.0, 0.0
    %v77 = vsel %vm75, 1.0, 0.0
    %v78 = vld [vmem:[%s0] sm:$0xff]
    %v79 = vld [vmem:[%s0 + $0x8] sm:$0xff]
    %v80 = vld [vmem:[%s3] sm:$0xff]
    %v81 = vld [vmem:[%s4] sm:$0x1]
    %v83 = vlaneseq
    %v84 = vshrl.u32 %v83, 7
    %v85 = vsub.s32 0, %v84
    %v86 = vrot.slane %v81, %v85
    %vm88 = vcmask 64512
    %v90 = vsel %vm88, %v78, 0
    %v93 = vsel %vm88, %v79, 0
    %95 = vmatprep.subr.mxu0 0.0
    %96 = vmatpush1.msra.mxu0 0.0
    %97 = vmatprep.subr.mxu0 0.0
    %98 = vmatpush1.msra.mxu0 0.0
    %99 = vmatprep.subr.mxu0 0.0
    %100 = vmatpush1.msra.mxu0 0.0
    %101 = vmatprep.subr.mxu0 0.0
    %102 = vmatpush1.msra.mxu0 0.0
    %103 = vmatprep.subr.mxu0 0.0
    %104 = vmatpush1.msra.mxu0 0.0
    %105 = vmatprep.subr.mxu0 0.0
    %106 = vmatpush1.msra.mxu0 0.0
    %107 = vmatprep.subr.mxu0 0.0
    %108 = vmatpush1.msra.mxu0 0.0
    %109 = vmatprep.subr.mxu0 0.0
    %110 = vmatpush1.msra.mxu0 0.0
    %111 = vmatprep.subr.mxu0 0.0
    %112 = vmatpush1.msra.mxu0 0.0
    %113 = vmatprep.subr.mxu0 0.0
    %114 = vmatpush1.msra.mxu0 0.0
    %115 = vmatprep.subr.mxu0 0.0
    %116 = vmatpush1.msra.mxu0 0.0
    %117 = vmatprep.subr.mxu0 0.0
    %118 = vmatpush1.msra.mxu0 0.0
    %119 = vmatprep.subr.mxu0 0.0
    %120 = vmatpush1.msra.mxu0 0.0
    %121 = vmatprep.subr.mxu0 0.0
    %122 = vmatpush1.msra.mxu0 0.0
    %123 = vmatprep.subr.mxu0 0.0
    %124 = vmatpush1.msra.mxu0 0.0
    %125 = vmatprep.subr.mxu0 0.0
    %126 = vmatpush1.msra.mxu0 %v80
    %127 = vmatprep.subr.mxu0 0.0
    %128 = vmatpush2.msra.mxu0 0.0
    %129 = vmatprep.subr.mxu0 0.0
    %130 = vmatpush2.msra.mxu0 0.0
    %131 = vmatprep.subr.mxu0 0.0
    %132 = vmatpush2.msra.mxu0 0.0
    %133 = vmatprep.subr.mxu0 0.0
    %134 = vmatpush2.msra.mxu0 0.0
    %135 = vmatprep.subr.mxu0 0.0
    %136 = vmatpush2.msra.mxu0 0.0
    %137 = vmatprep.subr.mxu0 0.0
    %138 = vmatpush2.msra.mxu0 0.0
    %139 = vmatprep.subr.mxu0 0.0
    %140 = vmatpush2.msra.mxu0 0.0
    %141 = vmatprep.subr.mxu0 0.0
    %142 = vmatpush2.msra.mxu0 0.0
    %143 = vmatprep.subr.mxu0 0.0
    %144 = vmatpush2.msra.mxu0 0.0
    %145 = vmatprep.subr.mxu0 0.0
    %146 = vmatpush2.msra.mxu0 0.0
    %147 = vmatprep.subr.mxu0 0.0
    %148 = vmatpush2.msra.mxu0 0.0
    %149 = vmatprep.subr.mxu0 0.0
    %150 = vmatpush2.msra.mxu0 0.0
    %151 = vmatprep.subr.mxu0 0.0
    %152 = vmatpush2.msra.mxu0 0.0
    %153 = vmatprep.subr.mxu0 0.0
    %154 = vmatpush2.msra.mxu0 0.0
    %155 = vmatprep.subr.mxu0 0.0
    %156 = vmatpush2.msra.mxu0 0.0
    %157 = vmatprep.subr.mxu0 0.0
    %158 = vmatpush2.msra.mxu0 0.0
    %159 = vmatprep.mubr.f32.mxu0 0.0
    %160 = vmatmul.mubr.f32.gmra.mxu0 %v90
    %v161 = vpop.f32.mrf.mxu0
    %v162 = vadd.f32 %v86, %v161
    %v163 = vpop.f32.mrf.mxu0
    %164 = vmatprep.mubr.f32.mxu0 0.0
    %165 = vmatmul.mubr.f32.gmra.mxu0 %v93
    %v166 = vpop.f32.mrf.mxu0
    %v167 = vadd.f32 %v86, %v166
    %v168 = vpop.f32.mrf.mxu0
    %169 = vdwg.mxu0
    %v170 = vld [vmem:[%s1] sm:$0xff]
    %v171 = vld [vmem:[%s1 + $0x8] sm:$0xff]
    %v172 = vld [vmem:[%s2] sm:$0xff]
    %v173 = vld [vmem:[%s2 + $0x8] sm:$0xff]
    %vm174 = vcmask 130048
    %v176 = vsel %vm174, %v170, 0
    %v179 = vsel %vm174, %v171, 0
    %181 = vmatprep.subr.mxu0 0.0
    %182 = vmatpush1.msra.mxu0 0.0
    %183 = vmatprep.subr.mxu0 0.0
    %184 = vmatpush1.msra.mxu0 0.0
    %185 = vmatprep.subr.mxu0 0.0
    %186 = vmatpush1.msra.mxu0 0.0
    %187 = vmatprep.subr.mxu0 0.0
    %188 = vmatpush1.msra.mxu0 0.0
    %189 = vmatprep.subr.mxu0 0.0
    %190 = vmatpush1.msra.mxu0 0.0
    %191 = vmatprep.subr.mxu0 0.0
    %192 = vmatpush1.msra.mxu0 0.0
    %193 = vmatprep.subr.mxu0 0.0
    %194 = vmatpush1.msra.mxu0 0.0
    %195 = vmatprep.subr.mxu0 0.0
    %196 = vmatpush1.msra.mxu0 0.0
    %197 = vmatprep.subr.mxu0 0.0
    %198 = vmatpush1.msra.mxu0 0.0
    %199 = vmatprep.subr.mxu0 0.0
    %200 = vmatpush1.msra.mxu0 0.0
    %201 = vmatprep.subr.mxu0 0.0
    %202 = vmatpush1.msra.mxu0 0.0
    %203 = vmatprep.subr.mxu0 0.0
    %204 = vmatpush1.msra.mxu0 0.0
    %205 = vmatprep.subr.mxu0 0.0
    %206 = vmatpush1.msra.mxu0 0.0
    %207 = vmatprep.subr.mxu0 0.0
    %208 = vmatpush1.msra.mxu0 0.0
    %209 = vmatprep.subr.mxu0 0.0
    %210 = vmatpush1.msra.mxu0 %v167
    %211 = vmatprep.subr.mxu0 0.0
    %212 = vmatpush1.msra.mxu0 %v162
    %213 = vmatprep.subr.mxu0 0.0
    %214 = vmatpush2.msra.mxu0 0.0
    %215 = vmatprep.subr.mxu0 0.0
    %216 = vmatpush2.msra.mxu0 0.0
    %217 = vmatprep.subr.mxu0 0.0
    %218 = vmatpush2.msra.mxu0 0.0
    %219 = vmatprep.subr.mxu0 0.0
    %220 = vmatpush2.msra.mxu0 0.0
    %221 = vmatprep.subr.mxu0 0.0
    %222 = vmatpush2.msra.mxu0 0.0
    %223 = vmatprep.subr.mxu0 0.0
    %224 = vmatpush2.msra.mxu0 0.0
    %225 = vmatprep.subr.mxu0 0.0
    %226 = vmatpush2.msra.mxu0 0.0
    %227 = vmatprep.subr.mxu0 0.0
    %228 = vmatpush2.msra.mxu0 0.0
    %229 = vmatprep.subr.mxu0 0.0
    %230 = vmatpush2.msra.mxu0 0.0
    %231 = vmatprep.subr.mxu0 0.0
    %232 = vmatpush2.msra.mxu0 0.0
    %233 = vmatprep.subr.mxu0 0.0
    %234 = vmatpush2.msra.mxu0 0.0
    %235 = vmatprep.subr.mxu0 0.0
    %236 = vmatpush2.msra.mxu0 0.0
    %237 = vmatprep.subr.mxu0 0.0
    %238 = vmatpush2.msra.mxu0 0.0
    %239 = vmatprep.subr.mxu0 0.0
    %240 = vmatpush2.msra.mxu0 0.0
    %241 = vmatprep.subr.mxu0 0.0
    %242 = vmatpush2.msra.mxu0 0.0
    %243 = vmatprep.subr.mxu0 0.0
    %244 = vmatpush2.msra.mxu0 0.0
    %245 = vmatprep.mubr.f32.mxu0 0.0
    %246 = vmatmul.mubr.f32.gmra.mxu0 %v176
    %v247 = vpop.f32.mrf.mxu0
    %v248 = vadd.f32 0.0, %v247
    %v249 = vpop.f32.mrf.mxu0
    %250 = vmatprep.mubr.f32.mxu0 0.0
    %251 = vmatmul.mubr.f32.gmra.mxu0 %v179
    %v252 = vpop.f32.mrf.mxu0
    %v253 = vadd.f32 0.0, %v252
    %v254 = vpop.f32.mrf.mxu0
    %255 = vdwg.mxu0
    %v256 = vld [vmem:[%s5] sm:$0xff]
    %v257 = vld [vmem:[%s5 + $0x8] sm:$0xff]
    %v258 = vld [vmem:[%s5 + $0x10] sm:$0xff]
    %v259 = vld [vmem:[%s5 + $0x18] sm:$0xff]
    %v260 = vld [vmem:[%s6] sm:$0xff]
    %v261 = vld [vmem:[%s6 + $0x8] sm:$0xff]
    %v262 = vld [vmem:[%s6 + $0x10] sm:$0xff]
    %v263 = vld [vmem:[%s6 + $0x18] sm:$0xff]
    %vm264 = vcmask 261120
    %v266 = vsel %vm264, %v248, 0
    %v269 = vsel %vm264, %v253, 0
    %271 = vmatprep.subr.mxu0 0.0
    %272 = vmatpush1.msra.mxu0 0.0
    %273 = vmatprep.subr.mxu0 0.0
    %274 = vmatpush1.msra.mxu0 0.0
    %275 = vmatprep.subr.mxu0 0.0
    %276 = vmatpush1.msra.mxu0 0.0
    %277 = vmatprep.subr.mxu0 0.0
    %278 = vmatpush1.msra.mxu0 0.0
    %279 = vmatprep.subr.mxu0 0.0
    %280 = vmatpush1.msra.mxu0 0.0
    %281 = vmatprep.subr.mxu0 0.0
    %282 = vmatpush1.msra.mxu0 0.0
    %283 = vmatprep.subr.mxu0 0.0
    %284 = vmatpush1.msra.mxu0 0.0
    %285 = vmatprep.subr.mxu0 0.0
    %286 = vmatpush1.msra.mxu0 0.0
    %287 = vmatprep.subr.mxu0 0.0
    %288 = vmatpush1.msra.mxu0 0.0
    %289 = vmatprep.subr.mxu0 0.0
    %290 = vmatpush1.msra.mxu0 0.0
    %291 = vmatprep.subr.mxu0 0.0
    %292 = vmatpush1.msra.mxu0 0.0
    %293 = vmatprep.subr.mxu0 0.0
    %294 = vmatpush1.msra.mxu0 0.0
    %295 = vmatprep.subr.mxu0 0.0
    %296 = vmatpush1.msra.mxu0 %v263
    %297 = vmatprep.subr.mxu0 0.0
    %298 = vmatpush1.msra.mxu0 %v262
    %299 = vmatprep.subr.mxu0 0.0
    %300 = vmatpush1.msra.mxu0 %v261
    %301 = vmatprep.subr.mxu0 0.0
    %302 = vmatpush1.msra.mxu0 %v260
    %303 = vmatprep.subr.mxu0 0.0
    %304 = vmatpush2.msra.mxu0 0.0
    %305 = vmatprep.subr.mxu0 0.0
    %306 = vmatpush2.msra.mxu0 0.0
    %307 = vmatprep.subr.mxu0 0.0
    %308 = vmatpush2.msra.mxu0 0.0
    %309 = vmatprep.subr.mxu0 0.0
    %310 = vmatpush2.msra.mxu0 0.0
    %311 = vmatprep.subr.mxu0 0.0
    %312 = vmatpush2.msra.mxu0 0.0
    %313 = vmatprep.subr.mxu0 0.0
    %314 = vmatpush2.msra.mxu0 0.0
    %315 = vmatprep.subr.mxu0 0.0
    %316 = vmatpush2.msra.mxu0 0.0
    %317 = vmatprep.subr.mxu0 0.0
    %318 = vmatpush2.msra.mxu0 0.0
    %319 = vmatprep.subr.mxu0 0.0
    %320 = vmatpush2.msra.mxu0 0.0
    %321 = vmatprep.subr.mxu0 0.0
    %322 = vmatpush2.msra.mxu0 0.0
    %323 = vmatprep.subr.mxu0 0.0
    %324 = vmatpush2.msra.mxu0 0.0
    %325 = vmatprep.subr.mxu0 0.0
    %326 = vmatpush2.msra.mxu0 0.0
    %327 = vmatprep.subr.mxu0 0.0
    %328 = vmatpush2.msra.mxu0 0.0
    %329 = vmatprep.subr.mxu0 0.0
    %330 = vmatpush2.msra.mxu0 0.0
    %331 = vmatprep.subr.mxu0 0.0
    %332 = vmatpush2.msra.mxu0 0.0
    %333 = vmatprep.subr.mxu0 0.0
    %334 = vmatpush2.msra.mxu0 0.0
    %335 = vmatprep.mubr.f32.mxu0 0.0
    %336 = vmatmul.mubr.f32.gmra.mxu0 %v266
    %v337 = vpop.f32.mrf.mxu0
    %v338 = vadd.f32 0.0, %v337
    %v339 = vpop.f32.mrf.mxu0
    %340 = vmatprep.mubr.f32.mxu0 0.0
    %341 = vmatmul.mubr.f32.gmra.mxu0 %v269
    %v342 = vpop.f32.mrf.mxu0
    %v343 = vadd.f32 0.0, %v342
    %v344 = vpop.f32.mrf.mxu0
    %345 = vdwg.mxu0
    %v347 = vsel %vm264, %v162, 0
    %v350 = vsel %vm264, %v167, 0
    %352 = vmatprep.subr.mxu0 0.0
    %353 = vmatpush1.msra.mxu0 0.0
    %354 = vmatprep.subr.mxu0 0.0
    %355 = vmatpush1.msra.mxu0 0.0
    %356 = vmatprep.subr.mxu0 0.0
    %357 = vmatpush1.msra.mxu0 0.0
    %358 = vmatprep.subr.mxu0 0.0
    %359 = vmatpush1.msra.mxu0 0.0
    %360 = vmatprep.subr.mxu0 0.0
    %361 = vmatpush1.msra.mxu0 0.0
    %362 = vmatprep.subr.mxu0 0.0
    %363 = vmatpush1.msra.mxu0 0.0
    %364 = vmatprep.subr.mxu0 0.0
    %365 = vmatpush1.msra.mxu0 0.0
    %366 = vmatprep.subr.mxu0 0.0
    %367 = vmatpush1.msra.mxu0 0.0
    %368 = vmatprep.subr.mxu0 0.0
    %369 = vmatpush1.msra.mxu0 0.0
    %370 = vmatprep.subr.mxu0 0.0
    %371 = vmatpush1.msra.mxu0 0.0
    %372 = vmatprep.subr.mxu0 0.0
    %373 = vmatpush1.msra.mxu0 0.0
    %374 = vmatprep.subr.mxu0 0.0
    %375 = vmatpush1.msra.mxu0 0.0
    %376 = vmatprep.subr.mxu0 0.0
    %377 = vmatpush1.msra.mxu0 %v259
    %378 = vmatprep.subr.mxu0 0.0
    %379 = vmatpush1.msra.mxu0 %v258
    %380 = vmatprep.subr.mxu0 0.0
    %381 = vmatpush1.msra.mxu0 %v257
    %382 = vmatprep.subr.mxu0 0.0
    %383 = vmatpush1.msra.mxu0 %v256
    %384 = vmatprep.subr.mxu0 0.0
    %385 = vmatpush2.msra.mxu0 0.0
    %386 = vmatprep.subr.mxu0 0.0
    %387 = vmatpush2.msra.mxu0 0.0
    %388 = vmatprep.subr.mxu0 0.0
    %389 = vmatpush2.msra.mxu0 0.0
    %390 = vmatprep.subr.mxu0 0.0
    %391 = vmatpush2.msra.mxu0 0.0
    %392 = vmatprep.subr.mxu0 0.0
    %393 = vmatpush2.msra.mxu0 0.0
    %394 = vmatprep.subr.mxu0 0.0
    %395 = vmatpush2.msra.mxu0 0.0
    %396 = vmatprep.subr.mxu0 0.0
    %397 = vmatpush2.msra.mxu0 0.0
    %398 = vmatprep.subr.mxu0 0.0
    %399 = vmatpush2.msra.mxu0 0.0
    %400 = vmatprep.subr.mxu0 0.0
    %401 = vmatpush2.msra.mxu0 0.0
    %402 = vmatprep.subr.mxu0 0.0
    %403 = vmatpush2.msra.mxu0 0.0
    %404 = vmatprep.subr.mxu0 0.0
    %405 = vmatpush2.msra.mxu0 0.0
    %406 = vmatprep.subr.mxu0 0.0
    %407 = vmatpush2.msra.mxu0 0.0
    %408 = vmatprep.subr.mxu0 0.0
    %409 = vmatpush2.msra.mxu0 0.0
    %410 = vmatprep.subr.mxu0 0.0
    %411 = vmatpush2.msra.mxu0 0.0
    %412 = vmatprep.subr.mxu0 0.0
    %413 = vmatpush2.msra.mxu0 0.0
    %414 = vmatprep.subr.mxu0 0.0
    %415 = vmatpush2.msra.mxu0 0.0
    %416 = vmatprep.mubr.f32.mxu0 0.0
    %417 = vmatmul.mubr.f32.gmra.mxu0 %v347
    %v418 = vpop.f32.mrf.mxu0
    %v419 = vadd.f32 %v338, %v418
    %v420 = vpop.f32.mrf.mxu0
    %421 = vmatprep.mubr.f32.mxu0 0.0
    %422 = vmatmul.mubr.f32.gmra.mxu0 %v350
    %v423 = vpop.f32.mrf.mxu0
    %v424 = vadd.f32 %v343, %v423
    %v425 = vpop.f32.mrf.mxu0
    %426 = vdwg.mxu0
    %v427 = vld [vmem:[%s7] sm:$0x1]
    %v429 = vlaneseq
    %v430 = vshrl.u32 %v429, 7
    %v431 = vsub.s32 0, %v430
    %v432 = vrot.slane %v427, %v431
    %v434 = vadd.f32 %v419, %v432
    %v435 = vadd.f32 %v424, %v432
    %v436 = vmax.f32 %v434, 0.0
    %v437 = vmax.f32 %v435, 0.0
    %v438 = vld [vmem:[%s11] sm:$0xff]
    %v439 = vld [vmem:[%s11 + $0x8] sm:$0xff]
    %v440 = vld [vmem:[%s11 + $0x10] sm:$0xff]
    %v441 = vld [vmem:[%s11 + $0x18] sm:$0xff]
    %v442 = vld [vmem:[%s12] sm:$0x1]
    %v444 = vlaneseq
    %v445 = vshrl.u32 %v444, 7
    %v446 = vsub.s32 0, %v445
    %v447 = vrot.slane %v442, %v446
    %v450 = vsel %vm264, %v436, 0
    %v453 = vsel %vm264, %v437, 0
    %455 = vmatprep.subr.mxu0 0.0
    %456 = vmatpush1.msra.mxu0 0.0
    %457 = vmatprep.subr.mxu0 0.0
    %458 = vmatpush1.msra.mxu0 0.0
    %459 = vmatprep.subr.mxu0 0.0
    %460 = vmatpush1.msra.mxu0 0.0
    %461 = vmatprep.subr.mxu0 0.0
    %462 = vmatpush1.msra.mxu0 0.0
    %463 = vmatprep.subr.mxu0 0.0
    %464 = vmatpush1.msra.mxu0 0.0
    %465 = vmatprep.subr.mxu0 0.0
    %466 = vmatpush1.msra.mxu0 0.0
    %467 = vmatprep.subr.mxu0 0.0
    %468 = vmatpush1.msra.mxu0 0.0
    %469 = vmatprep.subr.mxu0 0.0
    %470 = vmatpush1.msra.mxu0 0.0
    %471 = vmatprep.subr.mxu0 0.0
    %472 = vmatpush1.msra.mxu0 0.0
    %473 = vmatprep.subr.mxu0 0.0
    %474 = vmatpush1.msra.mxu0 0.0
    %475 = vmatprep.subr.mxu0 0.0
    %476 = vmatpush1.msra.mxu0 0.0
    %477 = vmatprep.subr.mxu0 0.0
    %478 = vmatpush1.msra.mxu0 0.0
    %479 = vmatprep.subr.mxu0 0.0
    %480 = vmatpush1.msra.mxu0 %v441
    %481 = vmatprep.subr.mxu0 0.0
    %482 = vmatpush1.msra.mxu0 %v440
    %483 = vmatprep.subr.mxu0 0.0
    %484 = vmatpush1.msra.mxu0 %v439
    %485 = vmatprep.subr.mxu0 0.0
    %486 = vmatpush1.msra.mxu0 %v438
    %487 = vmatprep.subr.mxu0 0.0
    %488 = vmatpush2.msra.mxu0 0.0
    %489 = vmatprep.subr.mxu0 0.0
    %490 = vmatpush2.msra.mxu0 0.0
    %491 = vmatprep.subr.mxu0 0.0
    %492 = vmatpush2.msra.mxu0 0.0
    %493 = vmatprep.subr.mxu0 0.0
    %494 = vmatpush2.msra.mxu0 0.0
    %495 = vmatprep.subr.mxu0 0.0
    %496 = vmatpush2.msra.mxu0 0.0
    %497 = vmatprep.subr.mxu0 0.0
    %498 = vmatpush2.msra.mxu0 0.0
    %499 = vmatprep.subr.mxu0 0.0
    %500 = vmatpush2.msra.mxu0 0.0
    %501 = vmatprep.subr.mxu0 0.0
    %502 = vmatpush2.msra.mxu0 0.0
    %503 = vmatprep.subr.mxu0 0.0
    %504 = vmatpush2.msra.mxu0 0.0
    %505 = vmatprep.subr.mxu0 0.0
    %506 = vmatpush2.msra.mxu0 0.0
    %507 = vmatprep.subr.mxu0 0.0
    %508 = vmatpush2.msra.mxu0 0.0
    %509 = vmatprep.subr.mxu0 0.0
    %510 = vmatpush2.msra.mxu0 0.0
    %511 = vmatprep.subr.mxu0 0.0
    %512 = vmatpush2.msra.mxu0 0.0
    %513 = vmatprep.subr.mxu0 0.0
    %514 = vmatpush2.msra.mxu0 0.0
    %515 = vmatprep.subr.mxu0 0.0
    %516 = vmatpush2.msra.mxu0 0.0
    %517 = vmatprep.subr.mxu0 0.0
    %518 = vmatpush2.msra.mxu0 0.0
    %519 = vmatprep.mubr.f32.mxu0 0.0
    %520 = vmatmul.mubr.f32.gmra.mxu0 %v450
    %v521 = vpop.f32.mrf.mxu0
    %v522 = vadd.f32 %v447, %v521
    %v523 = vpop.f32.mrf.mxu0
    %524 = vmatprep.mubr.f32.mxu0 0.0
    %525 = vmatmul.mubr.f32.gmra.mxu0 %v453
    %v526 = vpop.f32.mrf.mxu0
    %v527 = vadd.f32 %v447, %v526
    %v528 = vpop.f32.mrf.mxu0
    %529 = vdwg.mxu0
    %530 = vmatprep.subr.mxu0 0.0
    %531 = vmatpush1.msra.mxu0 0.0
    %532 = vmatprep.subr.mxu0 0.0
    %533 = vmatpush1.msra.mxu0 0.0
    %534 = vmatprep.subr.mxu0 0.0
    %535 = vmatpush1.msra.mxu0 0.0
    %536 = vmatprep.subr.mxu0 0.0
    %537 = vmatpush1.msra.mxu0 0.0
    %538 = vmatprep.subr.mxu0 0.0
    %539 = vmatpush1.msra.mxu0 0.0
    %540 = vmatprep.subr.mxu0 0.0
    %541 = vmatpush1.msra.mxu0 0.0
    %542 = vmatprep.subr.mxu0 0.0
    %543 = vmatpush1.msra.mxu0 0.0
    %544 = vmatprep.subr.mxu0 0.0
    %545 = vmatpush1.msra.mxu0 0.0
    %546 = vmatprep.subr.mxu0 0.0
    %547 = vmatpush1.msra.mxu0 0.0
    %548 = vmatprep.subr.mxu0 0.0
    %549 = vmatpush1.msra.mxu0 0.0
    %550 = vmatprep.subr.mxu0 0.0
    %551 = vmatpush1.msra.mxu0 0.0
    %552 = vmatprep.subr.mxu0 0.0
    %553 = vmatpush1.msra.mxu0 0.0
    %554 = vmatprep.subr.mxu0 0.0
    %555 = vmatpush1.msra.mxu0 0.0
    %556 = vmatprep.subr.mxu0 0.0
    %557 = vmatpush1.msra.mxu0 0.0
    %558 = vmatprep.subr.mxu0 0.0
    %559 = vmatpush1.msra.mxu0 %v437
    %560 = vmatprep.subr.mxu0 0.0
    %561 = vmatpush1.msra.mxu0 %v436
    %562 = vmatprep.subr.mxu0 0.0
    %563 = vmatpush2.msra.mxu0 0.0
    %564 = vmatprep.subr.mxu0 0.0
    %565 = vmatpush2.msra.mxu0 0.0
    %566 = vmatprep.subr.mxu0 0.0
    %567 = vmatpush2.msra.mxu0 0.0
    %568 = vmatprep.subr.mxu0 0.0
    %569 = vmatpush2.msra.mxu0 0.0
    %570 = vmatprep.subr.mxu0 0.0
    %571 = vmatpush2.msra.mxu0 0.0
    %572 = vmatprep.subr.mxu0 0.0
    %573 = vmatpush2.msra.mxu0 0.0
    %574 = vmatprep.subr.mxu0 0.0
    %575 = vmatpush2.msra.mxu0 0.0
    %576 = vmatprep.subr.mxu0 0.0
    %577 = vmatpush2.msra.mxu0 0.0
    %578 = vmatprep.subr.mxu0 0.0
    %579 = vmatpush2.msra.mxu0 0.0
    %580 = vmatprep.subr.mxu0 0.0
    %581 = vmatpush2.msra.mxu0 0.0
    %582 = vmatprep.subr.mxu0 0.0
    %583 = vmatpush2.msra.mxu0 0.0
    %584 = vmatprep.subr.mxu0 0.0
    %585 = vmatpush2.msra.mxu0 0.0
    %586 = vmatprep.subr.mxu0 0.0
    %587 = vmatpush2.msra.mxu0 0.0
    %588 = vmatprep.subr.mxu0 0.0
    %589 = vmatpush2.msra.mxu0 0.0
    %590 = vmatprep.subr.mxu0 0.0
    %591 = vmatpush2.msra.mxu0 0.0
    %592 = vmatprep.subr.mxu0 0.0
    %593 = vmatpush2.msra.mxu0 0.0
    %594 = vmatprep.mubr.f32.mxu0 0.0
    %595 = vmatmul.mubr.f32.gmra.mxu0 %v176
    %v596 = vpop.f32.mrf.mxu0
    %v597 = vadd.f32 0.0, %v596
    %v598 = vpop.f32.mrf.mxu0
    %599 = vmatprep.mubr.f32.mxu0 0.0
    %600 = vmatmul.mubr.f32.gmra.mxu0 %v179
    %v601 = vpop.f32.mrf.mxu0
    %v602 = vadd.f32 0.0, %v601
    %v603 = vpop.f32.mrf.mxu0
    %604 = vdwg.mxu0
    %v605 = vld [vmem:[%s8] sm:$0xff]
    %v606 = vld [vmem:[%s8 + $0x8] sm:$0xff]
    %v607 = vld [vmem:[%s8 + $0x10] sm:$0xff]
    %v608 = vld [vmem:[%s8 + $0x18] sm:$0xff]
    %v609 = vld [vmem:[%s9] sm:$0xff]
    %v610 = vld [vmem:[%s9 + $0x8] sm:$0xff]
    %v611 = vld [vmem:[%s9 + $0x10] sm:$0xff]
    %v612 = vld [vmem:[%s9 + $0x18] sm:$0xff]
    %v614 = vsel %vm264, %v597, 0
    %v617 = vsel %vm264, %v602, 0
    %619 = vmatprep.subr.mxu0 0.0
    %620 = vmatpush1.msra.mxu0 0.0
    %621 = vmatprep.subr.mxu0 0.0
    %622 = vmatpush1.msra.mxu0 0.0
    %623 = vmatprep.subr.mxu0 0.0
    %624 = vmatpush1.msra.mxu0 0.0
    %625 = vmatprep.subr.mxu0 0.0
    %626 = vmatpush1.msra.mxu0 0.0
    %627 = vmatprep.subr.mxu0 0.0
    %628 = vmatpush1.msra.mxu0 0.0
    %629 = vmatprep.subr.mxu0 0.0
    %630 = vmatpush1.msra.mxu0 0.0
    %631 = vmatprep.subr.mxu0 0.0
    %632 = vmatpush1.msra.mxu0 0.0
    %633 = vmatprep.subr.mxu0 0.0
    %634 = vmatpush1.msra.mxu0 0.0
    %635 = vmatprep.subr.mxu0 0.0
    %636 = vmatpush1.msra.mxu0 0.0
    %637 = vmatprep.subr.mxu0 0.0
    %638 = vmatpush1.msra.mxu0 0.0
    %639 = vmatprep.subr.mxu0 0.0
    %640 = vmatpush1.msra.mxu0 0.0
    %641 = vmatprep.subr.mxu0 0.0
    %642 = vmatpush1.msra.mxu0 0.0
    %643 = vmatprep.subr.mxu0 0.0
    %644 = vmatpush1.msra.mxu0 %v612
    %645 = vmatprep.subr.mxu0 0.0
    %646 = vmatpush1.msra.mxu0 %v611
    %647 = vmatprep.subr.mxu0 0.0
    %648 = vmatpush1.msra.mxu0 %v610
    %649 = vmatprep.subr.mxu0 0.0
    %650 = vmatpush1.msra.mxu0 %v609
    %651 = vmatprep.subr.mxu0 0.0
    %652 = vmatpush2.msra.mxu0 0.0
    %653 = vmatprep.subr.mxu0 0.0
    %654 = vmatpush2.msra.mxu0 0.0
    %655 = vmatprep.subr.mxu0 0.0
    %656 = vmatpush2.msra.mxu0 0.0
    %657 = vmatprep.subr.mxu0 0.0
    %658 = vmatpush2.msra.mxu0 0.0
    %659 = vmatprep.subr.mxu0 0.0
    %660 = vmatpush2.msra.mxu0 0.0
    %661 = vmatprep.subr.mxu0 0.0
    %662 = vmatpush2.msra.mxu0 0.0
    %663 = vmatprep.subr.mxu0 0.0
    %664 = vmatpush2.msra.mxu0 0.0
    %665 = vmatprep.subr.mxu0 0.0
    %666 = vmatpush2.msra.mxu0 0.0
    %667 = vmatprep.subr.mxu0 0.0
    %668 = vmatpush2.msra.mxu0 0.0
    %669 = vmatprep.subr.mxu0 0.0
    %670 = vmatpush2.msra.mxu0 0.0
    %671 = vmatprep.subr.mxu0 0.0
    %672 = vmatpush2.msra.mxu0 0.0
    %673 = vmatprep.subr.mxu0 0.0
    %674 = vmatpush2.msra.mxu0 0.0
    %675 = vmatprep.subr.mxu0 0.0
    %676 = vmatpush2.msra.mxu0 0.0
    %677 = vmatprep.subr.mxu0 0.0
    %678 = vmatpush2.msra.mxu0 0.0
    %679 = vmatprep.subr.mxu0 0.0
    %680 = vmatpush2.msra.mxu0 0.0
    %681 = vmatprep.subr.mxu0 0.0
    %682 = vmatpush2.msra.mxu0 0.0
    %683 = vmatprep.mubr.f32.mxu0 0.0
    %684 = vmatmul.mubr.f32.gmra.mxu0 %v614
    %v685 = vpop.f32.mrf.mxu0
    %v686 = vadd.f32 0.0, %v685
    %v687 = vpop.f32.mrf.mxu0
    %688 = vmatprep.mubr.f32.mxu0 0.0
    %689 = vmatmul.mubr.f32.gmra.mxu0 %v617
    %v690 = vpop.f32.mrf.mxu0
    %v691 = vadd.f32 0.0, %v690
    %v692 = vpop.f32.mrf.mxu0
    %693 = vdwg.mxu0
    %694 = vmatprep.subr.mxu0 0.0
    %695 = vmatpush1.msra.mxu0 0.0
    %696 = vmatprep.subr.mxu0 0.0
    %697 = vmatpush1.msra.mxu0 0.0
    %698 = vmatprep.subr.mxu0 0.0
    %699 = vmatpush1.msra.mxu0 0.0
    %700 = vmatprep.subr.mxu0 0.0
    %701 = vmatpush1.msra.mxu0 0.0
    %702 = vmatprep.subr.mxu0 0.0
    %703 = vmatpush1.msra.mxu0 0.0
    %704 = vmatprep.subr.mxu0 0.0
    %705 = vmatpush1.msra.mxu0 0.0
    %706 = vmatprep.subr.mxu0 0.0
    %707 = vmatpush1.msra.mxu0 0.0
    %708 = vmatprep.subr.mxu0 0.0
    %709 = vmatpush1.msra.mxu0 0.0
    %710 = vmatprep.subr.mxu0 0.0
    %711 = vmatpush1.msra.mxu0 0.0
    %712 = vmatprep.subr.mxu0 0.0
    %713 = vmatpush1.msra.mxu0 0.0
    %714 = vmatprep.subr.mxu0 0.0
    %715 = vmatpush1.msra.mxu0 0.0
    %716 = vmatprep.subr.mxu0 0.0
    %717 = vmatpush1.msra.mxu0 0.0
    %718 = vmatprep.subr.mxu0 0.0
    %719 = vmatpush1.msra.mxu0 %v608
    %720 = vmatprep.subr.mxu0 0.0
    %721 = vmatpush1.msra.mxu0 %v607
    %722 = vmatprep.subr.mxu0 0.0
    %723 = vmatpush1.msra.mxu0 %v606
    %724 = vmatprep.subr.mxu0 0.0
    %725 = vmatpush1.msra.mxu0 %v605
    %726 = vmatprep.subr.mxu0 0.0
    %727 = vmatpush2.msra.mxu0 0.0
    %728 = vmatprep.subr.mxu0 0.0
    %729 = vmatpush2.msra.mxu0 0.0
    %730 = vmatprep.subr.mxu0 0.0
    %731 = vmatpush2.msra.mxu0 0.0
    %732 = vmatprep.subr.mxu0 0.0
    %733 = vmatpush2.msra.mxu0 0.0
    %734 = vmatprep.subr.mxu0 0.0
    %735 = vmatpush2.msra.mxu0 0.0
    %736 = vmatprep.subr.mxu0 0.0
    %737 = vmatpush2.msra.mxu0 0.0
    %738 = vmatprep.subr.mxu0 0.0
    %739 = vmatpush2.msra.mxu0 0.0
    %740 = vmatprep.subr.mxu0 0.0
    %741 = vmatpush2.msra.mxu0 0.0
    %742 = vmatprep.subr.mxu0 0.0
    %743 = vmatpush2.msra.mxu0 0.0
    %744 = vmatprep.subr.mxu0 0.0
    %745 = vmatpush2.msra.mxu0 0.0
    %746 = vmatprep.subr.mxu0 0.0
    %747 = vmatpush2.msra.mxu0 0.0
    %748 = vmatprep.subr.mxu0 0.0
    %749 = vmatpush2.msra.mxu0 0.0
    %750 = vmatprep.subr.mxu0 0.0
    %751 = vmatpush2.msra.mxu0 0.0
    %752 = vmatprep.subr.mxu0 0.0
    %753 = vmatpush2.msra.mxu0 0.0
    %754 = vmatprep.subr.mxu0 0.0
    %755 = vmatpush2.msra.mxu0 0.0
    %756 = vmatprep.subr.mxu0 0.0
    %757 = vmatpush2.msra.mxu0 0.0
    %758 = vmatprep.mubr.f32.mxu0 0.0
    %759 = vmatmul.mubr.f32.gmra.mxu0 %v450
    %v760 = vpop.f32.mrf.mxu0
    %v761 = vadd.f32 %v686, %v760
    %v762 = vpop.f32.mrf.mxu0
    %763 = vmatprep.mubr.f32.mxu0 0.0
    %764 = vmatmul.mubr.f32.gmra.mxu0 %v453
    %v765 = vpop.f32.mrf.mxu0
    %v766 = vadd.f32 %v691, %v765
    %v767 = vpop.f32.mrf.mxu0
    %768 = vdwg.mxu0
    %v769 = vld [vmem:[%s10] sm:$0x1]
    %v771 = vlaneseq
    %v772 = vshrl.u32 %v771, 7
    %v773 = vsub.s32 0, %v772
    %v774 = vrot.slane %v769, %v773
    %v776 = vadd.f32 %v761, %v774
    %v777 = vadd.f32 %v766, %v774
    %779 = vset.pattern.permute.xlu0 0
    %780 = vperm.xlu0 %779, %v776
    %v781 = vpop.permute.xlu0 %780
    %784 = vset.pattern.permute.xlu0 0
    %785 = vperm.xlu0 %784, %v777
    %v786 = vpop.permute.xlu0 %785
    %v788 = vmul.f32 %v781, %v76
    %v789 = vmul.f32 %v786, %v77
    %v790 = vsel %vm174, %v788, 0.0
    %v791 = vsel %vm174, %v789, 0.0
    %v792 = vadd.f32 %v790, %v791
    %v793 = vrot.slane %v792, 4
    %v794 = vadd.f32 %v792, %v793
    %v795 = vrot.slane %v794, 2
    %v796 = vadd.f32 %v794, %v795
    %v797 = vrot.slane %v796, 1
    %v798 = vadd.f32 %v796, %v797
    %v799 = vsel %vm174, %v76, 0.0
    %v800 = vsel %vm174, %v77, 0.0
    %v801 = vadd.f32 %v799, %v800
    %v802 = vrot.slane %v801, 4
    %v803 = vadd.f32 %v801, %v802
    %v804 = vrot.slane %v803, 2
    %v805 = vadd.f32 %v803, %v804
    %v806 = vrot.slane %v805, 1
    %v807 = vadd.f32 %v805, %v806
    %vm808 = vcmp.gt.f32.partialorder %v798, %v781
    %vm809 = vcmp.gt.f32.partialorder %v798, %v786
    %vm810 = vcmp.eq.f32.partialorder %v798, %v781
    %vm811 = vcmp.eq.f32.partialorder %v798, %v786
    %vm812 = vcmp.lt.s32.totalorder %v73, %v70
    %vm813 = vcmp.lt.s32.totalorder %v73, %v71
    %vm814 = vmand %vm810, %vm812
    %vm815 = vmand %vm811, %vm813
    %vm816 = vmor %vm808, %vm814
    %vm817 = vmor %vm809, %vm815
    %v818 = vsel %vm816, 1.0, 0.0
    %v819 = vsel %vm817, 1.0, 0.0
    %v820 = vmul.f32 %v818, %v807
    %v821 = vmul.f32 %v819, %v807
    %v822 = vsel %vm174, %v820, 0.0
    %823 = vadd.xlane.f32.xlu0 %v822
    %v824 = vpop.xlane.xlu0 %823
    %v825 = vsel %vm174, %v821, 0.0
    %826 = vadd.xlane.f32.xlu0 %v825
    %v827 = vpop.xlane.xlu0 %826
    %vm828 = vcmp.lt.f32.partialorder %v824, 8.0
    %vm829 = vcmp.lt.f32.partialorder %v827, 8.0
    %vm830 = vcmp.gt.f32.partialorder 1.0, 0.5
    %vm831 = vmand %vm828, %vm830
    %vm832 = vmand %vm829, %vm830
    %v833 = vsel %vm831, 1.0, 0.0
    %v834 = vsel %vm832, 1.0, 0.0
    %v835 = vtanh.pop %v776
    %v836 = vtanh.pop %v777
    %838 = vset.pattern.permute.xlu0 0
    %839 = vperm.xlu0 %838, %v835
    %v840 = vpop.permute.xlu0 %839
    %843 = vset.pattern.permute.xlu0 0
    %844 = vperm.xlu0 %843, %v836
    %v845 = vpop.permute.xlu0 %844
    %v847 = vmul.f32 %v436, %v840
    %v848 = vmul.f32 %v437, %v845
    %v849 = vmul.f32 %v847, %v833
    %v850 = vmul.f32 %v848, %v834
    %v851 = vmul.f32 %v833, %v76
    %v852 = vmul.f32 %v834, %v77
    %v853 = vsel %vm174, %v851, 0.0
    %v854 = vsel %vm174, %v852, 0.0
    %v855 = vadd.f32 %v853, %v854
    %v856 = vrot.slane %v855, 4
    %v857 = vadd.f32 %v855, %v856
    %v858 = vrot.slane %v857, 2
    %v859 = vadd.f32 %v857, %v858
    %v860 = vrot.slane %v859, 1
    %v861 = vadd.f32 %v859, %v860
    %v862 = vmul.f32 %v833, %v861
    %v863 = vmul.f32 %v834, %v861
    %v864 = vmul.f32 %v170, %v862
    %v865 = vmul.f32 %v171, %v863
    %v866 = vmul.f32 %v172, %v862
    %v867 = vmul.f32 %v173, %v863
    %v868 = vadd.f32 %v833, %v834
    %v869 = vrot.slane %v868, 4
    %v870 = vadd.f32 %v868, %v869
    %v871 = vrot.slane %v870, 2
    %v872 = vadd.f32 %v870, %v871
    %v873 = vrot.slane %v872, 1
    %v874 = vadd.f32 %v872, %v873
    %v875 = vmax.f32 %v874, 1.0
    %v876 = vrcp.pop %v875
    %v877 = vsel %vm264, %v849, 0.0
    %v878 = vsel %vm264, %v850, 0.0
    %v879 = vadd.f32 %v877, %v878
    %v880 = vrot.slane %v879, 4
    %v881 = vadd.f32 %v879, %v880
    %v882 = vrot.slane %v881, 2
    %v883 = vadd.f32 %v881, %v882
    %v884 = vrot.slane %v883, 1
    %v885 = vadd.f32 %v883, %v884
    %v886 = vmul.f32 %v885, %v876
    %v887 = vadd.f32 %v886, 0.0
    %vm888 = vcmp.gt.f32.partialorder %v833, 0.5
    %vm889 = vcmp.gt.f32.partialorder %v834, 0.5
    %v890 = vsel %vm888, 1, 0
    %v891 = vsel %vm889, 1, 0
    %vm892 = vcmp.eq.s32.totalorder %v890, 1
    %vm893 = vcmp.eq.s32.totalorder %v891, 1
    %v894 = vsel %vm892, %v849, -1e+30
    %v895 = vsel %vm893, %v850, -1e+30
    %v896 = vsel %vm264, %v894, -inf
    %v897 = vsel %vm264, %v895, -inf
    %v898 = vmax.f32 %v896, %v897
    %v899 = vrot.slane %v898, 4
    %v900 = vmax.f32 %v898, %v899
    %v901 = vrot.slane %v900, 2
    %v902 = vmax.f32 %v900, %v901
    %v903 = vrot.slane %v902, 1
    %v904 = vmax.f32 %v902, %v903
    %v905 = vadd.f32 %v904, 0.0
    %v907 = vsel %vm174, %v866, 0
    %v910 = vsel %vm174, %v867, 0
    %912 = vmatprep.subr.mxu0 0.0
    %913 = vmatpush1.msra.mxu0 0.0
    %914 = vmatprep.subr.mxu0 0.0
    %915 = vmatpush1.msra.mxu0 0.0
    %916 = vmatprep.subr.mxu0 0.0
    %917 = vmatpush1.msra.mxu0 0.0
    %918 = vmatprep.subr.mxu0 0.0
    %919 = vmatpush1.msra.mxu0 0.0
    %920 = vmatprep.subr.mxu0 0.0
    %921 = vmatpush1.msra.mxu0 0.0
    %922 = vmatprep.subr.mxu0 0.0
    %923 = vmatpush1.msra.mxu0 0.0
    %924 = vmatprep.subr.mxu0 0.0
    %925 = vmatpush1.msra.mxu0 0.0
    %926 = vmatprep.subr.mxu0 0.0
    %927 = vmatpush1.msra.mxu0 0.0
    %928 = vmatprep.subr.mxu0 0.0
    %929 = vmatpush1.msra.mxu0 0.0
    %930 = vmatprep.subr.mxu0 0.0
    %931 = vmatpush1.msra.mxu0 0.0
    %932 = vmatprep.subr.mxu0 0.0
    %933 = vmatpush1.msra.mxu0 0.0
    %934 = vmatprep.subr.mxu0 0.0
    %935 = vmatpush1.msra.mxu0 0.0
    %936 = vmatprep.subr.mxu0 0.0
    %937 = vmatpush1.msra.mxu0 0.0
    %938 = vmatprep.subr.mxu0 0.0
    %939 = vmatpush1.msra.mxu0 0.0
    %940 = vmatprep.subr.mxu0 0.0
    %941 = vmatpush1.msra.mxu0 %v850
    %942 = vmatprep.subr.mxu0 0.0
    %943 = vmatpush1.msra.mxu0 %v849
    %944 = vmatprep.subr.mxu0 0.0
    %945 = vmatpush2.msra.mxu0 0.0
    %946 = vmatprep.subr.mxu0 0.0
    %947 = vmatpush2.msra.mxu0 0.0
    %948 = vmatprep.subr.mxu0 0.0
    %949 = vmatpush2.msra.mxu0 0.0
    %950 = vmatprep.subr.mxu0 0.0
    %951 = vmatpush2.msra.mxu0 0.0
    %952 = vmatprep.subr.mxu0 0.0
    %953 = vmatpush2.msra.mxu0 0.0
    %954 = vmatprep.subr.mxu0 0.0
    %955 = vmatpush2.msra.mxu0 0.0
    %956 = vmatprep.subr.mxu0 0.0
    %957 = vmatpush2.msra.mxu0 0.0
    %958 = vmatprep.subr.mxu0 0.0
    %959 = vmatpush2.msra.mxu0 0.0
    %960 = vmatprep.subr.mxu0 0.0
    %961 = vmatpush2.msra.mxu0 0.0
    %962 = vmatprep.subr.mxu0 0.0
    %963 = vmatpush2.msra.mxu0 0.0
    %964 = vmatprep.subr.mxu0 0.0
    %965 = vmatpush2.msra.mxu0 0.0
    %966 = vmatprep.subr.mxu0 0.0
    %967 = vmatpush2.msra.mxu0 0.0
    %968 = vmatprep.subr.mxu0 0.0
    %969 = vmatpush2.msra.mxu0 0.0
    %970 = vmatprep.subr.mxu0 0.0
    %971 = vmatpush2.msra.mxu0 0.0
    %972 = vmatprep.subr.mxu0 0.0
    %973 = vmatpush2.msra.mxu0 0.0
    %974 = vmatprep.subr.mxu0 0.0
    %975 = vmatpush2.msra.mxu0 0.0
    %976 = vmatprep.mubr.f32.mxu0 0.0
    %977 = vmatmul.mubr.f32.gmra.mxu0 %v907
    %v978 = vpop.f32.mrf.mxu0
    %v979 = vadd.f32 0.0, %v978
    %v980 = vpop.f32.mrf.mxu0
    %981 = vmatprep.mubr.f32.mxu0 0.0
    %982 = vmatmul.mubr.f32.gmra.mxu0 %v910
    %v983 = vpop.f32.mrf.mxu0
    %v984 = vadd.f32 0.0, %v983
    %v985 = vpop.f32.mrf.mxu0
    %986 = vdwg.mxu0
    %s987 = scalar_lea.vmem %s5, 32
    %v988 = vld [vmem:[%s987] sm:$0xff]
    %v989 = vld [vmem:[%s987 + $0x8] sm:$0xff]
    %v990 = vld [vmem:[%s987 + $0x10] sm:$0xff]
    %v991 = vld [vmem:[%s987 + $0x18] sm:$0xff]
    %s992 = scalar_lea.vmem %s6, 32
    %v993 = vld [vmem:[%s992] sm:$0xff]
    %v994 = vld [vmem:[%s992 + $0x8] sm:$0xff]
    %v995 = vld [vmem:[%s992 + $0x10] sm:$0xff]
    %v996 = vld [vmem:[%s992 + $0x18] sm:$0xff]
    %v998 = vsel %vm264, %v979, 0
    %v1001 = vsel %vm264, %v984, 0
    %1003 = vmatprep.subr.mxu0 0.0
    %1004 = vmatpush1.msra.mxu0 0.0
    %1005 = vmatprep.subr.mxu0 0.0
    %1006 = vmatpush1.msra.mxu0 0.0
    %1007 = vmatprep.subr.mxu0 0.0
    %1008 = vmatpush1.msra.mxu0 0.0
    %1009 = vmatprep.subr.mxu0 0.0
    %1010 = vmatpush1.msra.mxu0 0.0
    %1011 = vmatprep.subr.mxu0 0.0
    %1012 = vmatpush1.msra.mxu0 0.0
    %1013 = vmatprep.subr.mxu0 0.0
    %1014 = vmatpush1.msra.mxu0 0.0
    %1015 = vmatprep.subr.mxu0 0.0
    %1016 = vmatpush1.msra.mxu0 0.0
    %1017 = vmatprep.subr.mxu0 0.0
    %1018 = vmatpush1.msra.mxu0 0.0
    %1019 = vmatprep.subr.mxu0 0.0
    %1020 = vmatpush1.msra.mxu0 0.0
    %1021 = vmatprep.subr.mxu0 0.0
    %1022 = vmatpush1.msra.mxu0 0.0
    %1023 = vmatprep.subr.mxu0 0.0
    %1024 = vmatpush1.msra.mxu0 0.0
    %1025 = vmatprep.subr.mxu0 0.0
    %1026 = vmatpush1.msra.mxu0 0.0
    %1027 = vmatprep.subr.mxu0 0.0
    %1028 = vmatpush1.msra.mxu0 %v996
    %1029 = vmatprep.subr.mxu0 0.0
    %1030 = vmatpush1.msra.mxu0 %v995
    %1031 = vmatprep.subr.mxu0 0.0
    %1032 = vmatpush1.msra.mxu0 %v994
    %1033 = vmatprep.subr.mxu0 0.0
    %1034 = vmatpush1.msra.mxu0 %v993
    %1035 = vmatprep.subr.mxu0 0.0
    %1036 = vmatpush2.msra.mxu0 0.0
    %1037 = vmatprep.subr.mxu0 0.0
    %1038 = vmatpush2.msra.mxu0 0.0
    %1039 = vmatprep.subr.mxu0 0.0
    %1040 = vmatpush2.msra.mxu0 0.0
    %1041 = vmatprep.subr.mxu0 0.0
    %1042 = vmatpush2.msra.mxu0 0.0
    %1043 = vmatprep.subr.mxu0 0.0
    %1044 = vmatpush2.msra.mxu0 0.0
    %1045 = vmatprep.subr.mxu0 0.0
    %1046 = vmatpush2.msra.mxu0 0.0
    %1047 = vmatprep.subr.mxu0 0.0
    %1048 = vmatpush2.msra.mxu0 0.0
    %1049 = vmatprep.subr.mxu0 0.0
    %1050 = vmatpush2.msra.mxu0 0.0
    %1051 = vmatprep.subr.mxu0 0.0
    %1052 = vmatpush2.msra.mxu0 0.0
    %1053 = vmatprep.subr.mxu0 0.0
    %1054 = vmatpush2.msra.mxu0 0.0
    %1055 = vmatprep.subr.mxu0 0.0
    %1056 = vmatpush2.msra.mxu0 0.0
    %1057 = vmatprep.subr.mxu0 0.0
    %1058 = vmatpush2.msra.mxu0 0.0
    %1059 = vmatprep.subr.mxu0 0.0
    %1060 = vmatpush2.msra.mxu0 0.0
    %1061 = vmatprep.subr.mxu0 0.0
    %1062 = vmatpush2.msra.mxu0 0.0
    %1063 = vmatprep.subr.mxu0 0.0
    %1064 = vmatpush2.msra.mxu0 0.0
    %1065 = vmatprep.subr.mxu0 0.0
    %1066 = vmatpush2.msra.mxu0 0.0
    %1067 = vmatprep.mubr.f32.mxu0 0.0
    %1068 = vmatmul.mubr.f32.gmra.mxu0 %v998
    %v1069 = vpop.f32.mrf.mxu0
    %v1070 = vadd.f32 0.0, %v1069
    %v1071 = vpop.f32.mrf.mxu0
    %1072 = vmatprep.mubr.f32.mxu0 0.0
    %1073 = vmatmul.mubr.f32.gmra.mxu0 %v1001
    %v1074 = vpop.f32.mrf.mxu0
    %v1075 = vadd.f32 0.0, %v1074
    %v1076 = vpop.f32.mrf.mxu0
    %1077 = vdwg.mxu0
    %v1079 = vsel %vm264, %v849, 0
    %v1082 = vsel %vm264, %v850, 0
    %1084 = vmatprep.subr.mxu0 0.0
    %1085 = vmatpush1.msra.mxu0 0.0
    %1086 = vmatprep.subr.mxu0 0.0
    %1087 = vmatpush1.msra.mxu0 0.0
    %1088 = vmatprep.subr.mxu0 0.0
    %1089 = vmatpush1.msra.mxu0 0.0
    %1090 = vmatprep.subr.mxu0 0.0
    %1091 = vmatpush1.msra.mxu0 0.0
    %1092 = vmatprep.subr.mxu0 0.0
    %1093 = vmatpush1.msra.mxu0 0.0
    %1094 = vmatprep.subr.mxu0 0.0
    %1095 = vmatpush1.msra.mxu0 0.0
    %1096 = vmatprep.subr.mxu0 0.0
    %1097 = vmatpush1.msra.mxu0 0.0
    %1098 = vmatprep.subr.mxu0 0.0
    %1099 = vmatpush1.msra.mxu0 0.0
    %1100 = vmatprep.subr.mxu0 0.0
    %1101 = vmatpush1.msra.mxu0 0.0
    %1102 = vmatprep.subr.mxu0 0.0
    %1103 = vmatpush1.msra.mxu0 0.0
    %1104 = vmatprep.subr.mxu0 0.0
    %1105 = vmatpush1.msra.mxu0 0.0
    %1106 = vmatprep.subr.mxu0 0.0
    %1107 = vmatpush1.msra.mxu0 0.0
    %1108 = vmatprep.subr.mxu0 0.0
    %1109 = vmatpush1.msra.mxu0 %v991
    %1110 = vmatprep.subr.mxu0 0.0
    %1111 = vmatpush1.msra.mxu0 %v990
    %1112 = vmatprep.subr.mxu0 0.0
    %1113 = vmatpush1.msra.mxu0 %v989
    %1114 = vmatprep.subr.mxu0 0.0
    %1115 = vmatpush1.msra.mxu0 %v988
    %1116 = vmatprep.subr.mxu0 0.0
    %1117 = vmatpush2.msra.mxu0 0.0
    %1118 = vmatprep.subr.mxu0 0.0
    %1119 = vmatpush2.msra.mxu0 0.0
    %1120 = vmatprep.subr.mxu0 0.0
    %1121 = vmatpush2.msra.mxu0 0.0
    %1122 = vmatprep.subr.mxu0 0.0
    %1123 = vmatpush2.msra.mxu0 0.0
    %1124 = vmatprep.subr.mxu0 0.0
    %1125 = vmatpush2.msra.mxu0 0.0
    %1126 = vmatprep.subr.mxu0 0.0
    %1127 = vmatpush2.msra.mxu0 0.0
    %1128 = vmatprep.subr.mxu0 0.0
    %1129 = vmatpush2.msra.mxu0 0.0
    %1130 = vmatprep.subr.mxu0 0.0
    %1131 = vmatpush2.msra.mxu0 0.0
    %1132 = vmatprep.subr.mxu0 0.0
    %1133 = vmatpush2.msra.mxu0 0.0
    %1134 = vmatprep.subr.mxu0 0.0
    %1135 = vmatpush2.msra.mxu0 0.0
    %1136 = vmatprep.subr.mxu0 0.0
    %1137 = vmatpush2.msra.mxu0 0.0
    %1138 = vmatprep.subr.mxu0 0.0
    %1139 = vmatpush2.msra.mxu0 0.0
    %1140 = vmatprep.subr.mxu0 0.0
    %1141 = vmatpush2.msra.mxu0 0.0
    %1142 = vmatprep.subr.mxu0 0.0
    %1143 = vmatpush2.msra.mxu0 0.0
    %1144 = vmatprep.subr.mxu0 0.0
    %1145 = vmatpush2.msra.mxu0 0.0
    %1146 = vmatprep.subr.mxu0 0.0
    %1147 = vmatpush2.msra.mxu0 0.0
    %1148 = vmatprep.mubr.f32.mxu0 0.0
    %1149 = vmatmul.mubr.f32.gmra.mxu0 %v1079
    %v1150 = vpop.f32.mrf.mxu0
    %v1151 = vadd.f32 %v1070, %v1150
    %v1152 = vpop.f32.mrf.mxu0
    %1153 = vmatprep.mubr.f32.mxu0 0.0
    %1154 = vmatmul.mubr.f32.gmra.mxu0 %v1082
    %v1155 = vpop.f32.mrf.mxu0
    %v1156 = vadd.f32 %v1075, %v1155
    %v1157 = vpop.f32.mrf.mxu0
    %1158 = vdwg.mxu0
    %s1159 = scalar_lea.vmem %s7, 1
    %v1160 = vld [vmem:[%s1159] sm:$0x1]
    %v1162 = vlaneseq
    %v1163 = vshrl.u32 %v1162, 7
    %v1164 = vsub.s32 0, %v1163
    %v1165 = vrot.slane %v1160, %v1164
    %v1167 = vadd.f32 %v1151, %v1165
    %v1168 = vadd.f32 %v1156, %v1165
    %v1169 = vmax.f32 %v1167, 0.0
    %v1170 = vmax.f32 %v1168, 0.0
    %v1172 = vsel %vm174, %v864, 0
    %v1175 = vsel %vm174, %v865, 0
    %1177 = vmatprep.subr.mxu0 0.0
    %1178 = vmatpush1.msra.mxu0 0.0
    %1179 = vmatprep.subr.mxu0 0.0
    %1180 = vmatpush1.msra.mxu0 0.0
    %1181 = vmatprep.subr.mxu0 0.0
    %1182 = vmatpush1.msra.mxu0 0.0
    %1183 = vmatprep.subr.mxu0 0.0
    %1184 = vmatpush1.msra.mxu0 0.0
    %1185 = vmatprep.subr.mxu0 0.0
    %1186 = vmatpush1.msra.mxu0 0.0
    %1187 = vmatprep.subr.mxu0 0.0
    %1188 = vmatpush1.msra.mxu0 0.0
    %1189 = vmatprep.subr.mxu0 0.0
    %1190 = vmatpush1.msra.mxu0 0.0
    %1191 = vmatprep.subr.mxu0 0.0
    %1192 = vmatpush1.msra.mxu0 0.0
    %1193 = vmatprep.subr.mxu0 0.0
    %1194 = vmatpush1.msra.mxu0 0.0
    %1195 = vmatprep.subr.mxu0 0.0
    %1196 = vmatpush1.msra.mxu0 0.0
    %1197 = vmatprep.subr.mxu0 0.0
    %1198 = vmatpush1.msra.mxu0 0.0
    %1199 = vmatprep.subr.mxu0 0.0
    %1200 = vmatpush1.msra.mxu0 0.0
    %1201 = vmatprep.subr.mxu0 0.0
    %1202 = vmatpush1.msra.mxu0 0.0
    %1203 = vmatprep.subr.mxu0 0.0
    %1204 = vmatpush1.msra.mxu0 0.0
    %1205 = vmatprep.subr.mxu0 0.0
    %1206 = vmatpush1.msra.mxu0 %v1170
    %1207 = vmatprep.subr.mxu0 0.0
    %1208 = vmatpush1.msra.mxu0 %v1169
    %1209 = vmatprep.subr.mxu0 0.0
    %1210 = vmatpush2.msra.mxu0 0.0
    %1211 = vmatprep.subr.mxu0 0.0
    %1212 = vmatpush2.msra.mxu0 0.0
    %1213 = vmatprep.subr.mxu0 0.0
    %1214 = vmatpush2.msra.mxu0 0.0
    %1215 = vmatprep.subr.mxu0 0.0
    %1216 = vmatpush2.msra.mxu0 0.0
    %1217 = vmatprep.subr.mxu0 0.0
    %1218 = vmatpush2.msra.mxu0 0.0
    %1219 = vmatprep.subr.mxu0 0.0
    %1220 = vmatpush2.msra.mxu0 0.0
    %1221 = vmatprep.subr.mxu0 0.0
    %1222 = vmatpush2.msra.mxu0 0.0
    %1223 = vmatprep.subr.mxu0 0.0
    %1224 = vmatpush2.msra.mxu0 0.0
    %1225 = vmatprep.subr.mxu0 0.0
    %1226 = vmatpush2.msra.mxu0 0.0
    %1227 = vmatprep.subr.mxu0 0.0
    %1228 = vmatpush2.msra.mxu0 0.0
    %1229 = vmatprep.subr.mxu0 0.0
    %1230 = vmatpush2.msra.mxu0 0.0
    %1231 = vmatprep.subr.mxu0 0.0
    %1232 = vmatpush2.msra.mxu0 0.0
    %1233 = vmatprep.subr.mxu0 0.0
    %1234 = vmatpush2.msra.mxu0 0.0
    %1235 = vmatprep.subr.mxu0 0.0
    %1236 = vmatpush2.msra.mxu0 0.0
    %1237 = vmatprep.subr.mxu0 0.0
    %1238 = vmatpush2.msra.mxu0 0.0
    %1239 = vmatprep.subr.mxu0 0.0
    %1240 = vmatpush2.msra.mxu0 0.0
    %1241 = vmatprep.mubr.f32.mxu0 0.0
    %1242 = vmatmul.mubr.f32.gmra.mxu0 %v1172
    %v1243 = vpop.f32.mrf.mxu0
    %v1244 = vadd.f32 0.0, %v1243
    %v1245 = vpop.f32.mrf.mxu0
    %1246 = vmatprep.mubr.f32.mxu0 0.0
    %1247 = vmatmul.mubr.f32.gmra.mxu0 %v1175
    %v1248 = vpop.f32.mrf.mxu0
    %v1249 = vadd.f32 0.0, %v1248
    %v1250 = vpop.f32.mrf.mxu0
    %1251 = vdwg.mxu0
    %s1252 = scalar_lea.vmem %s8, 32
    %v1253 = vld [vmem:[%s1252] sm:$0xff]
    %v1254 = vld [vmem:[%s1252 + $0x8] sm:$0xff]
    %v1255 = vld [vmem:[%s1252 + $0x10] sm:$0xff]
    %v1256 = vld [vmem:[%s1252 + $0x18] sm:$0xff]
    %s1257 = scalar_lea.vmem %s9, 32
    %v1258 = vld [vmem:[%s1257] sm:$0xff]
    %v1259 = vld [vmem:[%s1257 + $0x8] sm:$0xff]
    %v1260 = vld [vmem:[%s1257 + $0x10] sm:$0xff]
    %v1261 = vld [vmem:[%s1257 + $0x18] sm:$0xff]
    %v1263 = vsel %vm264, %v1244, 0
    %v1266 = vsel %vm264, %v1249, 0
    %1268 = vmatprep.subr.mxu0 0.0
    %1269 = vmatpush1.msra.mxu0 0.0
    %1270 = vmatprep.subr.mxu0 0.0
    %1271 = vmatpush1.msra.mxu0 0.0
    %1272 = vmatprep.subr.mxu0 0.0
    %1273 = vmatpush1.msra.mxu0 0.0
    %1274 = vmatprep.subr.mxu0 0.0
    %1275 = vmatpush1.msra.mxu0 0.0
    %1276 = vmatprep.subr.mxu0 0.0
    %1277 = vmatpush1.msra.mxu0 0.0
    %1278 = vmatprep.subr.mxu0 0.0
    %1279 = vmatpush1.msra.mxu0 0.0
    %1280 = vmatprep.subr.mxu0 0.0
    %1281 = vmatpush1.msra.mxu0 0.0
    %1282 = vmatprep.subr.mxu0 0.0
    %1283 = vmatpush1.msra.mxu0 0.0
    %1284 = vmatprep.subr.mxu0 0.0
    %1285 = vmatpush1.msra.mxu0 0.0
    %1286 = vmatprep.subr.mxu0 0.0
    %1287 = vmatpush1.msra.mxu0 0.0
    %1288 = vmatprep.subr.mxu0 0.0
    %1289 = vmatpush1.msra.mxu0 0.0
    %1290 = vmatprep.subr.mxu0 0.0
    %1291 = vmatpush1.msra.mxu0 0.0
    %1292 = vmatprep.subr.mxu0 0.0
    %1293 = vmatpush1.msra.mxu0 %v1261
    %1294 = vmatprep.subr.mxu0 0.0
    %1295 = vmatpush1.msra.mxu0 %v1260
    %1296 = vmatprep.subr.mxu0 0.0
    %1297 = vmatpush1.msra.mxu0 %v1259
    %1298 = vmatprep.subr.mxu0 0.0
    %1299 = vmatpush1.msra.mxu0 %v1258
    %1300 = vmatprep.subr.mxu0 0.0
    %1301 = vmatpush2.msra.mxu0 0.0
    %1302 = vmatprep.subr.mxu0 0.0
    %1303 = vmatpush2.msra.mxu0 0.0
    %1304 = vmatprep.subr.mxu0 0.0
    %1305 = vmatpush2.msra.mxu0 0.0
    %1306 = vmatprep.subr.mxu0 0.0
    %1307 = vmatpush2.msra.mxu0 0.0
    %1308 = vmatprep.subr.mxu0 0.0
    %1309 = vmatpush2.msra.mxu0 0.0
    %1310 = vmatprep.subr.mxu0 0.0
    %1311 = vmatpush2.msra.mxu0 0.0
    %1312 = vmatprep.subr.mxu0 0.0
    %1313 = vmatpush2.msra.mxu0 0.0
    %1314 = vmatprep.subr.mxu0 0.0
    %1315 = vmatpush2.msra.mxu0 0.0
    %1316 = vmatprep.subr.mxu0 0.0
    %1317 = vmatpush2.msra.mxu0 0.0
    %1318 = vmatprep.subr.mxu0 0.0
    %1319 = vmatpush2.msra.mxu0 0.0
    %1320 = vmatprep.subr.mxu0 0.0
    %1321 = vmatpush2.msra.mxu0 0.0
    %1322 = vmatprep.subr.mxu0 0.0
    %1323 = vmatpush2.msra.mxu0 0.0
    %1324 = vmatprep.subr.mxu0 0.0
    %1325 = vmatpush2.msra.mxu0 0.0
    %1326 = vmatprep.subr.mxu0 0.0
    %1327 = vmatpush2.msra.mxu0 0.0
    %1328 = vmatprep.subr.mxu0 0.0
    %1329 = vmatpush2.msra.mxu0 0.0
    %1330 = vmatprep.subr.mxu0 0.0
    %1331 = vmatpush2.msra.mxu0 0.0
    %1332 = vmatprep.mubr.f32.mxu0 0.0
    %1333 = vmatmul.mubr.f32.gmra.mxu0 %v1263
    %v1334 = vpop.f32.mrf.mxu0
    %v1335 = vadd.f32 0.0, %v1334
    %v1336 = vpop.f32.mrf.mxu0
    %1337 = vmatprep.mubr.f32.mxu0 0.0
    %1338 = vmatmul.mubr.f32.gmra.mxu0 %v1266
    %v1339 = vpop.f32.mrf.mxu0
    %v1340 = vadd.f32 0.0, %v1339
    %v1341 = vpop.f32.mrf.mxu0
    %1342 = vdwg.mxu0
    %v1344 = vsel %vm264, %v1169, 0
    %v1347 = vsel %vm264, %v1170, 0
    %1349 = vmatprep.subr.mxu0 0.0
    %1350 = vmatpush1.msra.mxu0 0.0
    %1351 = vmatprep.subr.mxu0 0.0
    %1352 = vmatpush1.msra.mxu0 0.0
    %1353 = vmatprep.subr.mxu0 0.0
    %1354 = vmatpush1.msra.mxu0 0.0
    %1355 = vmatprep.subr.mxu0 0.0
    %1356 = vmatpush1.msra.mxu0 0.0
    %1357 = vmatprep.subr.mxu0 0.0
    %1358 = vmatpush1.msra.mxu0 0.0
    %1359 = vmatprep.subr.mxu0 0.0
    %1360 = vmatpush1.msra.mxu0 0.0
    %1361 = vmatprep.subr.mxu0 0.0
    %1362 = vmatpush1.msra.mxu0 0.0
    %1363 = vmatprep.subr.mxu0 0.0
    %1364 = vmatpush1.msra.mxu0 0.0
    %1365 = vmatprep.subr.mxu0 0.0
    %1366 = vmatpush1.msra.mxu0 0.0
    %1367 = vmatprep.subr.mxu0 0.0
    %1368 = vmatpush1.msra.mxu0 0.0
    %1369 = vmatprep.subr.mxu0 0.0
    %1370 = vmatpush1.msra.mxu0 0.0
    %1371 = vmatprep.subr.mxu0 0.0
    %1372 = vmatpush1.msra.mxu0 0.0
    %1373 = vmatprep.subr.mxu0 0.0
    %1374 = vmatpush1.msra.mxu0 %v1256
    %1375 = vmatprep.subr.mxu0 0.0
    %1376 = vmatpush1.msra.mxu0 %v1255
    %1377 = vmatprep.subr.mxu0 0.0
    %1378 = vmatpush1.msra.mxu0 %v1254
    %1379 = vmatprep.subr.mxu0 0.0
    %1380 = vmatpush1.msra.mxu0 %v1253
    %1381 = vmatprep.subr.mxu0 0.0
    %1382 = vmatpush2.msra.mxu0 0.0
    %1383 = vmatprep.subr.mxu0 0.0
    %1384 = vmatpush2.msra.mxu0 0.0
    %1385 = vmatprep.subr.mxu0 0.0
    %1386 = vmatpush2.msra.mxu0 0.0
    %1387 = vmatprep.subr.mxu0 0.0
    %1388 = vmatpush2.msra.mxu0 0.0
    %1389 = vmatprep.subr.mxu0 0.0
    %1390 = vmatpush2.msra.mxu0 0.0
    %1391 = vmatprep.subr.mxu0 0.0
    %1392 = vmatpush2.msra.mxu0 0.0
    %1393 = vmatprep.subr.mxu0 0.0
    %1394 = vmatpush2.msra.mxu0 0.0
    %1395 = vmatprep.subr.mxu0 0.0
    %1396 = vmatpush2.msra.mxu0 0.0
    %1397 = vmatprep.subr.mxu0 0.0
    %1398 = vmatpush2.msra.mxu0 0.0
    %1399 = vmatprep.subr.mxu0 0.0
    %1400 = vmatpush2.msra.mxu0 0.0
    %1401 = vmatprep.subr.mxu0 0.0
    %1402 = vmatpush2.msra.mxu0 0.0
    %1403 = vmatprep.subr.mxu0 0.0
    %1404 = vmatpush2.msra.mxu0 0.0
    %1405 = vmatprep.subr.mxu0 0.0
    %1406 = vmatpush2.msra.mxu0 0.0
    %1407 = vmatprep.subr.mxu0 0.0
    %1408 = vmatpush2.msra.mxu0 0.0
    %1409 = vmatprep.subr.mxu0 0.0
    %1410 = vmatpush2.msra.mxu0 0.0
    %1411 = vmatprep.subr.mxu0 0.0
    %1412 = vmatpush2.msra.mxu0 0.0
    %1413 = vmatprep.mubr.f32.mxu0 0.0
    %1414 = vmatmul.mubr.f32.gmra.mxu0 %v1344
    %v1415 = vpop.f32.mrf.mxu0
    %v1416 = vadd.f32 %v1335, %v1415
    %v1417 = vpop.f32.mrf.mxu0
    %1418 = vmatprep.mubr.f32.mxu0 0.0
    %1419 = vmatmul.mubr.f32.gmra.mxu0 %v1347
    %v1420 = vpop.f32.mrf.mxu0
    %v1421 = vadd.f32 %v1340, %v1420
    %v1422 = vpop.f32.mrf.mxu0
    %1423 = vdwg.mxu0
    %s1424 = scalar_lea.vmem %s10, 1
    %v1425 = vld [vmem:[%s1424] sm:$0x1]
    %v1427 = vlaneseq
    %v1428 = vshrl.u32 %v1427, 7
    %v1429 = vsub.s32 0, %v1428
    %v1430 = vrot.slane %v1425, %v1429
    %v1432 = vadd.f32 %v1416, %v1430
    %v1433 = vadd.f32 %v1421, %v1430
    %1435 = vset.pattern.permute.xlu0 0
    %1436 = vperm.xlu0 %1435, %v1432
    %v1437 = vpop.permute.xlu0 %1436
    %1440 = vset.pattern.permute.xlu0 0
    %1441 = vperm.xlu0 %1440, %v1433
    %v1442 = vpop.permute.xlu0 %1441
    %v1444 = vmul.f32 %v1437, %v76
    %v1445 = vmul.f32 %v1442, %v77
    %v1446 = vsel %vm174, %v1444, 0.0
    %v1447 = vsel %vm174, %v1445, 0.0
    %v1448 = vadd.f32 %v1446, %v1447
    %v1449 = vrot.slane %v1448, 4
    %v1450 = vadd.f32 %v1448, %v1449
    %v1451 = vrot.slane %v1450, 2
    %v1452 = vadd.f32 %v1450, %v1451
    %v1453 = vrot.slane %v1452, 1
    %v1454 = vadd.f32 %v1452, %v1453
    %vm1455 = vcmp.gt.f32.partialorder %v1454, %v1437
    %vm1456 = vcmp.gt.f32.partialorder %v1454, %v1442
    %vm1457 = vcmp.eq.f32.partialorder %v1454, %v1437
    %vm1458 = vcmp.eq.f32.partialorder %v1454, %v1442
    %vm1459 = vmand %vm1457, %vm812
    %vm1460 = vmand %vm1458, %vm813
    %vm1461 = vmor %vm1455, %vm1459
    %vm1462 = vmor %vm1456, %vm1460
    %v1463 = vsel %vm1461, 1.0, 0.0
    %v1464 = vsel %vm1462, 1.0, 0.0
    %v1465 = vmul.f32 %v1463, %v861
    %v1466 = vmul.f32 %v1464, %v861
    %v1467 = vsel %vm174, %v1465, 0.0
    %1468 = vadd.xlane.f32.xlu0 %v1467
    %v1469 = vpop.xlane.xlu0 %1468
    %v1470 = vsel %vm174, %v1466, 0.0
    %1471 = vadd.xlane.f32.xlu0 %v1470
    %v1472 = vpop.xlane.xlu0 %1471
    %vm1473 = vcmp.lt.f32.partialorder %v1469, 4.0
    %vm1474 = vcmp.lt.f32.partialorder %v1472, 4.0
    %vm1475 = vmand %vm1473, %vm888
    %vm1476 = vmand %vm1474, %vm889
    %v1477 = vsel %vm1475, 1.0, 0.0
    %v1478 = vsel %vm1476, 1.0, 0.0
    %v1479 = vtanh.pop %v1432
    %v1480 = vtanh.pop %v1433
    %1482 = vset.pattern.permute.xlu0 0
    %1483 = vperm.xlu0 %1482, %v1479
    %v1484 = vpop.permute.xlu0 %1483
    %1487 = vset.pattern.permute.xlu0 0
    %1488 = vperm.xlu0 %1487, %v1480
    %v1489 = vpop.permute.xlu0 %1488
    %v1491 = vmul.f32 %v1169, %v1484
    %v1492 = vmul.f32 %v1170, %v1489
    %v1493 = vmul.f32 %v1491, %v1477
    %v1494 = vmul.f32 %v1492, %v1478
    %v1495 = vmul.f32 %v1477, %v76
    %v1496 = vmul.f32 %v1478, %v77
    %v1497 = vsel %vm174, %v1495, 0.0
    %v1498 = vsel %vm174, %v1496, 0.0
    %v1499 = vadd.f32 %v1497, %v1498
    %v1500 = vrot.slane %v1499, 4
    %v1501 = vadd.f32 %v1499, %v1500
    %v1502 = vrot.slane %v1501, 2
    %v1503 = vadd.f32 %v1501, %v1502
    %v1504 = vrot.slane %v1503, 1
    %v1505 = vadd.f32 %v1503, %v1504
    %v1506 = vmul.f32 %v1477, %v1505
    %v1507 = vmul.f32 %v1478, %v1505
    %v1508 = vmul.f32 %v864, %v1506
    %v1509 = vmul.f32 %v865, %v1507
    %v1510 = vmul.f32 %v866, %v1506
    %v1511 = vmul.f32 %v867, %v1507
    %v1512 = vadd.f32 %v1477, %v1478
    %v1513 = vrot.slane %v1512, 4
    %v1514 = vadd.f32 %v1512, %v1513
    %v1515 = vrot.slane %v1514, 2
    %v1516 = vadd.f32 %v1514, %v1515
    %v1517 = vrot.slane %v1516, 1
    %v1518 = vadd.f32 %v1516, %v1517
    %v1519 = vmax.f32 %v1518, 1.0
    %v1520 = vrcp.pop %v1519
    %v1521 = vsel %vm264, %v1493, 0.0
    %v1522 = vsel %vm264, %v1494, 0.0
    %v1523 = vadd.f32 %v1521, %v1522
    %v1524 = vrot.slane %v1523, 4
    %v1525 = vadd.f32 %v1523, %v1524
    %v1526 = vrot.slane %v1525, 2
    %v1527 = vadd.f32 %v1525, %v1526
    %v1528 = vrot.slane %v1527, 1
    %v1529 = vadd.f32 %v1527, %v1528
    %v1530 = vmul.f32 %v1529, %v1520
    %v1531 = vadd.f32 %v887, %v1530
    %vm1532 = vcmp.gt.f32.partialorder %v1477, 0.5
    %vm1533 = vcmp.gt.f32.partialorder %v1478, 0.5
    %v1534 = vsel %vm1532, 1, 0
    %v1535 = vsel %vm1533, 1, 0
    %vm1536 = vcmp.eq.s32.totalorder %v1534, 1
    %vm1537 = vcmp.eq.s32.totalorder %v1535, 1
    %v1538 = vsel %vm1536, %v1493, -1e+30
    %v1539 = vsel %vm1537, %v1494, -1e+30
    %v1540 = vsel %vm264, %v1538, -inf
    %v1541 = vsel %vm264, %v1539, -inf
    %v1542 = vmax.f32 %v1540, %v1541
    %v1543 = vrot.slane %v1542, 4
    %v1544 = vmax.f32 %v1542, %v1543
    %v1545 = vrot.slane %v1544, 2
    %v1546 = vmax.f32 %v1544, %v1545
    %v1547 = vrot.slane %v1546, 1
    %v1548 = vmax.f32 %v1546, %v1547
    %v1549 = vadd.f32 %v905, %v1548
    %v1551 = vsel %vm174, %v1508, 0
    %v1554 = vsel %vm174, %v1509, 0
    %1556 = vmatprep.subr.mxu0 0.0
    %1557 = vmatpush1.msra.mxu0 0.0
    %1558 = vmatprep.subr.mxu0 0.0
    %1559 = vmatpush1.msra.mxu0 0.0
    %1560 = vmatprep.subr.mxu0 0.0
    %1561 = vmatpush1.msra.mxu0 0.0
    %1562 = vmatprep.subr.mxu0 0.0
    %1563 = vmatpush1.msra.mxu0 0.0
    %1564 = vmatprep.subr.mxu0 0.0
    %1565 = vmatpush1.msra.mxu0 0.0
    %1566 = vmatprep.subr.mxu0 0.0
    %1567 = vmatpush1.msra.mxu0 0.0
    %1568 = vmatprep.subr.mxu0 0.0
    %1569 = vmatpush1.msra.mxu0 0.0
    %1570 = vmatprep.subr.mxu0 0.0
    %1571 = vmatpush1.msra.mxu0 0.0
    %1572 = vmatprep.subr.mxu0 0.0
    %1573 = vmatpush1.msra.mxu0 0.0
    %1574 = vmatprep.subr.mxu0 0.0
    %1575 = vmatpush1.msra.mxu0 0.0
    %1576 = vmatprep.subr.mxu0 0.0
    %1577 = vmatpush1.msra.mxu0 0.0
    %1578 = vmatprep.subr.mxu0 0.0
    %1579 = vmatpush1.msra.mxu0 0.0
    %1580 = vmatprep.subr.mxu0 0.0
    %1581 = vmatpush1.msra.mxu0 0.0
    %1582 = vmatprep.subr.mxu0 0.0
    %1583 = vmatpush1.msra.mxu0 0.0
    %1584 = vmatprep.subr.mxu0 0.0
    %1585 = vmatpush1.msra.mxu0 %v1494
    %1586 = vmatprep.subr.mxu0 0.0
    %1587 = vmatpush1.msra.mxu0 %v1493
    %1588 = vmatprep.subr.mxu0 0.0
    %1589 = vmatpush2.msra.mxu0 0.0
    %1590 = vmatprep.subr.mxu0 0.0
    %1591 = vmatpush2.msra.mxu0 0.0
    %1592 = vmatprep.subr.mxu0 0.0
    %1593 = vmatpush2.msra.mxu0 0.0
    %1594 = vmatprep.subr.mxu0 0.0
    %1595 = vmatpush2.msra.mxu0 0.0
    %1596 = vmatprep.subr.mxu0 0.0
    %1597 = vmatpush2.msra.mxu0 0.0
    %1598 = vmatprep.subr.mxu0 0.0
    %1599 = vmatpush2.msra.mxu0 0.0
    %1600 = vmatprep.subr.mxu0 0.0
    %1601 = vmatpush2.msra.mxu0 0.0
    %1602 = vmatprep.subr.mxu0 0.0
    %1603 = vmatpush2.msra.mxu0 0.0
    %1604 = vmatprep.subr.mxu0 0.0
    %1605 = vmatpush2.msra.mxu0 0.0
    %1606 = vmatprep.subr.mxu0 0.0
    %1607 = vmatpush2.msra.mxu0 0.0
    %1608 = vmatprep.subr.mxu0 0.0
    %1609 = vmatpush2.msra.mxu0 0.0
    %1610 = vmatprep.subr.mxu0 0.0
    %1611 = vmatpush2.msra.mxu0 0.0
    %1612 = vmatprep.subr.mxu0 0.0
    %1613 = vmatpush2.msra.mxu0 0.0
    %1614 = vmatprep.subr.mxu0 0.0
    %1615 = vmatpush2.msra.mxu0 0.0
    %1616 = vmatprep.subr.mxu0 0.0
    %1617 = vmatpush2.msra.mxu0 0.0
    %1618 = vmatprep.subr.mxu0 0.0
    %1619 = vmatpush2.msra.mxu0 0.0
    %1620 = vmatprep.mubr.f32.mxu0 0.0
    %1621 = vmatmul.mubr.f32.gmra.mxu0 %v1551
    %v1622 = vpop.f32.mrf.mxu0
    %v1623 = vadd.f32 0.0, %v1622
    %v1624 = vpop.f32.mrf.mxu0
    %1625 = vmatprep.mubr.f32.mxu0 0.0
    %1626 = vmatmul.mubr.f32.gmra.mxu0 %v1554
    %v1627 = vpop.f32.mrf.mxu0
    %v1628 = vadd.f32 0.0, %v1627
    %v1629 = vpop.f32.mrf.mxu0
    %1630 = vdwg.mxu0
    %s1631 = scalar_lea.vmem %s5, 64
    %v1632 = vld [vmem:[%s1631] sm:$0xff]
    %v1633 = vld [vmem:[%s1631 + $0x8] sm:$0xff]
    %v1634 = vld [vmem:[%s1631 + $0x10] sm:$0xff]
    %v1635 = vld [vmem:[%s1631 + $0x18] sm:$0xff]
    %s1636 = scalar_lea.vmem %s6, 64
    %v1637 = vld [vmem:[%s1636] sm:$0xff]
    %v1638 = vld [vmem:[%s1636 + $0x8] sm:$0xff]
    %v1639 = vld [vmem:[%s1636 + $0x10] sm:$0xff]
    %v1640 = vld [vmem:[%s1636 + $0x18] sm:$0xff]
    %v1642 = vsel %vm264, %v1623, 0
    %v1645 = vsel %vm264, %v1628, 0
    %1647 = vmatprep.subr.mxu0 0.0
    %1648 = vmatpush1.msra.mxu0 0.0
    %1649 = vmatprep.subr.mxu0 0.0
    %1650 = vmatpush1.msra.mxu0 0.0
    %1651 = vmatprep.subr.mxu0 0.0
    %1652 = vmatpush1.msra.mxu0 0.0
    %1653 = vmatprep.subr.mxu0 0.0
    %1654 = vmatpush1.msra.mxu0 0.0
    %1655 = vmatprep.subr.mxu0 0.0
    %1656 = vmatpush1.msra.mxu0 0.0
    %1657 = vmatprep.subr.mxu0 0.0
    %1658 = vmatpush1.msra.mxu0 0.0
    %1659 = vmatprep.subr.mxu0 0.0
    %1660 = vmatpush1.msra.mxu0 0.0
    %1661 = vmatprep.subr.mxu0 0.0
    %1662 = vmatpush1.msra.mxu0 0.0
    %1663 = vmatprep.subr.mxu0 0.0
    %1664 = vmatpush1.msra.mxu0 0.0
    %1665 = vmatprep.subr.mxu0 0.0
    %1666 = vmatpush1.msra.mxu0 0.0
    %1667 = vmatprep.subr.mxu0 0.0
    %1668 = vmatpush1.msra.mxu0 0.0
    %1669 = vmatprep.subr.mxu0 0.0
    %1670 = vmatpush1.msra.mxu0 0.0
    %1671 = vmatprep.subr.mxu0 0.0
    %1672 = vmatpush1.msra.mxu0 %v1640
    %1673 = vmatprep.subr.mxu0 0.0
    %1674 = vmatpush1.msra.mxu0 %v1639
    %1675 = vmatprep.subr.mxu0 0.0
    %1676 = vmatpush1.msra.mxu0 %v1638
    %1677 = vmatprep.subr.mxu0 0.0
    %1678 = vmatpush1.msra.mxu0 %v1637
    %1679 = vmatprep.subr.mxu0 0.0
    %1680 = vmatpush2.msra.mxu0 0.0
    %1681 = vmatprep.subr.mxu0 0.0
    %1682 = vmatpush2.msra.mxu0 0.0
    %1683 = vmatprep.subr.mxu0 0.0
    %1684 = vmatpush2.msra.mxu0 0.0
    %1685 = vmatprep.subr.mxu0 0.0
    %1686 = vmatpush2.msra.mxu0 0.0
    %1687 = vmatprep.subr.mxu0 0.0
    %1688 = vmatpush2.msra.mxu0 0.0
    %1689 = vmatprep.subr.mxu0 0.0
    %1690 = vmatpush2.msra.mxu0 0.0
    %1691 = vmatprep.subr.mxu0 0.0
    %1692 = vmatpush2.msra.mxu0 0.0
    %1693 = vmatprep.subr.mxu0 0.0
    %1694 = vmatpush2.msra.mxu0 0.0
    %1695 = vmatprep.subr.mxu0 0.0
    %1696 = vmatpush2.msra.mxu0 0.0
    %1697 = vmatprep.subr.mxu0 0.0
    %1698 = vmatpush2.msra.mxu0 0.0
    %1699 = vmatprep.subr.mxu0 0.0
    %1700 = vmatpush2.msra.mxu0 0.0
    %1701 = vmatprep.subr.mxu0 0.0
    %1702 = vmatpush2.msra.mxu0 0.0
    %1703 = vmatprep.subr.mxu0 0.0
    %1704 = vmatpush2.msra.mxu0 0.0
    %1705 = vmatprep.subr.mxu0 0.0
    %1706 = vmatpush2.msra.mxu0 0.0
    %1707 = vmatprep.subr.mxu0 0.0
    %1708 = vmatpush2.msra.mxu0 0.0
    %1709 = vmatprep.subr.mxu0 0.0
    %1710 = vmatpush2.msra.mxu0 0.0
    %1711 = vmatprep.mubr.f32.mxu0 0.0
    %1712 = vmatmul.mubr.f32.gmra.mxu0 %v1642
    %v1713 = vpop.f32.mrf.mxu0
    %v1714 = vadd.f32 0.0, %v1713
    %v1715 = vpop.f32.mrf.mxu0
    %1716 = vmatprep.mubr.f32.mxu0 0.0
    %1717 = vmatmul.mubr.f32.gmra.mxu0 %v1645
    %v1718 = vpop.f32.mrf.mxu0
    %v1719 = vadd.f32 0.0, %v1718
    %v1720 = vpop.f32.mrf.mxu0
    %1721 = vdwg.mxu0
    %v1723 = vsel %vm264, %v1493, 0
    %v1726 = vsel %vm264, %v1494, 0
    %1728 = vmatprep.subr.mxu0 0.0
    %1729 = vmatpush1.msra.mxu0 0.0
    %1730 = vmatprep.subr.mxu0 0.0
    %1731 = vmatpush1.msra.mxu0 0.0
    %1732 = vmatprep.subr.mxu0 0.0
    %1733 = vmatpush1.msra.mxu0 0.0
    %1734 = vmatprep.subr.mxu0 0.0
    %1735 = vmatpush1.msra.mxu0 0.0
    %1736 = vmatprep.subr.mxu0 0.0
    %1737 = vmatpush1.msra.mxu0 0.0
    %1738 = vmatprep.subr.mxu0 0.0
    %1739 = vmatpush1.msra.mxu0 0.0
    %1740 = vmatprep.subr.mxu0 0.0
    %1741 = vmatpush1.msra.mxu0 0.0
    %1742 = vmatprep.subr.mxu0 0.0
    %1743 = vmatpush1.msra.mxu0 0.0
    %1744 = vmatprep.subr.mxu0 0.0
    %1745 = vmatpush1.msra.mxu0 0.0
    %1746 = vmatprep.subr.mxu0 0.0
    %1747 = vmatpush1.msra.mxu0 0.0
    %1748 = vmatprep.subr.mxu0 0.0
    %1749 = vmatpush1.msra.mxu0 0.0
    %1750 = vmatprep.subr.mxu0 0.0
    %1751 = vmatpush1.msra.mxu0 0.0
    %1752 = vmatprep.subr.mxu0 0.0
    %1753 = vmatpush1.msra.mxu0 %v1635
    %1754 = vmatprep.subr.mxu0 0.0
    %1755 = vmatpush1.msra.mxu0 %v1634
    %1756 = vmatprep.subr.mxu0 0.0
    %1757 = vmatpush1.msra.mxu0 %v1633
    %1758 = vmatprep.subr.mxu0 0.0
    %1759 = vmatpush1.msra.mxu0 %v1632
    %1760 = vmatprep.subr.mxu0 0.0
    %1761 = vmatpush2.msra.mxu0 0.0
    %1762 = vmatprep.subr.mxu0 0.0
    %1763 = vmatpush2.msra.mxu0 0.0
    %1764 = vmatprep.subr.mxu0 0.0
    %1765 = vmatpush2.msra.mxu0 0.0
    %1766 = vmatprep.subr.mxu0 0.0
    %1767 = vmatpush2.msra.mxu0 0.0
    %1768 = vmatprep.subr.mxu0 0.0
    %1769 = vmatpush2.msra.mxu0 0.0
    %1770 = vmatprep.subr.mxu0 0.0
    %1771 = vmatpush2.msra.mxu0 0.0
    %1772 = vmatprep.subr.mxu0 0.0
    %1773 = vmatpush2.msra.mxu0 0.0
    %1774 = vmatprep.subr.mxu0 0.0
    %1775 = vmatpush2.msra.mxu0 0.0
    %1776 = vmatprep.subr.mxu0 0.0
    %1777 = vmatpush2.msra.mxu0 0.0
    %1778 = vmatprep.subr.mxu0 0.0
    %1779 = vmatpush2.msra.mxu0 0.0
    %1780 = vmatprep.subr.mxu0 0.0
    %1781 = vmatpush2.msra.mxu0 0.0
    %1782 = vmatprep.subr.mxu0 0.0
    %1783 = vmatpush2.msra.mxu0 0.0
    %1784 = vmatprep.subr.mxu0 0.0
    %1785 = vmatpush2.msra.mxu0 0.0
    %1786 = vmatprep.subr.mxu0 0.0
    %1787 = vmatpush2.msra.mxu0 0.0
    %1788 = vmatprep.subr.mxu0 0.0
    %1789 = vmatpush2.msra.mxu0 0.0
    %1790 = vmatprep.subr.mxu0 0.0
    %1791 = vmatpush2.msra.mxu0 0.0
    %1792 = vmatprep.mubr.f32.mxu0 0.0
    %1793 = vmatmul.mubr.f32.gmra.mxu0 %v1723
    %v1794 = vpop.f32.mrf.mxu0
    %v1795 = vadd.f32 %v1714, %v1794
    %v1796 = vpop.f32.mrf.mxu0
    %1797 = vmatprep.mubr.f32.mxu0 0.0
    %1798 = vmatmul.mubr.f32.gmra.mxu0 %v1726
    %v1799 = vpop.f32.mrf.mxu0
    %v1800 = vadd.f32 %v1719, %v1799
    %v1801 = vpop.f32.mrf.mxu0
    %1802 = vdwg.mxu0
    %s1803 = scalar_lea.vmem %s7, 2
    %v1804 = vld [vmem:[%s1803] sm:$0x1]
    %v1806 = vlaneseq
    %v1807 = vshrl.u32 %v1806, 7
    %v1808 = vsub.s32 0, %v1807
    %v1809 = vrot.slane %v1804, %v1808
    %v1811 = vadd.f32 %v1795, %v1809
    %v1812 = vadd.f32 %v1800, %v1809
    %v1813 = vmax.f32 %v1811, 0.0
    %v1814 = vmax.f32 %v1812, 0.0
    %1815 = vmatprep.subr.mxu0 0.0
    %1816 = vmatpush1.msra.mxu0 0.0
    %1817 = vmatprep.subr.mxu0 0.0
    %1818 = vmatpush1.msra.mxu0 0.0
    %1819 = vmatprep.subr.mxu0 0.0
    %1820 = vmatpush1.msra.mxu0 0.0
    %1821 = vmatprep.subr.mxu0 0.0
    %1822 = vmatpush1.msra.mxu0 0.0
    %1823 = vmatprep.subr.mxu0 0.0
    %1824 = vmatpush1.msra.mxu0 0.0
    %1825 = vmatprep.subr.mxu0 0.0
    %1826 = vmatpush1.msra.mxu0 0.0
    %1827 = vmatprep.subr.mxu0 0.0
    %1828 = vmatpush1.msra.mxu0 0.0
    %1829 = vmatprep.subr.mxu0 0.0
    %1830 = vmatpush1.msra.mxu0 0.0
    %1831 = vmatprep.subr.mxu0 0.0
    %1832 = vmatpush1.msra.mxu0 0.0
    %1833 = vmatprep.subr.mxu0 0.0
    %1834 = vmatpush1.msra.mxu0 0.0
    %1835 = vmatprep.subr.mxu0 0.0
    %1836 = vmatpush1.msra.mxu0 0.0
    %1837 = vmatprep.subr.mxu0 0.0
    %1838 = vmatpush1.msra.mxu0 0.0
    %1839 = vmatprep.subr.mxu0 0.0
    %1840 = vmatpush1.msra.mxu0 0.0
    %1841 = vmatprep.subr.mxu0 0.0
    %1842 = vmatpush1.msra.mxu0 0.0
    %1843 = vmatprep.subr.mxu0 0.0
    %1844 = vmatpush1.msra.mxu0 %v1814
    %1845 = vmatprep.subr.mxu0 0.0
    %1846 = vmatpush1.msra.mxu0 %v1813
    %1847 = vmatprep.subr.mxu0 0.0
    %1848 = vmatpush2.msra.mxu0 0.0
    %1849 = vmatprep.subr.mxu0 0.0
    %1850 = vmatpush2.msra.mxu0 0.0
    %1851 = vmatprep.subr.mxu0 0.0
    %1852 = vmatpush2.msra.mxu0 0.0
    %1853 = vmatprep.subr.mxu0 0.0
    %1854 = vmatpush2.msra.mxu0 0.0
    %1855 = vmatprep.subr.mxu0 0.0
    %1856 = vmatpush2.msra.mxu0 0.0
    %1857 = vmatprep.subr.mxu0 0.0
    %1858 = vmatpush2.msra.mxu0 0.0
    %1859 = vmatprep.subr.mxu0 0.0
    %1860 = vmatpush2.msra.mxu0 0.0
    %1861 = vmatprep.subr.mxu0 0.0
    %1862 = vmatpush2.msra.mxu0 0.0
    %1863 = vmatprep.subr.mxu0 0.0
    %1864 = vmatpush2.msra.mxu0 0.0
    %1865 = vmatprep.subr.mxu0 0.0
    %1866 = vmatpush2.msra.mxu0 0.0
    %1867 = vmatprep.subr.mxu0 0.0
    %1868 = vmatpush2.msra.mxu0 0.0
    %1869 = vmatprep.subr.mxu0 0.0
    %1870 = vmatpush2.msra.mxu0 0.0
    %1871 = vmatprep.subr.mxu0 0.0
    %1872 = vmatpush2.msra.mxu0 0.0
    %1873 = vmatprep.subr.mxu0 0.0
    %1874 = vmatpush2.msra.mxu0 0.0
    %1875 = vmatprep.subr.mxu0 0.0
    %1876 = vmatpush2.msra.mxu0 0.0
    %1877 = vmatprep.subr.mxu0 0.0
    %1878 = vmatpush2.msra.mxu0 0.0
    %1879 = vmatprep.mubr.f32.mxu0 0.0
    %1880 = vmatmul.mubr.f32.gmra.mxu0 %v1551
    %v1881 = vpop.f32.mrf.mxu0
    %v1882 = vadd.f32 0.0, %v1881
    %v1883 = vpop.f32.mrf.mxu0
    %1884 = vmatprep.mubr.f32.mxu0 0.0
    %1885 = vmatmul.mubr.f32.gmra.mxu0 %v1554
    %v1886 = vpop.f32.mrf.mxu0
    %v1887 = vadd.f32 0.0, %v1886
    %v1888 = vpop.f32.mrf.mxu0
    %1889 = vdwg.mxu0
    %s1890 = scalar_lea.vmem %s8, 64
    %v1891 = vld [vmem:[%s1890] sm:$0xff]
    %v1892 = vld [vmem:[%s1890 + $0x8] sm:$0xff]
    %v1893 = vld [vmem:[%s1890 + $0x10] sm:$0xff]
    %v1894 = vld [vmem:[%s1890 + $0x18] sm:$0xff]
    %s1895 = scalar_lea.vmem %s9, 64
    %v1896 = vld [vmem:[%s1895] sm:$0xff]
    %v1897 = vld [vmem:[%s1895 + $0x8] sm:$0xff]
    %v1898 = vld [vmem:[%s1895 + $0x10] sm:$0xff]
    %v1899 = vld [vmem:[%s1895 + $0x18] sm:$0xff]
    %v1901 = vsel %vm264, %v1882, 0
    %v1904 = vsel %vm264, %v1887, 0
    %1906 = vmatprep.subr.mxu0 0.0
    %1907 = vmatpush1.msra.mxu0 0.0
    %1908 = vmatprep.subr.mxu0 0.0
    %1909 = vmatpush1.msra.mxu0 0.0
    %1910 = vmatprep.subr.mxu0 0.0
    %1911 = vmatpush1.msra.mxu0 0.0
    %1912 = vmatprep.subr.mxu0 0.0
    %1913 = vmatpush1.msra.mxu0 0.0
    %1914 = vmatprep.subr.mxu0 0.0
    %1915 = vmatpush1.msra.mxu0 0.0
    %1916 = vmatprep.subr.mxu0 0.0
    %1917 = vmatpush1.msra.mxu0 0.0
    %1918 = vmatprep.subr.mxu0 0.0
    %1919 = vmatpush1.msra.mxu0 0.0
    %1920 = vmatprep.subr.mxu0 0.0
    %1921 = vmatpush1.msra.mxu0 0.0
    %1922 = vmatprep.subr.mxu0 0.0
    %1923 = vmatpush1.msra.mxu0 0.0
    %1924 = vmatprep.subr.mxu0 0.0
    %1925 = vmatpush1.msra.mxu0 0.0
    %1926 = vmatprep.subr.mxu0 0.0
    %1927 = vmatpush1.msra.mxu0 0.0
    %1928 = vmatprep.subr.mxu0 0.0
    %1929 = vmatpush1.msra.mxu0 0.0
    %1930 = vmatprep.subr.mxu0 0.0
    %1931 = vmatpush1.msra.mxu0 %v1899
    %1932 = vmatprep.subr.mxu0 0.0
    %1933 = vmatpush1.msra.mxu0 %v1898
    %1934 = vmatprep.subr.mxu0 0.0
    %1935 = vmatpush1.msra.mxu0 %v1897
    %1936 = vmatprep.subr.mxu0 0.0
    %1937 = vmatpush1.msra.mxu0 %v1896
    %1938 = vmatprep.subr.mxu0 0.0
    %1939 = vmatpush2.msra.mxu0 0.0
    %1940 = vmatprep.subr.mxu0 0.0
    %1941 = vmatpush2.msra.mxu0 0.0
    %1942 = vmatprep.subr.mxu0 0.0
    %1943 = vmatpush2.msra.mxu0 0.0
    %1944 = vmatprep.subr.mxu0 0.0
    %1945 = vmatpush2.msra.mxu0 0.0
    %1946 = vmatprep.subr.mxu0 0.0
    %1947 = vmatpush2.msra.mxu0 0.0
    %1948 = vmatprep.subr.mxu0 0.0
    %1949 = vmatpush2.msra.mxu0 0.0
    %1950 = vmatprep.subr.mxu0 0.0
    %1951 = vmatpush2.msra.mxu0 0.0
    %1952 = vmatprep.subr.mxu0 0.0
    %1953 = vmatpush2.msra.mxu0 0.0
    %1954 = vmatprep.subr.mxu0 0.0
    %1955 = vmatpush2.msra.mxu0 0.0
    %1956 = vmatprep.subr.mxu0 0.0
    %1957 = vmatpush2.msra.mxu0 0.0
    %1958 = vmatprep.subr.mxu0 0.0
    %1959 = vmatpush2.msra.mxu0 0.0
    %1960 = vmatprep.subr.mxu0 0.0
    %1961 = vmatpush2.msra.mxu0 0.0
    %1962 = vmatprep.subr.mxu0 0.0
    %1963 = vmatpush2.msra.mxu0 0.0
    %1964 = vmatprep.subr.mxu0 0.0
    %1965 = vmatpush2.msra.mxu0 0.0
    %1966 = vmatprep.subr.mxu0 0.0
    %1967 = vmatpush2.msra.mxu0 0.0
    %1968 = vmatprep.subr.mxu0 0.0
    %1969 = vmatpush2.msra.mxu0 0.0
    %1970 = vmatprep.mubr.f32.mxu0 0.0
    %1971 = vmatmul.mubr.f32.gmra.mxu0 %v1901
    %v1972 = vpop.f32.mrf.mxu0
    %v1973 = vadd.f32 0.0, %v1972
    %v1974 = vpop.f32.mrf.mxu0
    %1975 = vmatprep.mubr.f32.mxu0 0.0
    %1976 = vmatmul.mubr.f32.gmra.mxu0 %v1904
    %v1977 = vpop.f32.mrf.mxu0
    %v1978 = vadd.f32 0.0, %v1977
    %v1979 = vpop.f32.mrf.mxu0
    %1980 = vdwg.mxu0
    %v1982 = vsel %vm264, %v1813, 0
    %v1985 = vsel %vm264, %v1814, 0
    %1987 = vmatprep.subr.mxu0 0.0
    %1988 = vmatpush1.msra.mxu0 0.0
    %1989 = vmatprep.subr.mxu0 0.0
    %1990 = vmatpush1.msra.mxu0 0.0
    %1991 = vmatprep.subr.mxu0 0.0
    %1992 = vmatpush1.msra.mxu0 0.0
    %1993 = vmatprep.subr.mxu0 0.0
    %1994 = vmatpush1.msra.mxu0 0.0
    %1995 = vmatprep.subr.mxu0 0.0
    %1996 = vmatpush1.msra.mxu0 0.0
    %1997 = vmatprep.subr.mxu0 0.0
    %1998 = vmatpush1.msra.mxu0 0.0
    %1999 = vmatprep.subr.mxu0 0.0
    %2000 = vmatpush1.msra.mxu0 0.0
    %2001 = vmatprep.subr.mxu0 0.0
    %2002 = vmatpush1.msra.mxu0 0.0
    %2003 = vmatprep.subr.mxu0 0.0
    %2004 = vmatpush1.msra.mxu0 0.0
    %2005 = vmatprep.subr.mxu0 0.0
    %2006 = vmatpush1.msra.mxu0 0.0
    %2007 = vmatprep.subr.mxu0 0.0
    %2008 = vmatpush1.msra.mxu0 0.0
    %2009 = vmatprep.subr.mxu0 0.0
    %2010 = vmatpush1.msra.mxu0 0.0
    %2011 = vmatprep.subr.mxu0 0.0
    %2012 = vmatpush1.msra.mxu0 %v1894
    %2013 = vmatprep.subr.mxu0 0.0
    %2014 = vmatpush1.msra.mxu0 %v1893
    %2015 = vmatprep.subr.mxu0 0.0
    %2016 = vmatpush1.msra.mxu0 %v1892
    %2017 = vmatprep.subr.mxu0 0.0
    %2018 = vmatpush1.msra.mxu0 %v1891
    %2019 = vmatprep.subr.mxu0 0.0
    %2020 = vmatpush2.msra.mxu0 0.0
    %2021 = vmatprep.subr.mxu0 0.0
    %2022 = vmatpush2.msra.mxu0 0.0
    %2023 = vmatprep.subr.mxu0 0.0
    %2024 = vmatpush2.msra.mxu0 0.0
    %2025 = vmatprep.subr.mxu0 0.0
    %2026 = vmatpush2.msra.mxu0 0.0
    %2027 = vmatprep.subr.mxu0 0.0
    %2028 = vmatpush2.msra.mxu0 0.0
    %2029 = vmatprep.subr.mxu0 0.0
    %2030 = vmatpush2.msra.mxu0 0.0
    %2031 = vmatprep.subr.mxu0 0.0
    %2032 = vmatpush2.msra.mxu0 0.0
    %2033 = vmatprep.subr.mxu0 0.0
    %2034 = vmatpush2.msra.mxu0 0.0
    %2035 = vmatprep.subr.mxu0 0.0
    %2036 = vmatpush2.msra.mxu0 0.0
    %2037 = vmatprep.subr.mxu0 0.0
    %2038 = vmatpush2.msra.mxu0 0.0
    %2039 = vmatprep.subr.mxu0 0.0
    %2040 = vmatpush2.msra.mxu0 0.0
    %2041 = vmatprep.subr.mxu0 0.0
    %2042 = vmatpush2.msra.mxu0 0.0
    %2043 = vmatprep.subr.mxu0 0.0
    %2044 = vmatpush2.msra.mxu0 0.0
    %2045 = vmatprep.subr.mxu0 0.0
    %2046 = vmatpush2.msra.mxu0 0.0
    %2047 = vmatprep.subr.mxu0 0.0
    %2048 = vmatpush2.msra.mxu0 0.0
    %2049 = vmatprep.subr.mxu0 0.0
    %2050 = vmatpush2.msra.mxu0 0.0
    %2051 = vmatprep.mubr.f32.mxu0 0.0
    %2052 = vmatmul.mubr.f32.gmra.mxu0 %v1982
    %v2053 = vpop.f32.mrf.mxu0
    %v2054 = vadd.f32 %v1973, %v2053
    %v2055 = vpop.f32.mrf.mxu0
    %2056 = vmatprep.mubr.f32.mxu0 0.0
    %2057 = vmatmul.mubr.f32.gmra.mxu0 %v1985
    %v2058 = vpop.f32.mrf.mxu0
    %v2059 = vadd.f32 %v1978, %v2058
    %v2060 = vpop.f32.mrf.mxu0
    %2061 = vdwg.mxu0
    %s2062 = scalar_lea.vmem %s10, 2
    %v2063 = vld [vmem:[%s2062] sm:$0x1]
    %v2065 = vlaneseq
    %v2066 = vshrl.u32 %v2065, 7
    %v2067 = vsub.s32 0, %v2066
    %v2068 = vrot.slane %v2063, %v2067
    %v2070 = vadd.f32 %v2054, %v2068
    %v2071 = vadd.f32 %v2059, %v2068
    %2073 = vset.pattern.permute.xlu0 0
    %2074 = vperm.xlu0 %2073, %v2070
    %v2075 = vpop.permute.xlu0 %2074
    %2078 = vset.pattern.permute.xlu0 0
    %2079 = vperm.xlu0 %2078, %v2071
    %v2080 = vpop.permute.xlu0 %2079
    %v2082 = vmul.f32 %v2075, %v76
    %v2083 = vmul.f32 %v2080, %v77
    %v2084 = vsel %vm174, %v2082, 0.0
    %v2085 = vsel %vm174, %v2083, 0.0
    %v2086 = vadd.f32 %v2084, %v2085
    %v2087 = vrot.slane %v2086, 4
    %v2088 = vadd.f32 %v2086, %v2087
    %v2089 = vrot.slane %v2088, 2
    %v2090 = vadd.f32 %v2088, %v2089
    %v2091 = vrot.slane %v2090, 1
    %v2092 = vadd.f32 %v2090, %v2091
    %vm2093 = vcmp.gt.f32.partialorder %v2092, %v2075
    %vm2094 = vcmp.gt.f32.partialorder %v2092, %v2080
    %vm2095 = vcmp.eq.f32.partialorder %v2092, %v2075
    %vm2096 = vcmp.eq.f32.partialorder %v2092, %v2080
    %vm2097 = vmand %vm2095, %vm812
    %vm2098 = vmand %vm2096, %vm813
    %vm2099 = vmor %vm2093, %vm2097
    %vm2100 = vmor %vm2094, %vm2098
    %v2101 = vsel %vm2099, 1.0, 0.0
    %v2102 = vsel %vm2100, 1.0, 0.0
    %v2103 = vmul.f32 %v2101, %v1505
    %v2104 = vmul.f32 %v2102, %v1505
    %v2105 = vsel %vm174, %v2103, 0.0
    %2106 = vadd.xlane.f32.xlu0 %v2105
    %v2107 = vpop.xlane.xlu0 %2106
    %v2108 = vsel %vm174, %v2104, 0.0
    %2109 = vadd.xlane.f32.xlu0 %v2108
    %v2110 = vpop.xlane.xlu0 %2109
    %vm2111 = vcmp.lt.f32.partialorder %v2107, 2.0
    %vm2112 = vcmp.lt.f32.partialorder %v2110, 2.0
    %vm2113 = vmand %vm2111, %vm1532
    %vm2114 = vmand %vm2112, %vm1533
    %v2115 = vsel %vm2113, 1.0, 0.0
    %v2116 = vsel %vm2114, 1.0, 0.0
    %v2117 = vtanh.pop %v2070
    %v2118 = vtanh.pop %v2071
    %2120 = vset.pattern.permute.xlu0 0
    %2121 = vperm.xlu0 %2120, %v2117
    %v2122 = vpop.permute.xlu0 %2121
    %2125 = vset.pattern.permute.xlu0 0
    %2126 = vperm.xlu0 %2125, %v2118
    %v2127 = vpop.permute.xlu0 %2126
    %v2129 = vmul.f32 %v1813, %v2122
    %v2130 = vmul.f32 %v1814, %v2127
    %v2131 = vmul.f32 %v2129, %v2115
    %v2132 = vmul.f32 %v2130, %v2116
    %v2133 = vmul.f32 %v2115, %v76
    %v2134 = vmul.f32 %v2116, %v77
    %v2135 = vsel %vm174, %v2133, 0.0
    %v2136 = vsel %vm174, %v2134, 0.0
    %v2137 = vadd.f32 %v2135, %v2136
    %v2138 = vrot.slane %v2137, 4
    %v2139 = vadd.f32 %v2137, %v2138
    %v2140 = vrot.slane %v2139, 2
    %v2141 = vadd.f32 %v2139, %v2140
    %v2142 = vrot.slane %v2141, 1
    %v2143 = vadd.f32 %v2141, %v2142
    %v2144 = vmul.f32 %v2115, %v2143
    %v2145 = vmul.f32 %v2116, %v2143
    %v2146 = vmul.f32 %v1508, %v2144
    %v2147 = vmul.f32 %v1509, %v2145
    %v2148 = vmul.f32 %v1510, %v2144
    %v2149 = vmul.f32 %v1511, %v2145
    %v2150 = vadd.f32 %v2115, %v2116
    %v2151 = vrot.slane %v2150, 4
    %v2152 = vadd.f32 %v2150, %v2151
    %v2153 = vrot.slane %v2152, 2
    %v2154 = vadd.f32 %v2152, %v2153
    %v2155 = vrot.slane %v2154, 1
    %v2156 = vadd.f32 %v2154, %v2155
    %v2157 = vmax.f32 %v2156, 1.0
    %v2158 = vrcp.pop %v2157
    %v2159 = vsel %vm264, %v2131, 0.0
    %v2160 = vsel %vm264, %v2132, 0.0
    %v2161 = vadd.f32 %v2159, %v2160
    %v2162 = vrot.slane %v2161, 4
    %v2163 = vadd.f32 %v2161, %v2162
    %v2164 = vrot.slane %v2163, 2
    %v2165 = vadd.f32 %v2163, %v2164
    %v2166 = vrot.slane %v2165, 1
    %v2167 = vadd.f32 %v2165, %v2166
    %v2168 = vmul.f32 %v2167, %v2158
    %v2169 = vadd.f32 %v1531, %v2168
    %vm2170 = vcmp.gt.f32.partialorder %v2115, 0.5
    %vm2171 = vcmp.gt.f32.partialorder %v2116, 0.5
    %v2172 = vsel %vm2170, 1, 0
    %v2173 = vsel %vm2171, 1, 0
    %vm2174 = vcmp.eq.s32.totalorder %v2172, 1
    %vm2175 = vcmp.eq.s32.totalorder %v2173, 1
    %v2176 = vsel %vm2174, %v2131, -1e+30
    %v2177 = vsel %vm2175, %v2132, -1e+30
    %v2178 = vsel %vm264, %v2176, -inf
    %v2179 = vsel %vm264, %v2177, -inf
    %v2180 = vmax.f32 %v2178, %v2179
    %v2181 = vrot.slane %v2180, 4
    %v2182 = vmax.f32 %v2180, %v2181
    %v2183 = vrot.slane %v2182, 2
    %v2184 = vmax.f32 %v2182, %v2183
    %v2185 = vrot.slane %v2184, 1
    %v2186 = vmax.f32 %v2184, %v2185
    %v2187 = vadd.f32 %v1549, %v2186
    %v2189 = vsel %vm174, %v2148, 0
    %v2192 = vsel %vm174, %v2149, 0
    %2194 = vmatprep.subr.mxu0 0.0
    %2195 = vmatpush1.msra.mxu0 0.0
    %2196 = vmatprep.subr.mxu0 0.0
    %2197 = vmatpush1.msra.mxu0 0.0
    %2198 = vmatprep.subr.mxu0 0.0
    %2199 = vmatpush1.msra.mxu0 0.0
    %2200 = vmatprep.subr.mxu0 0.0
    %2201 = vmatpush1.msra.mxu0 0.0
    %2202 = vmatprep.subr.mxu0 0.0
    %2203 = vmatpush1.msra.mxu0 0.0
    %2204 = vmatprep.subr.mxu0 0.0
    %2205 = vmatpush1.msra.mxu0 0.0
    %2206 = vmatprep.subr.mxu0 0.0
    %2207 = vmatpush1.msra.mxu0 0.0
    %2208 = vmatprep.subr.mxu0 0.0
    %2209 = vmatpush1.msra.mxu0 0.0
    %2210 = vmatprep.subr.mxu0 0.0
    %2211 = vmatpush1.msra.mxu0 0.0
    %2212 = vmatprep.subr.mxu0 0.0
    %2213 = vmatpush1.msra.mxu0 0.0
    %2214 = vmatprep.subr.mxu0 0.0
    %2215 = vmatpush1.msra.mxu0 0.0
    %2216 = vmatprep.subr.mxu0 0.0
    %2217 = vmatpush1.msra.mxu0 0.0
    %2218 = vmatprep.subr.mxu0 0.0
    %2219 = vmatpush1.msra.mxu0 0.0
    %2220 = vmatprep.subr.mxu0 0.0
    %2221 = vmatpush1.msra.mxu0 0.0
    %2222 = vmatprep.subr.mxu0 0.0
    %2223 = vmatpush1.msra.mxu0 %v2132
    %2224 = vmatprep.subr.mxu0 0.0
    %2225 = vmatpush1.msra.mxu0 %v2131
    %2226 = vmatprep.subr.mxu0 0.0
    %2227 = vmatpush2.msra.mxu0 0.0
    %2228 = vmatprep.subr.mxu0 0.0
    %2229 = vmatpush2.msra.mxu0 0.0
    %2230 = vmatprep.subr.mxu0 0.0
    %2231 = vmatpush2.msra.mxu0 0.0
    %2232 = vmatprep.subr.mxu0 0.0
    %2233 = vmatpush2.msra.mxu0 0.0
    %2234 = vmatprep.subr.mxu0 0.0
    %2235 = vmatpush2.msra.mxu0 0.0
    %2236 = vmatprep.subr.mxu0 0.0
    %2237 = vmatpush2.msra.mxu0 0.0
    %2238 = vmatprep.subr.mxu0 0.0
    %2239 = vmatpush2.msra.mxu0 0.0
    %2240 = vmatprep.subr.mxu0 0.0
    %2241 = vmatpush2.msra.mxu0 0.0
    %2242 = vmatprep.subr.mxu0 0.0
    %2243 = vmatpush2.msra.mxu0 0.0
    %2244 = vmatprep.subr.mxu0 0.0
    %2245 = vmatpush2.msra.mxu0 0.0
    %2246 = vmatprep.subr.mxu0 0.0
    %2247 = vmatpush2.msra.mxu0 0.0
    %2248 = vmatprep.subr.mxu0 0.0
    %2249 = vmatpush2.msra.mxu0 0.0
    %2250 = vmatprep.subr.mxu0 0.0
    %2251 = vmatpush2.msra.mxu0 0.0
    %2252 = vmatprep.subr.mxu0 0.0
    %2253 = vmatpush2.msra.mxu0 0.0
    %2254 = vmatprep.subr.mxu0 0.0
    %2255 = vmatpush2.msra.mxu0 0.0
    %2256 = vmatprep.subr.mxu0 0.0
    %2257 = vmatpush2.msra.mxu0 0.0
    %2258 = vmatprep.mubr.f32.mxu0 0.0
    %2259 = vmatmul.mubr.f32.gmra.mxu0 %v2189
    %v2260 = vpop.f32.mrf.mxu0
    %v2261 = vadd.f32 0.0, %v2260
    %v2262 = vpop.f32.mrf.mxu0
    %2263 = vmatprep.mubr.f32.mxu0 0.0
    %2264 = vmatmul.mubr.f32.gmra.mxu0 %v2192
    %v2265 = vpop.f32.mrf.mxu0
    %v2266 = vadd.f32 0.0, %v2265
    %v2267 = vpop.f32.mrf.mxu0
    %2268 = vdwg.mxu0
    %s2269 = scalar_lea.vmem %s5, 96
    %v2270 = vld [vmem:[%s2269] sm:$0xff]
    %v2271 = vld [vmem:[%s2269 + $0x8] sm:$0xff]
    %v2272 = vld [vmem:[%s2269 + $0x10] sm:$0xff]
    %v2273 = vld [vmem:[%s2269 + $0x18] sm:$0xff]
    %s2274 = scalar_lea.vmem %s6, 96
    %v2275 = vld [vmem:[%s2274] sm:$0xff]
    %v2276 = vld [vmem:[%s2274 + $0x8] sm:$0xff]
    %v2277 = vld [vmem:[%s2274 + $0x10] sm:$0xff]
    %v2278 = vld [vmem:[%s2274 + $0x18] sm:$0xff]
    %v2280 = vsel %vm264, %v2261, 0
    %v2283 = vsel %vm264, %v2266, 0
    %2285 = vmatprep.subr.mxu0 0.0
    %2286 = vmatpush1.msra.mxu0 0.0
    %2287 = vmatprep.subr.mxu0 0.0
    %2288 = vmatpush1.msra.mxu0 0.0
    %2289 = vmatprep.subr.mxu0 0.0
    %2290 = vmatpush1.msra.mxu0 0.0
    %2291 = vmatprep.subr.mxu0 0.0
    %2292 = vmatpush1.msra.mxu0 0.0
    %2293 = vmatprep.subr.mxu0 0.0
    %2294 = vmatpush1.msra.mxu0 0.0
    %2295 = vmatprep.subr.mxu0 0.0
    %2296 = vmatpush1.msra.mxu0 0.0
    %2297 = vmatprep.subr.mxu0 0.0
    %2298 = vmatpush1.msra.mxu0 0.0
    %2299 = vmatprep.subr.mxu0 0.0
    %2300 = vmatpush1.msra.mxu0 0.0
    %2301 = vmatprep.subr.mxu0 0.0
    %2302 = vmatpush1.msra.mxu0 0.0
    %2303 = vmatprep.subr.mxu0 0.0
    %2304 = vmatpush1.msra.mxu0 0.0
    %2305 = vmatprep.subr.mxu0 0.0
    %2306 = vmatpush1.msra.mxu0 0.0
    %2307 = vmatprep.subr.mxu0 0.0
    %2308 = vmatpush1.msra.mxu0 0.0
    %2309 = vmatprep.subr.mxu0 0.0
    %2310 = vmatpush1.msra.mxu0 %v2278
    %2311 = vmatprep.subr.mxu0 0.0
    %2312 = vmatpush1.msra.mxu0 %v2277
    %2313 = vmatprep.subr.mxu0 0.0
    %2314 = vmatpush1.msra.mxu0 %v2276
    %2315 = vmatprep.subr.mxu0 0.0
    %2316 = vmatpush1.msra.mxu0 %v2275
    %2317 = vmatprep.subr.mxu0 0.0
    %2318 = vmatpush2.msra.mxu0 0.0
    %2319 = vmatprep.subr.mxu0 0.0
    %2320 = vmatpush2.msra.mxu0 0.0
    %2321 = vmatprep.subr.mxu0 0.0
    %2322 = vmatpush2.msra.mxu0 0.0
    %2323 = vmatprep.subr.mxu0 0.0
    %2324 = vmatpush2.msra.mxu0 0.0
    %2325 = vmatprep.subr.mxu0 0.0
    %2326 = vmatpush2.msra.mxu0 0.0
    %2327 = vmatprep.subr.mxu0 0.0
    %2328 = vmatpush2.msra.mxu0 0.0
    %2329 = vmatprep.subr.mxu0 0.0
    %2330 = vmatpush2.msra.mxu0 0.0
    %2331 = vmatprep.subr.mxu0 0.0
    %2332 = vmatpush2.msra.mxu0 0.0
    %2333 = vmatprep.subr.mxu0 0.0
    %2334 = vmatpush2.msra.mxu0 0.0
    %2335 = vmatprep.subr.mxu0 0.0
    %2336 = vmatpush2.msra.mxu0 0.0
    %2337 = vmatprep.subr.mxu0 0.0
    %2338 = vmatpush2.msra.mxu0 0.0
    %2339 = vmatprep.subr.mxu0 0.0
    %2340 = vmatpush2.msra.mxu0 0.0
    %2341 = vmatprep.subr.mxu0 0.0
    %2342 = vmatpush2.msra.mxu0 0.0
    %2343 = vmatprep.subr.mxu0 0.0
    %2344 = vmatpush2.msra.mxu0 0.0
    %2345 = vmatprep.subr.mxu0 0.0
    %2346 = vmatpush2.msra.mxu0 0.0
    %2347 = vmatprep.subr.mxu0 0.0
    %2348 = vmatpush2.msra.mxu0 0.0
    %2349 = vmatprep.mubr.f32.mxu0 0.0
    %2350 = vmatmul.mubr.f32.gmra.mxu0 %v2280
    %v2351 = vpop.f32.mrf.mxu0
    %v2352 = vadd.f32 0.0, %v2351
    %v2353 = vpop.f32.mrf.mxu0
    %2354 = vmatprep.mubr.f32.mxu0 0.0
    %2355 = vmatmul.mubr.f32.gmra.mxu0 %v2283
    %v2356 = vpop.f32.mrf.mxu0
    %v2357 = vadd.f32 0.0, %v2356
    %v2358 = vpop.f32.mrf.mxu0
    %2359 = vdwg.mxu0
    %v2361 = vsel %vm264, %v2131, 0
    %v2364 = vsel %vm264, %v2132, 0
    %2366 = vmatprep.subr.mxu0 0.0
    %2367 = vmatpush1.msra.mxu0 0.0
    %2368 = vmatprep.subr.mxu0 0.0
    %2369 = vmatpush1.msra.mxu0 0.0
    %2370 = vmatprep.subr.mxu0 0.0
    %2371 = vmatpush1.msra.mxu0 0.0
    %2372 = vmatprep.subr.mxu0 0.0
    %2373 = vmatpush1.msra.mxu0 0.0
    %2374 = vmatprep.subr.mxu0 0.0
    %2375 = vmatpush1.msra.mxu0 0.0
    %2376 = vmatprep.subr.mxu0 0.0
    %2377 = vmatpush1.msra.mxu0 0.0
    %2378 = vmatprep.subr.mxu0 0.0
    %2379 = vmatpush1.msra.mxu0 0.0
    %2380 = vmatprep.subr.mxu0 0.0
    %2381 = vmatpush1.msra.mxu0 0.0
    %2382 = vmatprep.subr.mxu0 0.0
    %2383 = vmatpush1.msra.mxu0 0.0
    %2384 = vmatprep.subr.mxu0 0.0
    %2385 = vmatpush1.msra.mxu0 0.0
    %2386 = vmatprep.subr.mxu0 0.0
    %2387 = vmatpush1.msra.mxu0 0.0
    %2388 = vmatprep.subr.mxu0 0.0
    %2389 = vmatpush1.msra.mxu0 0.0
    %2390 = vmatprep.subr.mxu0 0.0
    %2391 = vmatpush1.msra.mxu0 %v2273
    %2392 = vmatprep.subr.mxu0 0.0
    %2393 = vmatpush1.msra.mxu0 %v2272
    %2394 = vmatprep.subr.mxu0 0.0
    %2395 = vmatpush1.msra.mxu0 %v2271
    %2396 = vmatprep.subr.mxu0 0.0
    %2397 = vmatpush1.msra.mxu0 %v2270
    %2398 = vmatprep.subr.mxu0 0.0
    %2399 = vmatpush2.msra.mxu0 0.0
    %2400 = vmatprep.subr.mxu0 0.0
    %2401 = vmatpush2.msra.mxu0 0.0
    %2402 = vmatprep.subr.mxu0 0.0
    %2403 = vmatpush2.msra.mxu0 0.0
    %2404 = vmatprep.subr.mxu0 0.0
    %2405 = vmatpush2.msra.mxu0 0.0
    %2406 = vmatprep.subr.mxu0 0.0
    %2407 = vmatpush2.msra.mxu0 0.0
    %2408 = vmatprep.subr.mxu0 0.0
    %2409 = vmatpush2.msra.mxu0 0.0
    %2410 = vmatprep.subr.mxu0 0.0
    %2411 = vmatpush2.msra.mxu0 0.0
    %2412 = vmatprep.subr.mxu0 0.0
    %2413 = vmatpush2.msra.mxu0 0.0
    %2414 = vmatprep.subr.mxu0 0.0
    %2415 = vmatpush2.msra.mxu0 0.0
    %2416 = vmatprep.subr.mxu0 0.0
    %2417 = vmatpush2.msra.mxu0 0.0
    %2418 = vmatprep.subr.mxu0 0.0
    %2419 = vmatpush2.msra.mxu0 0.0
    %2420 = vmatprep.subr.mxu0 0.0
    %2421 = vmatpush2.msra.mxu0 0.0
    %2422 = vmatprep.subr.mxu0 0.0
    %2423 = vmatpush2.msra.mxu0 0.0
    %2424 = vmatprep.subr.mxu0 0.0
    %2425 = vmatpush2.msra.mxu0 0.0
    %2426 = vmatprep.subr.mxu0 0.0
    %2427 = vmatpush2.msra.mxu0 0.0
    %2428 = vmatprep.subr.mxu0 0.0
    %2429 = vmatpush2.msra.mxu0 0.0
    %2430 = vmatprep.mubr.f32.mxu0 0.0
    %2431 = vmatmul.mubr.f32.gmra.mxu0 %v2361
    %v2432 = vpop.f32.mrf.mxu0
    %v2433 = vadd.f32 %v2352, %v2432
    %v2434 = vpop.f32.mrf.mxu0
    %2435 = vmatprep.mubr.f32.mxu0 0.0
    %2436 = vmatmul.mubr.f32.gmra.mxu0 %v2364
    %v2437 = vpop.f32.mrf.mxu0
    %v2438 = vadd.f32 %v2357, %v2437
    %v2439 = vpop.f32.mrf.mxu0
    %2440 = vdwg.mxu0
    %s2441 = scalar_lea.vmem %s7, 3
    %v2442 = vld [vmem:[%s2441] sm:$0x1]
    %v2444 = vlaneseq
    %v2445 = vshrl.u32 %v2444, 7
    %v2446 = vsub.s32 0, %v2445
    %v2447 = vrot.slane %v2442, %v2446
    %v2449 = vadd.f32 %v2433, %v2447
    %v2450 = vadd.f32 %v2438, %v2447
    %v2451 = vmax.f32 %v2449, 0.0
    %v2452 = vmax.f32 %v2450, 0.0
    %v2454 = vsel %vm174, %v2146, 0
    %v2457 = vsel %vm174, %v2147, 0
    %2459 = vmatprep.subr.mxu0 0.0
    %2460 = vmatpush1.msra.mxu0 0.0
    %2461 = vmatprep.subr.mxu0 0.0
    %2462 = vmatpush1.msra.mxu0 0.0
    %2463 = vmatprep.subr.mxu0 0.0
    %2464 = vmatpush1.msra.mxu0 0.0
    %2465 = vmatprep.subr.mxu0 0.0
    %2466 = vmatpush1.msra.mxu0 0.0
    %2467 = vmatprep.subr.mxu0 0.0
    %2468 = vmatpush1.msra.mxu0 0.0
    %2469 = vmatprep.subr.mxu0 0.0
    %2470 = vmatpush1.msra.mxu0 0.0
    %2471 = vmatprep.subr.mxu0 0.0
    %2472 = vmatpush1.msra.mxu0 0.0
    %2473 = vmatprep.subr.mxu0 0.0
    %2474 = vmatpush1.msra.mxu0 0.0
    %2475 = vmatprep.subr.mxu0 0.0
    %2476 = vmatpush1.msra.mxu0 0.0
    %2477 = vmatprep.subr.mxu0 0.0
    %2478 = vmatpush1.msra.mxu0 0.0
    %2479 = vmatprep.subr.mxu0 0.0
    %2480 = vmatpush1.msra.mxu0 0.0
    %2481 = vmatprep.subr.mxu0 0.0
    %2482 = vmatpush1.msra.mxu0 0.0
    %2483 = vmatprep.subr.mxu0 0.0
    %2484 = vmatpush1.msra.mxu0 0.0
    %2485 = vmatprep.subr.mxu0 0.0
    %2486 = vmatpush1.msra.mxu0 0.0
    %2487 = vmatprep.subr.mxu0 0.0
    %2488 = vmatpush1.msra.mxu0 %v2452
    %2489 = vmatprep.subr.mxu0 0.0
    %2490 = vmatpush1.msra.mxu0 %v2451
    %2491 = vmatprep.subr.mxu0 0.0
    %2492 = vmatpush2.msra.mxu0 0.0
    %2493 = vmatprep.subr.mxu0 0.0
    %2494 = vmatpush2.msra.mxu0 0.0
    %2495 = vmatprep.subr.mxu0 0.0
    %2496 = vmatpush2.msra.mxu0 0.0
    %2497 = vmatprep.subr.mxu0 0.0
    %2498 = vmatpush2.msra.mxu0 0.0
    %2499 = vmatprep.subr.mxu0 0.0
    %2500 = vmatpush2.msra.mxu0 0.0
    %2501 = vmatprep.subr.mxu0 0.0
    %2502 = vmatpush2.msra.mxu0 0.0
    %2503 = vmatprep.subr.mxu0 0.0
    %2504 = vmatpush2.msra.mxu0 0.0
    %2505 = vmatprep.subr.mxu0 0.0
    %2506 = vmatpush2.msra.mxu0 0.0
    %2507 = vmatprep.subr.mxu0 0.0
    %2508 = vmatpush2.msra.mxu0 0.0
    %2509 = vmatprep.subr.mxu0 0.0
    %2510 = vmatpush2.msra.mxu0 0.0
    %2511 = vmatprep.subr.mxu0 0.0
    %2512 = vmatpush2.msra.mxu0 0.0
    %2513 = vmatprep.subr.mxu0 0.0
    %2514 = vmatpush2.msra.mxu0 0.0
    %2515 = vmatprep.subr.mxu0 0.0
    %2516 = vmatpush2.msra.mxu0 0.0
    %2517 = vmatprep.subr.mxu0 0.0
    %2518 = vmatpush2.msra.mxu0 0.0
    %2519 = vmatprep.subr.mxu0 0.0
    %2520 = vmatpush2.msra.mxu0 0.0
    %2521 = vmatprep.subr.mxu0 0.0
    %2522 = vmatpush2.msra.mxu0 0.0
    %2523 = vmatprep.mubr.f32.mxu0 0.0
    %2524 = vmatmul.mubr.f32.gmra.mxu0 %v2454
    %v2525 = vpop.f32.mrf.mxu0
    %v2526 = vadd.f32 0.0, %v2525
    %v2527 = vpop.f32.mrf.mxu0
    %2528 = vmatprep.mubr.f32.mxu0 0.0
    %2529 = vmatmul.mubr.f32.gmra.mxu0 %v2457
    %v2530 = vpop.f32.mrf.mxu0
    %v2531 = vadd.f32 0.0, %v2530
    %v2532 = vpop.f32.mrf.mxu0
    %2533 = vdwg.mxu0
    %s2534 = scalar_lea.vmem %s8, 96
    %v2535 = vld [vmem:[%s2534] sm:$0xff]
    %v2536 = vld [vmem:[%s2534 + $0x8] sm:$0xff]
    %v2537 = vld [vmem:[%s2534 + $0x10] sm:$0xff]
    %v2538 = vld [vmem:[%s2534 + $0x18] sm:$0xff]
    %s2539 = scalar_lea.vmem %s9, 96
    %v2540 = vld [vmem:[%s2539] sm:$0xff]
    %v2541 = vld [vmem:[%s2539 + $0x8] sm:$0xff]
    %v2542 = vld [vmem:[%s2539 + $0x10] sm:$0xff]
    %v2543 = vld [vmem:[%s2539 + $0x18] sm:$0xff]
    %v2545 = vsel %vm264, %v2526, 0
    %v2548 = vsel %vm264, %v2531, 0
    %2550 = vmatprep.subr.mxu0 0.0
    %2551 = vmatpush1.msra.mxu0 0.0
    %2552 = vmatprep.subr.mxu0 0.0
    %2553 = vmatpush1.msra.mxu0 0.0
    %2554 = vmatprep.subr.mxu0 0.0
    %2555 = vmatpush1.msra.mxu0 0.0
    %2556 = vmatprep.subr.mxu0 0.0
    %2557 = vmatpush1.msra.mxu0 0.0
    %2558 = vmatprep.subr.mxu0 0.0
    %2559 = vmatpush1.msra.mxu0 0.0
    %2560 = vmatprep.subr.mxu0 0.0
    %2561 = vmatpush1.msra.mxu0 0.0
    %2562 = vmatprep.subr.mxu0 0.0
    %2563 = vmatpush1.msra.mxu0 0.0
    %2564 = vmatprep.subr.mxu0 0.0
    %2565 = vmatpush1.msra.mxu0 0.0
    %2566 = vmatprep.subr.mxu0 0.0
    %2567 = vmatpush1.msra.mxu0 0.0
    %2568 = vmatprep.subr.mxu0 0.0
    %2569 = vmatpush1.msra.mxu0 0.0
    %2570 = vmatprep.subr.mxu0 0.0
    %2571 = vmatpush1.msra.mxu0 0.0
    %2572 = vmatprep.subr.mxu0 0.0
    %2573 = vmatpush1.msra.mxu0 0.0
    %2574 = vmatprep.subr.mxu0 0.0
    %2575 = vmatpush1.msra.mxu0 %v2543
    %2576 = vmatprep.subr.mxu0 0.0
    %2577 = vmatpush1.msra.mxu0 %v2542
    %2578 = vmatprep.subr.mxu0 0.0
    %2579 = vmatpush1.msra.mxu0 %v2541
    %2580 = vmatprep.subr.mxu0 0.0
    %2581 = vmatpush1.msra.mxu0 %v2540
    %2582 = vmatprep.subr.mxu0 0.0
    %2583 = vmatpush2.msra.mxu0 0.0
    %2584 = vmatprep.subr.mxu0 0.0
    %2585 = vmatpush2.msra.mxu0 0.0
    %2586 = vmatprep.subr.mxu0 0.0
    %2587 = vmatpush2.msra.mxu0 0.0
    %2588 = vmatprep.subr.mxu0 0.0
    %2589 = vmatpush2.msra.mxu0 0.0
    %2590 = vmatprep.subr.mxu0 0.0
    %2591 = vmatpush2.msra.mxu0 0.0
    %2592 = vmatprep.subr.mxu0 0.0
    %2593 = vmatpush2.msra.mxu0 0.0
    %2594 = vmatprep.subr.mxu0 0.0
    %2595 = vmatpush2.msra.mxu0 0.0
    %2596 = vmatprep.subr.mxu0 0.0
    %2597 = vmatpush2.msra.mxu0 0.0
    %2598 = vmatprep.subr.mxu0 0.0
    %2599 = vmatpush2.msra.mxu0 0.0
    %2600 = vmatprep.subr.mxu0 0.0
    %2601 = vmatpush2.msra.mxu0 0.0
    %2602 = vmatprep.subr.mxu0 0.0
    %2603 = vmatpush2.msra.mxu0 0.0
    %2604 = vmatprep.subr.mxu0 0.0
    %2605 = vmatpush2.msra.mxu0 0.0
    %2606 = vmatprep.subr.mxu0 0.0
    %2607 = vmatpush2.msra.mxu0 0.0
    %2608 = vmatprep.subr.mxu0 0.0
    %2609 = vmatpush2.msra.mxu0 0.0
    %2610 = vmatprep.subr.mxu0 0.0
    %2611 = vmatpush2.msra.mxu0 0.0
    %2612 = vmatprep.subr.mxu0 0.0
    %2613 = vmatpush2.msra.mxu0 0.0
    %2614 = vmatprep.mubr.f32.mxu0 0.0
    %2615 = vmatmul.mubr.f32.gmra.mxu0 %v2545
    %v2616 = vpop.f32.mrf.mxu0
    %v2617 = vadd.f32 0.0, %v2616
    %v2618 = vpop.f32.mrf.mxu0
    %2619 = vmatprep.mubr.f32.mxu0 0.0
    %2620 = vmatmul.mubr.f32.gmra.mxu0 %v2548
    %v2621 = vpop.f32.mrf.mxu0
    %v2622 = vadd.f32 0.0, %v2621
    %v2623 = vpop.f32.mrf.mxu0
    %2624 = vdwg.mxu0
    %v2626 = vsel %vm264, %v2451, 0
    %v2629 = vsel %vm264, %v2452, 0
    %2631 = vmatprep.subr.mxu0 0.0
    %2632 = vmatpush1.msra.mxu0 0.0
    %2633 = vmatprep.subr.mxu0 0.0
    %2634 = vmatpush1.msra.mxu0 0.0
    %2635 = vmatprep.subr.mxu0 0.0
    %2636 = vmatpush1.msra.mxu0 0.0
    %2637 = vmatprep.subr.mxu0 0.0
    %2638 = vmatpush1.msra.mxu0 0.0
    %2639 = vmatprep.subr.mxu0 0.0
    %2640 = vmatpush1.msra.mxu0 0.0
    %2641 = vmatprep.subr.mxu0 0.0
    %2642 = vmatpush1.msra.mxu0 0.0
    %2643 = vmatprep.subr.mxu0 0.0
    %2644 = vmatpush1.msra.mxu0 0.0
    %2645 = vmatprep.subr.mxu0 0.0
    %2646 = vmatpush1.msra.mxu0 0.0
    %2647 = vmatprep.subr.mxu0 0.0
    %2648 = vmatpush1.msra.mxu0 0.0
    %2649 = vmatprep.subr.mxu0 0.0
    %2650 = vmatpush1.msra.mxu0 0.0
    %2651 = vmatprep.subr.mxu0 0.0
    %2652 = vmatpush1.msra.mxu0 0.0
    %2653 = vmatprep.subr.mxu0 0.0
    %2654 = vmatpush1.msra.mxu0 0.0
    %2655 = vmatprep.subr.mxu0 0.0
    %2656 = vmatpush1.msra.mxu0 %v2538
    %2657 = vmatprep.subr.mxu0 0.0
    %2658 = vmatpush1.msra.mxu0 %v2537
    %2659 = vmatprep.subr.mxu0 0.0
    %2660 = vmatpush1.msra.mxu0 %v2536
    %2661 = vmatprep.subr.mxu0 0.0
    %2662 = vmatpush1.msra.mxu0 %v2535
    %2663 = vmatprep.subr.mxu0 0.0
    %2664 = vmatpush2.msra.mxu0 0.0
    %2665 = vmatprep.subr.mxu0 0.0
    %2666 = vmatpush2.msra.mxu0 0.0
    %2667 = vmatprep.subr.mxu0 0.0
    %2668 = vmatpush2.msra.mxu0 0.0
    %2669 = vmatprep.subr.mxu0 0.0
    %2670 = vmatpush2.msra.mxu0 0.0
    %2671 = vmatprep.subr.mxu0 0.0
    %2672 = vmatpush2.msra.mxu0 0.0
    %2673 = vmatprep.subr.mxu0 0.0
    %2674 = vmatpush2.msra.mxu0 0.0
    %2675 = vmatprep.subr.mxu0 0.0
    %2676 = vmatpush2.msra.mxu0 0.0
    %2677 = vmatprep.subr.mxu0 0.0
    %2678 = vmatpush2.msra.mxu0 0.0
    %2679 = vmatprep.subr.mxu0 0.0
    %2680 = vmatpush2.msra.mxu0 0.0
    %2681 = vmatprep.subr.mxu0 0.0
    %2682 = vmatpush2.msra.mxu0 0.0
    %2683 = vmatprep.subr.mxu0 0.0
    %2684 = vmatpush2.msra.mxu0 0.0
    %2685 = vmatprep.subr.mxu0 0.0
    %2686 = vmatpush2.msra.mxu0 0.0
    %2687 = vmatprep.subr.mxu0 0.0
    %2688 = vmatpush2.msra.mxu0 0.0
    %2689 = vmatprep.subr.mxu0 0.0
    %2690 = vmatpush2.msra.mxu0 0.0
    %2691 = vmatprep.subr.mxu0 0.0
    %2692 = vmatpush2.msra.mxu0 0.0
    %2693 = vmatprep.subr.mxu0 0.0
    %2694 = vmatpush2.msra.mxu0 0.0
    %2695 = vmatprep.mubr.f32.mxu0 0.0
    %2696 = vmatmul.mubr.f32.gmra.mxu0 %v2626
    %v2697 = vpop.f32.mrf.mxu0
    %v2698 = vadd.f32 %v2617, %v2697
    %v2699 = vpop.f32.mrf.mxu0
    %2700 = vmatprep.mubr.f32.mxu0 0.0
    %2701 = vmatmul.mubr.f32.gmra.mxu0 %v2629
    %v2702 = vpop.f32.mrf.mxu0
    %v2703 = vadd.f32 %v2622, %v2702
    %v2704 = vpop.f32.mrf.mxu0
    %2705 = vdwg.mxu0
    %s2706 = scalar_lea.vmem %s10, 3
    %v2707 = vld [vmem:[%s2706] sm:$0x1]
    %v2709 = vlaneseq
    %v2710 = vshrl.u32 %v2709, 7
    %v2711 = vsub.s32 0, %v2710
    %v2712 = vrot.slane %v2707, %v2711
    %v2714 = vadd.f32 %v2698, %v2712
    %v2715 = vadd.f32 %v2703, %v2712
    %2717 = vset.pattern.permute.xlu0 0
    %2718 = vperm.xlu0 %2717, %v2714
    %v2719 = vpop.permute.xlu0 %2718
    %2722 = vset.pattern.permute.xlu0 0
    %2723 = vperm.xlu0 %2722, %v2715
    %v2724 = vpop.permute.xlu0 %2723
    %v2726 = vmul.f32 %v2719, %v76
    %v2727 = vmul.f32 %v2724, %v77
    %v2728 = vsel %vm174, %v2726, 0.0
    %v2729 = vsel %vm174, %v2727, 0.0
    %v2730 = vadd.f32 %v2728, %v2729
    %v2731 = vrot.slane %v2730, 4
    %v2732 = vadd.f32 %v2730, %v2731
    %v2733 = vrot.slane %v2732, 2
    %v2734 = vadd.f32 %v2732, %v2733
    %v2735 = vrot.slane %v2734, 1
    %v2736 = vadd.f32 %v2734, %v2735
    %vm2737 = vcmp.gt.f32.partialorder %v2736, %v2719
    %vm2738 = vcmp.gt.f32.partialorder %v2736, %v2724
    %vm2739 = vcmp.eq.f32.partialorder %v2736, %v2719
    %vm2740 = vcmp.eq.f32.partialorder %v2736, %v2724
    %vm2741 = vmand %vm2739, %vm812
    %vm2742 = vmand %vm2740, %vm813
    %vm2743 = vmor %vm2737, %vm2741
    %vm2744 = vmor %vm2738, %vm2742
    %v2745 = vsel %vm2743, 1.0, 0.0
    %v2746 = vsel %vm2744, 1.0, 0.0
    %v2747 = vmul.f32 %v2745, %v2143
    %v2748 = vmul.f32 %v2746, %v2143
    %v2749 = vsel %vm174, %v2747, 0.0
    %2750 = vadd.xlane.f32.xlu0 %v2749
    %v2751 = vpop.xlane.xlu0 %2750
    %v2752 = vsel %vm174, %v2748, 0.0
    %2753 = vadd.xlane.f32.xlu0 %v2752
    %v2754 = vpop.xlane.xlu0 %2753
    %vm2755 = vcmp.lt.f32.partialorder %v2751, 1.0
    %vm2756 = vcmp.lt.f32.partialorder %v2754, 1.0
    %vm2757 = vmand %vm2755, %vm2170
    %vm2758 = vmand %vm2756, %vm2171
    %v2759 = vsel %vm2757, 1.0, 0.0
    %v2760 = vsel %vm2758, 1.0, 0.0
    %v2761 = vtanh.pop %v2714
    %v2762 = vtanh.pop %v2715
    %2764 = vset.pattern.permute.xlu0 0
    %2765 = vperm.xlu0 %2764, %v2761
    %v2766 = vpop.permute.xlu0 %2765
    %2769 = vset.pattern.permute.xlu0 0
    %2770 = vperm.xlu0 %2769, %v2762
    %v2771 = vpop.permute.xlu0 %2770
    %v2773 = vmul.f32 %v2451, %v2766
    %v2774 = vmul.f32 %v2452, %v2771
    %v2775 = vmul.f32 %v2773, %v2759
    %v2776 = vmul.f32 %v2774, %v2760
    %v2777 = vadd.f32 %v2759, %v2760
    %v2778 = vrot.slane %v2777, 4
    %v2779 = vadd.f32 %v2777, %v2778
    %v2780 = vrot.slane %v2779, 2
    %v2781 = vadd.f32 %v2779, %v2780
    %v2782 = vrot.slane %v2781, 1
    %v2783 = vadd.f32 %v2781, %v2782
    %v2784 = vmax.f32 %v2783, 1.0
    %v2785 = vrcp.pop %v2784
    %v2786 = vsel %vm264, %v2775, 0.0
    %v2787 = vsel %vm264, %v2776, 0.0
    %v2788 = vadd.f32 %v2786, %v2787
    %v2789 = vrot.slane %v2788, 4
    %v2790 = vadd.f32 %v2788, %v2789
    %v2791 = vrot.slane %v2790, 2
    %v2792 = vadd.f32 %v2790, %v2791
    %v2793 = vrot.slane %v2792, 1
    %v2794 = vadd.f32 %v2792, %v2793
    %v2795 = vmul.f32 %v2794, %v2785
    %v2796 = vadd.f32 %v2169, %v2795
    %vm2797 = vcmp.gt.f32.partialorder %v2759, 0.5
    %vm2798 = vcmp.gt.f32.partialorder %v2760, 0.5
    %v2799 = vsel %vm2797, 1, 0
    %v2800 = vsel %vm2798, 1, 0
    %vm2801 = vcmp.eq.s32.totalorder %v2799, 1
    %vm2802 = vcmp.eq.s32.totalorder %v2800, 1
    %v2803 = vsel %vm2801, %v2775, -1e+30
    %v2804 = vsel %vm2802, %v2776, -1e+30
    %v2805 = vsel %vm264, %v2803, -inf
    %v2806 = vsel %vm264, %v2804, -inf
    %v2807 = vmax.f32 %v2805, %v2806
    %v2808 = vrot.slane %v2807, 4
    %v2809 = vmax.f32 %v2807, %v2808
    %v2810 = vrot.slane %v2809, 2
    %v2811 = vmax.f32 %v2809, %v2810
    %v2812 = vrot.slane %v2811, 1
    %v2813 = vmax.f32 %v2811, %v2812
    %v2814 = vadd.f32 %v2187, %v2813
    %v2815 = vld [vmem:[%s14] sm:$0xff]
    %v2816 = vld [vmem:[%s14 + $0x8] sm:$0xff]
    %v2817 = vld [vmem:[%s14 + $0x10] sm:$0xff]
    %v2818 = vld [vmem:[%s14 + $0x18] sm:$0xff]
    %v2819 = vld [vmem:[%s15] sm:$0xff]
    %v2820 = vld [vmem:[%s15 + $0x8] sm:$0xff]
    %v2821 = vld [vmem:[%s15 + $0x10] sm:$0xff]
    %v2822 = vld [vmem:[%s15 + $0x18] sm:$0xff]
    %v2824 = vsel %vm264, %v2796, 0
    %2826 = vmatprep.subr.mxu0 0.0
    %2827 = vmatpush1.msra.mxu0 0.0
    %2828 = vmatprep.subr.mxu0 0.0
    %2829 = vmatpush1.msra.mxu0 0.0
    %2830 = vmatprep.subr.mxu0 0.0
    %2831 = vmatpush1.msra.mxu0 0.0
    %2832 = vmatprep.subr.mxu0 0.0
    %2833 = vmatpush1.msra.mxu0 0.0
    %2834 = vmatprep.subr.mxu0 0.0
    %2835 = vmatpush1.msra.mxu0 0.0
    %2836 = vmatprep.subr.mxu0 0.0
    %2837 = vmatpush1.msra.mxu0 0.0
    %2838 = vmatprep.subr.mxu0 0.0
    %2839 = vmatpush1.msra.mxu0 0.0
    %2840 = vmatprep.subr.mxu0 0.0
    %2841 = vmatpush1.msra.mxu0 0.0
    %2842 = vmatprep.subr.mxu0 0.0
    %2843 = vmatpush1.msra.mxu0 0.0
    %2844 = vmatprep.subr.mxu0 0.0
    %2845 = vmatpush1.msra.mxu0 0.0
    %2846 = vmatprep.subr.mxu0 0.0
    %2847 = vmatpush1.msra.mxu0 0.0
    %2848 = vmatprep.subr.mxu0 0.0
    %2849 = vmatpush1.msra.mxu0 0.0
    %2850 = vmatprep.subr.mxu0 0.0
    %2851 = vmatpush1.msra.mxu0 %v2822
    %2852 = vmatprep.subr.mxu0 0.0
    %2853 = vmatpush1.msra.mxu0 %v2821
    %2854 = vmatprep.subr.mxu0 0.0
    %2855 = vmatpush1.msra.mxu0 %v2820
    %2856 = vmatprep.subr.mxu0 0.0
    %2857 = vmatpush1.msra.mxu0 %v2819
    %2858 = vmatprep.subr.mxu0 0.0
    %2859 = vmatpush2.msra.mxu0 0.0
    %2860 = vmatprep.subr.mxu0 0.0
    %2861 = vmatpush2.msra.mxu0 0.0
    %2862 = vmatprep.subr.mxu0 0.0
    %2863 = vmatpush2.msra.mxu0 0.0
    %2864 = vmatprep.subr.mxu0 0.0
    %2865 = vmatpush2.msra.mxu0 0.0
    %2866 = vmatprep.subr.mxu0 0.0
    %2867 = vmatpush2.msra.mxu0 0.0
    %2868 = vmatprep.subr.mxu0 0.0
    %2869 = vmatpush2.msra.mxu0 0.0
    %2870 = vmatprep.subr.mxu0 0.0
    %2871 = vmatpush2.msra.mxu0 0.0
    %2872 = vmatprep.subr.mxu0 0.0
    %2873 = vmatpush2.msra.mxu0 0.0
    %2874 = vmatprep.subr.mxu0 0.0
    %2875 = vmatpush2.msra.mxu0 0.0
    %2876 = vmatprep.subr.mxu0 0.0
    %2877 = vmatpush2.msra.mxu0 0.0
    %2878 = vmatprep.subr.mxu0 0.0
    %2879 = vmatpush2.msra.mxu0 0.0
    %2880 = vmatprep.subr.mxu0 0.0
    %2881 = vmatpush2.msra.mxu0 0.0
    %2882 = vmatprep.subr.mxu0 0.0
    %2883 = vmatpush2.msra.mxu0 0.0
    %2884 = vmatprep.subr.mxu0 0.0
    %2885 = vmatpush2.msra.mxu0 0.0
    %2886 = vmatprep.subr.mxu0 0.0
    %2887 = vmatpush2.msra.mxu0 0.0
    %2888 = vmatprep.subr.mxu0 0.0
    %2889 = vmatpush2.msra.mxu0 0.0
    %2890 = vmatprep.mubr.f32.mxu0 0.0
    %2891 = vmatmul.mubr.f32.gmra.mxu0 %v2824
    %v2892 = vpop.f32.mrf.mxu0
    %v2893 = vadd.f32 0.0, %v2892
    %v2894 = vpop.f32.mrf.mxu0
    %2895 = vdwg.mxu0
    %v2897 = vsel %vm264, %v2814, 0
    %2899 = vmatprep.subr.mxu0 0.0
    %2900 = vmatpush1.msra.mxu0 0.0
    %2901 = vmatprep.subr.mxu0 0.0
    %2902 = vmatpush1.msra.mxu0 0.0
    %2903 = vmatprep.subr.mxu0 0.0
    %2904 = vmatpush1.msra.mxu0 0.0
    %2905 = vmatprep.subr.mxu0 0.0
    %2906 = vmatpush1.msra.mxu0 0.0
    %2907 = vmatprep.subr.mxu0 0.0
    %2908 = vmatpush1.msra.mxu0 0.0
    %2909 = vmatprep.subr.mxu0 0.0
    %2910 = vmatpush1.msra.mxu0 0.0
    %2911 = vmatprep.subr.mxu0 0.0
    %2912 = vmatpush1.msra.mxu0 0.0
    %2913 = vmatprep.subr.mxu0 0.0
    %2914 = vmatpush1.msra.mxu0 0.0
    %2915 = vmatprep.subr.mxu0 0.0
    %2916 = vmatpush1.msra.mxu0 0.0
    %2917 = vmatprep.subr.mxu0 0.0
    %2918 = vmatpush1.msra.mxu0 0.0
    %2919 = vmatprep.subr.mxu0 0.0
    %2920 = vmatpush1.msra.mxu0 0.0
    %2921 = vmatprep.subr.mxu0 0.0
    %2922 = vmatpush1.msra.mxu0 0.0
    %2923 = vmatprep.subr.mxu0 0.0
    %2924 = vmatpush1.msra.mxu0 %v2818
    %2925 = vmatprep.subr.mxu0 0.0
    %2926 = vmatpush1.msra.mxu0 %v2817
    %2927 = vmatprep.subr.mxu0 0.0
    %2928 = vmatpush1.msra.mxu0 %v2816
    %2929 = vmatprep.subr.mxu0 0.0
    %2930 = vmatpush1.msra.mxu0 %v2815
    %2931 = vmatprep.subr.mxu0 0.0
    %2932 = vmatpush2.msra.mxu0 0.0
    %2933 = vmatprep.subr.mxu0 0.0
    %2934 = vmatpush2.msra.mxu0 0.0
    %2935 = vmatprep.subr.mxu0 0.0
    %2936 = vmatpush2.msra.mxu0 0.0
    %2937 = vmatprep.subr.mxu0 0.0
    %2938 = vmatpush2.msra.mxu0 0.0
    %2939 = vmatprep.subr.mxu0 0.0
    %2940 = vmatpush2.msra.mxu0 0.0
    %2941 = vmatprep.subr.mxu0 0.0
    %2942 = vmatpush2.msra.mxu0 0.0
    %2943 = vmatprep.subr.mxu0 0.0
    %2944 = vmatpush2.msra.mxu0 0.0
    %2945 = vmatprep.subr.mxu0 0.0
    %2946 = vmatpush2.msra.mxu0 0.0
    %2947 = vmatprep.subr.mxu0 0.0
    %2948 = vmatpush2.msra.mxu0 0.0
    %2949 = vmatprep.subr.mxu0 0.0
    %2950 = vmatpush2.msra.mxu0 0.0
    %2951 = vmatprep.subr.mxu0 0.0
    %2952 = vmatpush2.msra.mxu0 0.0
    %2953 = vmatprep.subr.mxu0 0.0
    %2954 = vmatpush2.msra.mxu0 0.0
    %2955 = vmatprep.subr.mxu0 0.0
    %2956 = vmatpush2.msra.mxu0 0.0
    %2957 = vmatprep.subr.mxu0 0.0
    %2958 = vmatpush2.msra.mxu0 0.0
    %2959 = vmatprep.subr.mxu0 0.0
    %2960 = vmatpush2.msra.mxu0 0.0
    %2961 = vmatprep.subr.mxu0 0.0
    %2962 = vmatpush2.msra.mxu0 0.0
    %2963 = vmatprep.mubr.f32.mxu0 0.0
    %2964 = vmatmul.mubr.f32.gmra.mxu0 %v2897
    %v2965 = vpop.f32.mrf.mxu0
    %v2966 = vadd.f32 %v2893, %v2965
    %v2967 = vpop.f32.mrf.mxu0
    %2968 = vdwg.mxu0
    %v2969 = vld [vmem:[%s16] sm:$0x1]
    %v2970 = vadd.f32 %v2966, %v2969
    %v2971 = vld [vmem:[%s13] sm:$0xff]
    %v2972 = vld [vmem:[%s13 + $0x8] sm:$0xff]
    %v2973 = vld [vmem:[%s13 + $0x10] sm:$0xff]
    %v2974 = vld [vmem:[%s13 + $0x18] sm:$0xff]
    %v2975 = vlaneseq
    %v2976 = vshrl.u32 %v2975, 7
    %v2977 = vsub.s32 0, %v2976
    %v2978 = vrot.slane %v2970, %v2977
    %v2980 = vsel %vm264, %v522, 0
    %v2983 = vsel %vm264, %v527, 0
    %2985 = vmatprep.subr.mxu0 0.0
    %2986 = vmatpush1.msra.mxu0 0.0
    %2987 = vmatprep.subr.mxu0 0.0
    %2988 = vmatpush1.msra.mxu0 0.0
    %2989 = vmatprep.subr.mxu0 0.0
    %2990 = vmatpush1.msra.mxu0 0.0
    %2991 = vmatprep.subr.mxu0 0.0
    %2992 = vmatpush1.msra.mxu0 0.0
    %2993 = vmatprep.subr.mxu0 0.0
    %2994 = vmatpush1.msra.mxu0 0.0
    %2995 = vmatprep.subr.mxu0 0.0
    %2996 = vmatpush1.msra.mxu0 0.0
    %2997 = vmatprep.subr.mxu0 0.0
    %2998 = vmatpush1.msra.mxu0 0.0
    %2999 = vmatprep.subr.mxu0 0.0
    %3000 = vmatpush1.msra.mxu0 0.0
    %3001 = vmatprep.subr.mxu0 0.0
    %3002 = vmatpush1.msra.mxu0 0.0
    %3003 = vmatprep.subr.mxu0 0.0
    %3004 = vmatpush1.msra.mxu0 0.0
    %3005 = vmatprep.subr.mxu0 0.0
    %3006 = vmatpush1.msra.mxu0 0.0
    %3007 = vmatprep.subr.mxu0 0.0
    %3008 = vmatpush1.msra.mxu0 0.0
    %3009 = vmatprep.subr.mxu0 0.0
    %3010 = vmatpush1.msra.mxu0 %v2974
    %3011 = vmatprep.subr.mxu0 0.0
    %3012 = vmatpush1.msra.mxu0 %v2973
    %3013 = vmatprep.subr.mxu0 0.0
    %3014 = vmatpush1.msra.mxu0 %v2972
    %3015 = vmatprep.subr.mxu0 0.0
    %3016 = vmatpush1.msra.mxu0 %v2971
    %3017 = vmatprep.subr.mxu0 0.0
    %3018 = vmatpush2.msra.mxu0 0.0
    %3019 = vmatprep.subr.mxu0 0.0
    %3020 = vmatpush2.msra.mxu0 0.0
    %3021 = vmatprep.subr.mxu0 0.0
    %3022 = vmatpush2.msra.mxu0 0.0
    %3023 = vmatprep.subr.mxu0 0.0
    %3024 = vmatpush2.msra.mxu0 0.0
    %3025 = vmatprep.subr.mxu0 0.0
    %3026 = vmatpush2.msra.mxu0 0.0
    %3027 = vmatprep.subr.mxu0 0.0
    %3028 = vmatpush2.msra.mxu0 0.0
    %3029 = vmatprep.subr.mxu0 0.0
    %3030 = vmatpush2.msra.mxu0 0.0
    %3031 = vmatprep.subr.mxu0 0.0
    %3032 = vmatpush2.msra.mxu0 0.0
    %3033 = vmatprep.subr.mxu0 0.0
    %3034 = vmatpush2.msra.mxu0 0.0
    %3035 = vmatprep.subr.mxu0 0.0
    %3036 = vmatpush2.msra.mxu0 0.0
    %3037 = vmatprep.subr.mxu0 0.0
    %3038 = vmatpush2.msra.mxu0 0.0
    %3039 = vmatprep.subr.mxu0 0.0
    %3040 = vmatpush2.msra.mxu0 0.0
    %3041 = vmatprep.subr.mxu0 0.0
    %3042 = vmatpush2.msra.mxu0 0.0
    %3043 = vmatprep.subr.mxu0 0.0
    %3044 = vmatpush2.msra.mxu0 0.0
    %3045 = vmatprep.subr.mxu0 0.0
    %3046 = vmatpush2.msra.mxu0 0.0
    %3047 = vmatprep.subr.mxu0 0.0
    %3048 = vmatpush2.msra.mxu0 0.0
    %3049 = vmatprep.mubr.f32.mxu0 0.0
    %3050 = vmatmul.mubr.f32.gmra.mxu0 %v2980
    %v3051 = vpop.f32.mrf.mxu0
    %v3052 = vadd.f32 %v2978, %v3051
    %v3053 = vpop.f32.mrf.mxu0
    %3054 = vmatprep.mubr.f32.mxu0 0.0
    %3055 = vmatmul.mubr.f32.gmra.mxu0 %v2983
    %v3056 = vpop.f32.mrf.mxu0
    %v3057 = vadd.f32 %v2978, %v3056
    %v3058 = vpop.f32.mrf.mxu0
    %3059 = vdwg.mxu0
    %v3060 = vmax.f32 %v3052, 0.0
    %v3061 = vmax.f32 %v3057, 0.0
    %v3062 = vld [vmem:[%s17] sm:$0xff]
    %v3063 = vld [vmem:[%s17 + $0x8] sm:$0xff]
    %v3064 = vld [vmem:[%s17 + $0x10] sm:$0xff]
    %v3065 = vld [vmem:[%s17 + $0x18] sm:$0xff]
    %v3066 = vld [vmem:[%s17 + $0x20] sm:$0xff]
    %v3067 = vld [vmem:[%s17 + $0x28] sm:$0xff]
    %v3068 = vld [vmem:[%s17 + $0x30] sm:$0xff]
    %v3069 = vld [vmem:[%s17 + $0x38] sm:$0xff]
    %v3070 = vld [vmem:[%s18] sm:$0x1]
    %v3072 = vlaneseq
    %v3073 = vshrl.u32 %v3072, 7
    %v3074 = vsub.s32 0, %v3073
    %v3075 = vrot.slane %v3070, %v3074
    %vm3077 = vcmask 523264
    %v3079 = vsel %vm3077, %v3060, 0
    %v3082 = vsel %vm3077, %v3061, 0
    %3084 = vmatprep.subr.mxu0 0.0
    %3085 = vmatpush1.msra.mxu0 0.0
    %3086 = vmatprep.subr.mxu0 0.0
    %3087 = vmatpush1.msra.mxu0 0.0
    %3088 = vmatprep.subr.mxu0 0.0
    %3089 = vmatpush1.msra.mxu0 0.0
    %3090 = vmatprep.subr.mxu0 0.0
    %3091 = vmatpush1.msra.mxu0 0.0
    %3092 = vmatprep.subr.mxu0 0.0
    %3093 = vmatpush1.msra.mxu0 0.0
    %3094 = vmatprep.subr.mxu0 0.0
    %3095 = vmatpush1.msra.mxu0 0.0
    %3096 = vmatprep.subr.mxu0 0.0
    %3097 = vmatpush1.msra.mxu0 0.0
    %3098 = vmatprep.subr.mxu0 0.0
    %3099 = vmatpush1.msra.mxu0 0.0
    %3100 = vmatprep.subr.mxu0 0.0
    %3101 = vmatpush1.msra.mxu0 %v3069
    %3102 = vmatprep.subr.mxu0 0.0
    %3103 = vmatpush1.msra.mxu0 %v3068
    %3104 = vmatprep.subr.mxu0 0.0
    %3105 = vmatpush1.msra.mxu0 %v3067
    %3106 = vmatprep.subr.mxu0 0.0
    %3107 = vmatpush1.msra.mxu0 %v3066
    %3108 = vmatprep.subr.mxu0 0.0
    %3109 = vmatpush1.msra.mxu0 %v3065
    %3110 = vmatprep.subr.mxu0 0.0
    %3111 = vmatpush1.msra.mxu0 %v3064
    %3112 = vmatprep.subr.mxu0 0.0
    %3113 = vmatpush1.msra.mxu0 %v3063
    %3114 = vmatprep.subr.mxu0 0.0
    %3115 = vmatpush1.msra.mxu0 %v3062
    %3116 = vmatprep.subr.mxu0 0.0
    %3117 = vmatpush2.msra.mxu0 0.0
    %3118 = vmatprep.subr.mxu0 0.0
    %3119 = vmatpush2.msra.mxu0 0.0
    %3120 = vmatprep.subr.mxu0 0.0
    %3121 = vmatpush2.msra.mxu0 0.0
    %3122 = vmatprep.subr.mxu0 0.0
    %3123 = vmatpush2.msra.mxu0 0.0
    %3124 = vmatprep.subr.mxu0 0.0
    %3125 = vmatpush2.msra.mxu0 0.0
    %3126 = vmatprep.subr.mxu0 0.0
    %3127 = vmatpush2.msra.mxu0 0.0
    %3128 = vmatprep.subr.mxu0 0.0
    %3129 = vmatpush2.msra.mxu0 0.0
    %3130 = vmatprep.subr.mxu0 0.0
    %3131 = vmatpush2.msra.mxu0 0.0
    %3132 = vmatprep.subr.mxu0 0.0
    %3133 = vmatpush2.msra.mxu0 0.0
    %3134 = vmatprep.subr.mxu0 0.0
    %3135 = vmatpush2.msra.mxu0 0.0
    %3136 = vmatprep.subr.mxu0 0.0
    %3137 = vmatpush2.msra.mxu0 0.0
    %3138 = vmatprep.subr.mxu0 0.0
    %3139 = vmatpush2.msra.mxu0 0.0
    %3140 = vmatprep.subr.mxu0 0.0
    %3141 = vmatpush2.msra.mxu0 0.0
    %3142 = vmatprep.subr.mxu0 0.0
    %3143 = vmatpush2.msra.mxu0 0.0
    %3144 = vmatprep.subr.mxu0 0.0
    %3145 = vmatpush2.msra.mxu0 0.0
    %3146 = vmatprep.subr.mxu0 0.0
    %3147 = vmatpush2.msra.mxu0 0.0
    %3148 = vmatprep.mubr.f32.mxu0 0.0
    %3149 = vmatmul.mubr.f32.gmra.mxu0 %v3079
    %v3150 = vpop.f32.mrf.mxu0
    %v3151 = vadd.f32 %v3075, %v3150
    %v3152 = vpop.f32.mrf.mxu0
    %3153 = vmatprep.mubr.f32.mxu0 0.0
    %3154 = vmatmul.mubr.f32.gmra.mxu0 %v3082
    %v3155 = vpop.f32.mrf.mxu0
    %v3156 = vadd.f32 %v3075, %v3155
    %v3157 = vpop.f32.mrf.mxu0
    %3158 = vdwg.mxu0
    %v3159 = vmax.f32 %v3151, 0.0
    %v3160 = vmax.f32 %v3156, 0.0
    %v3161 = vld [vmem:[%s19] sm:$0xff]
    %v3162 = vld [vmem:[%s19 + $0x8] sm:$0xff]
    %v3163 = vld [vmem:[%s19 + $0x10] sm:$0xff]
    %v3164 = vld [vmem:[%s19 + $0x18] sm:$0xff]
    %v3165 = vld [vmem:[%s20] sm:$0x1]
    %v3167 = vlaneseq
    %v3168 = vshrl.u32 %v3167, 7
    %v3169 = vsub.s32 0, %v3168
    %v3170 = vrot.slane %v3165, %v3169
    %v3173 = vsel %vm264, %v3159, 0
    %v3176 = vsel %vm264, %v3160, 0
    %3178 = vmatprep.subr.mxu0 0.0
    %3179 = vmatpush1.msra.mxu0 0.0
    %3180 = vmatprep.subr.mxu0 0.0
    %3181 = vmatpush1.msra.mxu0 0.0
    %3182 = vmatprep.subr.mxu0 0.0
    %3183 = vmatpush1.msra.mxu0 0.0
    %3184 = vmatprep.subr.mxu0 0.0
    %3185 = vmatpush1.msra.mxu0 0.0
    %3186 = vmatprep.subr.mxu0 0.0
    %3187 = vmatpush1.msra.mxu0 0.0
    %3188 = vmatprep.subr.mxu0 0.0
    %3189 = vmatpush1.msra.mxu0 0.0
    %3190 = vmatprep.subr.mxu0 0.0
    %3191 = vmatpush1.msra.mxu0 0.0
    %3192 = vmatprep.subr.mxu0 0.0
    %3193 = vmatpush1.msra.mxu0 0.0
    %3194 = vmatprep.subr.mxu0 0.0
    %3195 = vmatpush1.msra.mxu0 0.0
    %3196 = vmatprep.subr.mxu0 0.0
    %3197 = vmatpush1.msra.mxu0 0.0
    %3198 = vmatprep.subr.mxu0 0.0
    %3199 = vmatpush1.msra.mxu0 0.0
    %3200 = vmatprep.subr.mxu0 0.0
    %3201 = vmatpush1.msra.mxu0 0.0
    %3202 = vmatprep.subr.mxu0 0.0
    %3203 = vmatpush1.msra.mxu0 %v3164
    %3204 = vmatprep.subr.mxu0 0.0
    %3205 = vmatpush1.msra.mxu0 %v3163
    %3206 = vmatprep.subr.mxu0 0.0
    %3207 = vmatpush1.msra.mxu0 %v3162
    %3208 = vmatprep.subr.mxu0 0.0
    %3209 = vmatpush1.msra.mxu0 %v3161
    %3210 = vmatprep.subr.mxu0 0.0
    %3211 = vmatpush2.msra.mxu0 0.0
    %3212 = vmatprep.subr.mxu0 0.0
    %3213 = vmatpush2.msra.mxu0 0.0
    %3214 = vmatprep.subr.mxu0 0.0
    %3215 = vmatpush2.msra.mxu0 0.0
    %3216 = vmatprep.subr.mxu0 0.0
    %3217 = vmatpush2.msra.mxu0 0.0
    %3218 = vmatprep.subr.mxu0 0.0
    %3219 = vmatpush2.msra.mxu0 0.0
    %3220 = vmatprep.subr.mxu0 0.0
    %3221 = vmatpush2.msra.mxu0 0.0
    %3222 = vmatprep.subr.mxu0 0.0
    %3223 = vmatpush2.msra.mxu0 0.0
    %3224 = vmatprep.subr.mxu0 0.0
    %3225 = vmatpush2.msra.mxu0 0.0
    %3226 = vmatprep.subr.mxu0 0.0
    %3227 = vmatpush2.msra.mxu0 0.0
    %3228 = vmatprep.subr.mxu0 0.0
    %3229 = vmatpush2.msra.mxu0 0.0
    %3230 = vmatprep.subr.mxu0 0.0
    %3231 = vmatpush2.msra.mxu0 0.0
    %3232 = vmatprep.subr.mxu0 0.0
    %3233 = vmatpush2.msra.mxu0 0.0
    %3234 = vmatprep.subr.mxu0 0.0
    %3235 = vmatpush2.msra.mxu0 0.0
    %3236 = vmatprep.subr.mxu0 0.0
    %3237 = vmatpush2.msra.mxu0 0.0
    %3238 = vmatprep.subr.mxu0 0.0
    %3239 = vmatpush2.msra.mxu0 0.0
    %3240 = vmatprep.subr.mxu0 0.0
    %3241 = vmatpush2.msra.mxu0 0.0
    %3242 = vmatprep.mubr.f32.mxu0 0.0
    %3243 = vmatmul.mubr.f32.gmra.mxu0 %v3173
    %v3244 = vpop.f32.mrf.mxu0
    %v3245 = vadd.f32 %v3170, %v3244
    %v3246 = vpop.f32.mrf.mxu0
    %3247 = vmatprep.mubr.f32.mxu0 0.0
    %3248 = vmatmul.mubr.f32.gmra.mxu0 %v3176
    %v3249 = vpop.f32.mrf.mxu0
    %v3250 = vadd.f32 %v3170, %v3249
    %v3251 = vpop.f32.mrf.mxu0
    %3252 = vdwg.mxu0
    %v3253 = vsel %vm264, %v3245, -inf
    %3254 = vmax.xlane.f32.xlu0 %v3253
    %v3255 = vpop.xlane.xlu0 %3254
    %v3256 = vsel %vm264, %v3250, -inf
    %3257 = vmax.xlane.f32.xlu0 %v3256
    %v3258 = vpop.xlane.xlu0 %3257
    %v3259 = vsub.f32 %v3245, %v3255
    %v3260 = vsub.f32 %v3250, %v3258
    %v3261 = vmul.f32 %v3259, 1.442695
    %v3262 = vpow.pop %v3261
    %v3263 = vmul.f32 %v3260, 1.442695
    %v3264 = vpow.pop %v3263
    %v3265 = vsel %vm264, %v3262, 0.0
    %3266 = vadd.xlane.f32.xlu0 %v3265
    %v3267 = vpop.xlane.xlu0 %3266
    %v3268 = vsel %vm264, %v3264, 0.0
    %3269 = vadd.xlane.f32.xlu0 %v3268
    %v3270 = vpop.xlane.xlu0 %3269
    %v3271 = vlog2.pop %v3267
    %v3272 = vmul.f32 %v3271, 0.6931472
    %v3273 = vlog2.pop %v3270
    %v3274 = vmul.f32 %v3273, 0.6931472
    %v3275 = vsub.f32 %v3259, %v3272
    %v3276 = vsub.f32 %v3260, %v3274
    %3277 = vst.msk [vmem:[#allocation2] sm:$0xff] %vm264, %v3275
    %3278 = vst.msk [vmem:[#allocation2 + $0x8] sm:$0xff] %vm264, %v3276
    // Predicated region
    $region86: #{gnn_forward.1} parent=1 // pred_check
      _
    $region87: #{gnn_forward.1} parent=1 // pred_check_branch
      %3280 = sbr.rel (0) target = $region89
    $region88: #{gnn_forward.1} parent=1 // pred_region
      %s3282 = ssub.s32 256, 256
      %3283 = vsyncadd [#allocation3], %s3282
      %s3284 = sshll.u32 [#allocation2], 4
      %s3285 = int_to_ptr.vmem [resolvable:$true] %s3284
      %3290 = dma.vmem_to_hbm [thread:$0]  %s3285, 256, %s21, [#allocation3], 128, 128, 8
    $region89: #{gnn_forward.1} parent=1 // pred_fallthru
      _
    // Predicated region
    $region90: #{gnn_forward.1} parent=1 // pred_check
      _
    $region91: #{gnn_forward.1} parent=1 // pred_check_branch
      %3292 = sbr.rel (0) target = $region93
    $region92: #{gnn_forward.1} parent=1 // pred_region
      %3293 = dma.done [#allocation3], 256
    $region93: #{gnn_forward.1} parent=1 // pred_fallthru
      _
    %3294 = vsyncpa [#allocation3], 1

</llo_original>
